<compile_context>
chip_gen: v6e
topology: v6e:2x2x1
jax: 0.10.0
libtpu: 0.0.40
codegen_flags: <defaults>
</compile_context>

<pallas_src>
import jax
import jax.numpy as jnp
import numpy as np
from jax.experimental import pallas as pl
from jax.experimental.pallas import tpu as pltpu

# ----------------------------- problem sizes -------------------------------
INPUT_SIZE = 16
HIDDEN_SIZE = 32
OUTPUT_SIZE = 8
NUM_LAYERS = 2   # kernel below is written for exactly 2 layers
SEQ_LEN = 8
BATCH = 1        # implied by init_hidden(): torch.zeros(num_layers, 1, hidden)

LANE = 128       # lane-pad all last dims to one full vreg width


# ------------------------------ Pallas kernel ------------------------------
def rnn_fc_kernel(x_ref,                        # (seq, LANE)   input, lane-padded
                  wih0_ref, whh0_ref, b0_ref,   # layer 0 (pre-transposed, padded) + fused bias
                  wih1_ref, whh1_ref, b1_ref,   # layer 1 (pre-transposed, padded) + fused bias
                  wfc_ref, bfc_ref,             # fc weight (LANE, LANE) + bias (1, LANE)
                  out_ref,                      # (seq, LANE)   fc output (padded)
                  hlast_ref):                   # (2, LANE)     final hidden per layer
    seq = x_ref.shape[0]           # static (8)
    hpad = whh0_ref.shape[1]       # static (128)

    # Hoist only the values on the serial critical path (recurrent weights +
    # fused biases): 2*16 + 2 = 34 vregs, well inside the 64-vreg file.
    whh0 = whh0_ref[...]
    whh1 = whh1_ref[...]
    b1 = b1_ref[...]
    bfc = bfc_ref[...]

    # ---- hoisted layer-0 input projection + fused bias: one 8-row MXU matmul ----
    pre0 = (jnp.dot(x_ref[...], wih0_ref[...], preferred_element_type=jnp.float32)
            + b0_ref[...])                                           # (seq, hpad)

    # ---- single interleaved, fully-unrolled recurrence over time ----
    h0 = jnp.zeros((1, hpad), jnp.float32)
    h1 = jnp.zeros((1, hpad), jnp.float32)
    for t in range(seq):
        # layer-0 step (the tight serial chain: dot + tanh per timestep)
        h0 = jnp.tanh(pre0[t:t + 1, :]
                      + jnp.dot(h0, whh0, preferred_element_type=jnp.float32))
        # layer-1 step: depends on h0_t and h1_{t-1}; overlaps with the next
        # layer-0 step in the VLIW schedule.
        h1 = jnp.tanh(jnp.dot(h0, wih1_ref[...], preferred_element_type=jnp.float32)
                      + jnp.dot(h1, whh1, preferred_element_type=jnp.float32)
                      + b1)
        # fused fc for this timestep: independent of the recurrence chain,
        # lane-dense (128-wide) static row store.
        out_ref[pl.ds(t, 1), :] = (
            jnp.dot(h1, wfc_ref[...], preferred_element_type=jnp.float32) + bfc)

    # ---- final hidden state: two direct static row stores (no concatenate) ----
    hlast_ref[pl.ds(0, 1), :] = h0
    hlast_ref[pl.ds(1, 1), :] = h1


# ------------------------------- wrapper ------------------------------------
def _pad2(a, rows, cols):
    """Zero-pad a 2-D array to (rows, cols)."""
    out = jnp.zeros((rows, cols), jnp.float32)
    return out.at[: a.shape[0], : a.shape[1]].set(a.astype(jnp.float32))


@jax.jit
def rnn_model_forward(x, params):
    """x: (1, seq, input_size) float32.  Returns (output, hidden_state) exactly
    as the PyTorch module: output (seq*1, output_size), hidden (num_layers, 1, hidden)."""
    assert x.shape[0] == BATCH
    seq = x.shape[1]
    x2d = x.reshape(seq, INPUT_SIZE)

    # lane-pad input to a full vreg width
    x_pad = _pad2(x2d, seq, LANE)

    # pre-transpose weights, fuse the two RNN biases per layer, lane/contraction-pad to 128
    wih0_p = _pad2(params["weight_ih_l0"].T, LANE, LANE)             # (input->128, hidden->128)
    whh0_p = _pad2(params["weight_hh_l0"].T, LANE, LANE)
    b0_p = _pad2((params["bias_ih_l0"] + params["bias_hh_l0"]).reshape(1, HIDDEN_SIZE), 1, LANE)
    wih1_p = _pad2(params["weight_ih_l1"].T, LANE, LANE)
    whh1_p = _pad2(params["weight_hh_l1"].T, LANE, LANE)
    b1_p = _pad2((params["bias_ih_l1"] + params["bias_hh_l1"]).reshape(1, HIDDEN_SIZE), 1, LANE)
    wfc_p = _pad2(params["fc_weight"].T, LANE, LANE)                 # (hidden->128, output->128)
    bfc_p = _pad2(params["fc_bias"].reshape(1, OUTPUT_SIZE), 1, LANE)

    out_pad, hlast_pad = pl.pallas_call(
        rnn_fc_kernel,
        out_shape=(
            jax.ShapeDtypeStruct((seq, LANE), jnp.float32),
            jax.ShapeDtypeStruct((NUM_LAYERS, LANE), jnp.float32),
        ),
    )(x_pad, wih0_p, whh0_p, b0_p, wih1_p, whh1_p, b1_p, wfc_p, bfc_p)

    out = out_pad[:, :OUTPUT_SIZE]
    hidden = hlast_pad[:, :HIDDEN_SIZE].reshape(NUM_LAYERS, 1, HIDDEN_SIZE)
    return out, hidden


# ------------------------- deterministic parameters --------------------------
def init_params(key):
    k = 1.0 / np.sqrt(HIDDEN_SIZE)
    keys = jax.random.split(key, 10)
    u = lambda kk, shape: jax.random.uniform(kk, shape, jnp.float32, -k, k)
    return {
        "weight_ih_l0": u(keys[0], (HIDDEN_SIZE, INPUT_SIZE)),
        "weight_hh_l0": u(keys[1], (HIDDEN_SIZE, HIDDEN_SIZE)),
        "bias_ih_l0":   u(keys[2], (HIDDEN_SIZE,)),
        "bias_hh_l0":   u(keys[3], (HIDDEN_SIZE,)),
        "weight_ih_l1": u(keys[4], (HIDDEN_SIZE, HIDDEN_SIZE)),
        "weight_hh_l1": u(keys[5], (HIDDEN_SIZE, HIDDEN_SIZE)),
        "bias_ih_l1":   u(keys[6], (HIDDEN_SIZE,)),
        "bias_hh_l1":   u(keys[7], (HIDDEN_SIZE,)),
        "fc_weight":    u(keys[8], (OUTPUT_SIZE, HIDDEN_SIZE)),
        "fc_bias":      u(keys[9], (OUTPUT_SIZE,)),
    }


# ------------------------------ pure-JAX reference ---------------------------
def ref_forward(x, p):
    seq = x.shape[1]
    h0 = jnp.zeros((1, HIDDEN_SIZE), jnp.float32)
    h1 = jnp.zeros((1, HIDDEN_SIZE), jnp.float32)
    outs = []
    for t in range(seq):
        xt = x[0, t][None, :]
        h0 = jnp.tanh(xt @ p["weight_ih_l0"].T + p["bias_ih_l0"]
                      + h0 @ p["weight_hh_l0"].T + p["bias_hh_l0"])
        h1 = jnp.tanh(h0 @ p["weight_ih_l1"].T + p["bias_ih_l1"]
                      + h1 @ p["weight_hh_l1"].T + p["bias_hh_l1"])
        outs.append(h1)
    rnn_out = jnp.concatenate(outs, axis=0)                 # (seq, hidden)
    out = rnn_out @ p["fc_weight"].T + p["fc_bias"]         # (seq, output)
    hidden = jnp.stack([h0, h1], axis=0)                    # (layers, 1, hidden)
    return out, hidden


# ---------------------------------- main -------------------------------------
if __name__ == "__main__":
    key = jax.random.PRNGKey(0)
    kx, kp = jax.random.split(key)
    params = init_params(kp)

    x = jax.random.normal(kx, (BATCH, SEQ_LEN, INPUT_SIZE), jnp.float32)

    out, hidden = rnn_model_forward(x, params)
    out = jax.block_until_ready(out)
    hidden = jax.block_until_ready(hidden)

    out_ref, hidden_ref = ref_forward(x, params)
    np.testing.assert_allclose(np.asarray(out), np.asarray(out_ref), rtol=1e-5, atol=1e-5)
    np.testing.assert_allclose(np.asarray(hidden), np.asarray(hidden_ref), rtol=1e-5, atol=1e-5)

    assert out.shape == (SEQ_LEN * BATCH, OUTPUT_SIZE)
    assert hidden.shape == (NUM_LAYERS, 1, HIDDEN_SIZE)
    print("KERNEL_OK")
</pallas_src>

<mosaic_0001>
module attributes {stable_mosaic.version = 11 : i64} {
  func.func @rnn_fc_kernel(%arg0: memref<8x128xf32, #tpu.memory_space<vmem>>, %arg1: memref<128x128xf32, #tpu.memory_space<vmem>>, %arg2: memref<128x128xf32, #tpu.memory_space<vmem>>, %arg3: memref<1x128xf32, #tpu.memory_space<vmem>>, %arg4: memref<128x128xf32, #tpu.memory_space<vmem>>, %arg5: memref<128x128xf32, #tpu.memory_space<vmem>>, %arg6: memref<1x128xf32, #tpu.memory_space<vmem>>, %arg7: memref<128x128xf32, #tpu.memory_space<vmem>>, %arg8: memref<1x128xf32, #tpu.memory_space<vmem>>, %arg9: memref<8x128xf32, #tpu.memory_space<vmem>>, %arg10: memref<2x128xf32, #tpu.memory_space<vmem>>) attributes {dimension_semantics = [], scalar_prefetch = 0 : i64, scratch_operands = 0 : i64, tpu.core_type = #tpu.core_type<tc>} {
    %c0 = arith.constant 0 : index
    %c0_0 = arith.constant 0 : index
    %0 = vector.load %arg2[%c0, %c0_0] : memref<128x128xf32, #tpu.memory_space<vmem>>, vector<128x128xf32>
    %c0_1 = arith.constant 0 : index
    %c0_2 = arith.constant 0 : index
    %1 = vector.load %arg5[%c0_1, %c0_2] : memref<128x128xf32, #tpu.memory_space<vmem>>, vector<128x128xf32>
    %c0_3 = arith.constant 0 : index
    %c0_4 = arith.constant 0 : index
    %2 = vector.load %arg6[%c0_3, %c0_4] : memref<1x128xf32, #tpu.memory_space<vmem>>, vector<1x128xf32>
    %c0_5 = arith.constant 0 : index
    %c0_6 = arith.constant 0 : index
    %3 = vector.load %arg8[%c0_5, %c0_6] : memref<1x128xf32, #tpu.memory_space<vmem>>, vector<1x128xf32>
    %c0_7 = arith.constant 0 : index
    %c0_8 = arith.constant 0 : index
    %4 = vector.load %arg0[%c0_7, %c0_8] : memref<8x128xf32, #tpu.memory_space<vmem>>, vector<8x128xf32>
    %c0_9 = arith.constant 0 : index
    %c0_10 = arith.constant 0 : index
    %5 = vector.load %arg1[%c0_9, %c0_10] : memref<128x128xf32, #tpu.memory_space<vmem>>, vector<128x128xf32>
    %cst = arith.constant dense<0.000000e+00> : vector<8x128xf32>
    %6 = tpu.matmul %4, %5, %cst {dimension_numbers = #tpu.dot_dimension_numbers<[1], [0], [0], [1], [0, 0, 1, 1], [], []>} : vector<8x128xf32>, vector<128x128xf32>, vector<8x128xf32> -> vector<8x128xf32>
    %c0_11 = arith.constant 0 : index
    %c0_12 = arith.constant 0 : index
    %7 = vector.load %arg3[%c0_11, %c0_12] : memref<1x128xf32, #tpu.memory_space<vmem>>, vector<1x128xf32>
    %8 = vector.broadcast %7 : vector<1x128xf32> to vector<8x128xf32>
    %9 = arith.addf %6, %8 : vector<8x128xf32>
    %cst_13 = arith.constant 0.000000e+00 : f32
    %10 = vector.broadcast %cst_13 : f32 to vector<1x128xf32>
    %cst_14 = arith.constant 0.000000e+00 : f32
    %11 = vector.broadcast %cst_14 : f32 to vector<1x128xf32>
    %12 = vector.extract_strided_slice %9 {offsets = [0, 0], sizes = [1, 128], strides = [1, 1]} : vector<8x128xf32> to vector<1x128xf32>
    %cst_15 = arith.constant dense<0.000000e+00> : vector<1x128xf32>
    %13 = tpu.matmul %10, %0, %cst_15 {dimension_numbers = #tpu.dot_dimension_numbers<[1], [0], [0], [1], [0, 0, 1, 1], [], []>} : vector<1x128xf32>, vector<128x128xf32>, vector<1x128xf32> -> vector<1x128xf32>
    %14 = arith.addf %12, %13 : vector<1x128xf32>
    %15 = math.tanh %14 : vector<1x128xf32>
    %c0_16 = arith.constant 0 : index
    %c0_17 = arith.constant 0 : index
    %16 = vector.load %arg4[%c0_16, %c0_17] : memref<128x128xf32, #tpu.memory_space<vmem>>, vector<128x128xf32>
    %cst_18 = arith.constant dense<0.000000e+00> : vector<1x128xf32>
    %17 = tpu.matmul %15, %16, %cst_18 {dimension_numbers = #tpu.dot_dimension_numbers<[1], [0], [0], [1], [0, 0, 1, 1], [], []>} : vector<1x128xf32>, vector<128x128xf32>, vector<1x128xf32> -> vector<1x128xf32>
    %cst_19 = arith.constant dense<0.000000e+00> : vector<1x128xf32>
    %18 = tpu.matmul %11, %1, %cst_19 {dimension_numbers = #tpu.dot_dimension_numbers<[1], [0], [0], [1], [0, 0, 1, 1], [], []>} : vector<1x128xf32>, vector<128x128xf32>, vector<1x128xf32> -> vector<1x128xf32>
    %19 = arith.addf %17, %18 : vector<1x128xf32>
    %20 = arith.addf %19, %2 : vector<1x128xf32>
    %21 = math.tanh %20 : vector<1x128xf32>
    %c0_20 = arith.constant 0 : index
    %c0_21 = arith.constant 0 : index
    %22 = vector.load %arg7[%c0_20, %c0_21] : memref<128x128xf32, #tpu.memory_space<vmem>>, vector<128x128xf32>
    %cst_22 = arith.constant dense<0.000000e+00> : vector<1x128xf32>
    %23 = tpu.matmul %21, %22, %cst_22 {dimension_numbers = #tpu.dot_dimension_numbers<[1], [0], [0], [1], [0, 0, 1, 1], [], []>} : vector<1x128xf32>, vector<128x128xf32>, vector<1x128xf32> -> vector<1x128xf32>
    %24 = arith.addf %23, %3 : vector<1x128xf32>
    %c0_23 = arith.constant 0 : index
    %c0_24 = arith.constant 0 : index
    %25 = vector.load %arg9[%c0_23, %c0_24] : memref<8x128xf32, #tpu.memory_space<vmem>>, vector<1x128xf32>
    tpu.vector_store %arg9[%c0_23, %c0_24], %24 {strides = array<i32>} : memref<8x128xf32, #tpu.memory_space<vmem>>, vector<1x128xf32>,
    %26 = vector.extract_strided_slice %9 {offsets = [1, 0], sizes = [1, 128], strides = [1, 1]} : vector<8x128xf32> to vector<1x128xf32>
    %cst_25 = arith.constant dense<0.000000e+00> : vector<1x128xf32>
    %27 = tpu.matmul %15, %0, %cst_25 {dimension_numbers = #tpu.dot_dimension_numbers<[1], [0], [0], [1], [0, 0, 1, 1], [], []>} : vector<1x128xf32>, vector<128x128xf32>, vector<1x128xf32> -> vector<1x128xf32>
    %28 = arith.addf %26, %27 : vector<1x128xf32>
    %29 = math.tanh %28 : vector<1x128xf32>
    %c0_26 = arith.constant 0 : index
    %c0_27 = arith.constant 0 : index
    %30 = vector.load %arg4[%c0_26, %c0_27] : memref<128x128xf32, #tpu.memory_space<vmem>>, vector<128x128xf32>
    %cst_28 = arith.constant dense<0.000000e+00> : vector<1x128xf32>
    %31 = tpu.matmul %29, %30, %cst_28 {dimension_numbers = #tpu.dot_dimension_numbers<[1], [0], [0], [1], [0, 0, 1, 1], [], []>} : vector<1x128xf32>, vector<128x128xf32>, vector<1x128xf32> -> vector<1x128xf32>
    %cst_29 = arith.constant dense<0.000000e+00> : vector<1x128xf32>
    %32 = tpu.matmul %21, %1, %cst_29 {dimension_numbers = #tpu.dot_dimension_numbers<[1], [0], [0], [1], [0, 0, 1, 1], [], []>} : vector<1x128xf32>, vector<128x128xf32>, vector<1x128xf32> -> vector<1x128xf32>
    %33 = arith.addf %31, %32 : vector<1x128xf32>
    %34 = arith.addf %33, %2 : vector<1x128xf32>
    %35 = math.tanh %34 : vector<1x128xf32>
    %c0_30 = arith.constant 0 : index
    %c0_31 = arith.constant 0 : index
    %36 = vector.load %arg7[%c0_30, %c0_31] : memref<128x128xf32, #tpu.memory_space<vmem>>, vector<128x128xf32>
    %cst_32 = arith.constant dense<0.000000e+00> : vector<1x128xf32>
    %37 = tpu.matmul %35, %36, %cst_32 {dimension_numbers = #tpu.dot_dimension_numbers<[1], [0], [0], [1], [0, 0, 1, 1], [], []>} : vector<1x128xf32>, vector<128x128xf32>, vector<1x128xf32> -> vector<1x128xf32>
    %38 = arith.addf %37, %3 : vector<1x128xf32>
    %c1 = arith.constant 1 : index
    %c0_33 = arith.constant 0 : index
    %39 = vector.load %arg9[%c1, %c0_33] : memref<8x128xf32, #tpu.memory_space<vmem>>, vector<1x128xf32>
    tpu.vector_store %arg9[%c1, %c0_33], %38 {strides = array<i32>} : memref<8x128xf32, #tpu.memory_space<vmem>>, vector<1x128xf32>,
    %40 = vector.extract_strided_slice %9 {offsets = [2, 0], sizes = [1, 128], strides = [1, 1]} : vector<8x128xf32> to vector<1x128xf32>
    %cst_34 = arith.constant dense<0.000000e+00> : vector<1x128xf32>
    %41 = tpu.matmul %29, %0, %cst_34 {dimension_numbers = #tpu.dot_dimension_numbers<[1], [0], [0], [1], [0, 0, 1, 1], [], []>} : vector<1x128xf32>, vector<128x128xf32>, vector<1x128xf32> -> vector<1x128xf32>
    %42 = arith.addf %40, %41 : vector<1x128xf32>
    %43 = math.tanh %42 : vector<1x128xf32>
    %c0_35 = arith.constant 0 : index
    %c0_36 = arith.constant 0 : index
    %44 = vector.load %arg4[%c0_35, %c0_36] : memref<128x128xf32, #tpu.memory_space<vmem>>, vector<128x128xf32>
    %cst_37 = arith.constant dense<0.000000e+00> : vector<1x128xf32>
    %45 = tpu.matmul %43, %44, %cst_37 {dimension_numbers = #tpu.dot_dimension_numbers<[1], [0], [0], [1], [0, 0, 1, 1], [], []>} : vector<1x128xf32>, vector<128x128xf32>, vector<1x128xf32> -> vector<1x128xf32>
    %cst_38 = arith.constant dense<0.000000e+00> : vector<1x128xf32>
    %46 = tpu.matmul %35, %1, %cst_38 {dimension_numbers = #tpu.dot_dimension_numbers<[1], [0], [0], [1], [0, 0, 1, 1], [], []>} : vector<1x128xf32>, vector<128x128xf32>, vector<1x128xf32> -> vector<1x128xf32>
    %47 = arith.addf %45, %46 : vector<1x128xf32>
    %48 = arith.addf %47, %2 : vector<1x128xf32>
    %49 = math.tanh %48 : vector<1x128xf32>
    %c0_39 = arith.constant 0 : index
    %c0_40 = arith.constant 0 : index
    %50 = vector.load %arg7[%c0_39, %c0_40] : memref<128x128xf32, #tpu.memory_space<vmem>>, vector<128x128xf32>
    %cst_41 = arith.constant dense<0.000000e+00> : vector<1x128xf32>
    %51 = tpu.matmul %49, %50, %cst_41 {dimension_numbers = #tpu.dot_dimension_numbers<[1], [0], [0], [1], [0, 0, 1, 1], [], []>} : vector<1x128xf32>, vector<128x128xf32>, vector<1x128xf32> -> vector<1x128xf32>
    %52 = arith.addf %51, %3 : vector<1x128xf32>
    %c2 = arith.constant 2 : index
    %c0_42 = arith.constant 0 : index
    %53 = vector.load %arg9[%c2, %c0_42] : memref<8x128xf32, #tpu.memory_space<vmem>>, vector<1x128xf32>
    tpu.vector_store %arg9[%c2, %c0_42], %52 {strides = array<i32>} : memref<8x128xf32, #tpu.memory_space<vmem>>, vector<1x128xf32>,
    %54 = vector.extract_strided_slice %9 {offsets = [3, 0], sizes = [1, 128], strides = [1, 1]} : vector<8x128xf32> to vector<1x128xf32>
    %cst_43 = arith.constant dense<0.000000e+00> : vector<1x128xf32>
    %55 = tpu.matmul %43, %0, %cst_43 {dimension_numbers = #tpu.dot_dimension_numbers<[1], [0], [0], [1], [0, 0, 1, 1], [], []>} : vector<1x128xf32>, vector<128x128xf32>, vector<1x128xf32> -> vector<1x128xf32>
    %56 = arith.addf %54, %55 : vector<1x128xf32>
    %57 = math.tanh %56 : vector<1x128xf32>
    %c0_44 = arith.constant 0 : index
    %c0_45 = arith.constant 0 : index
    %58 = vector.load %arg4[%c0_44, %c0_45] : memref<128x128xf32, #tpu.memory_space<vmem>>, vector<128x128xf32>
    %cst_46 = arith.constant dense<0.000000e+00> : vector<1x128xf32>
    %59 = tpu.matmul %57, %58, %cst_46 {dimension_numbers = #tpu.dot_dimension_numbers<[1], [0], [0], [1], [0, 0, 1, 1], [], []>} : vector<1x128xf32>, vector<128x128xf32>, vector<1x128xf32> -> vector<1x128xf32>
    %cst_47 = arith.constant dense<0.000000e+00> : vector<1x128xf32>
    %60 = tpu.matmul %49, %1, %cst_47 {dimension_numbers = #tpu.dot_dimension_numbers<[1], [0], [0], [1], [0, 0, 1, 1], [], []>} : vector<1x128xf32>, vector<128x128xf32>, vector<1x128xf32> -> vector<1x128xf32>
    %61 = arith.addf %59, %60 : vector<1x128xf32>
    %62 = arith.addf %61, %2 : vector<1x128xf32>
    %63 = math.tanh %62 : vector<1x128xf32>
    %c0_48 = arith.constant 0 : index
    %c0_49 = arith.constant 0 : index
    %64 = vector.load %arg7[%c0_48, %c0_49] : memref<128x128xf32, #tpu.memory_space<vmem>>, vector<128x128xf32>
    %cst_50 = arith.constant dense<0.000000e+00> : vector<1x128xf32>
    %65 = tpu.matmul %63, %64, %cst_50 {dimension_numbers = #tpu.dot_dimension_numbers<[1], [0], [0], [1], [0, 0, 1, 1], [], []>} : vector<1x128xf32>, vector<128x128xf32>, vector<1x128xf32> -> vector<1x128xf32>
    %66 = arith.addf %65, %3 : vector<1x128xf32>
    %c3 = arith.constant 3 : index
    %c0_51 = arith.constant 0 : index
    %67 = vector.load %arg9[%c3, %c0_51] : memref<8x128xf32, #tpu.memory_space<vmem>>, vector<1x128xf32>
    tpu.vector_store %arg9[%c3, %c0_51], %66 {strides = array<i32>} : memref<8x128xf32, #tpu.memory_space<vmem>>, vector<1x128xf32>,
    %68 = vector.extract_strided_slice %9 {offsets = [4, 0], sizes = [1, 128], strides = [1, 1]} : vector<8x128xf32> to vector<1x128xf32>
    %cst_52 = arith.constant dense<0.000000e+00> : vector<1x128xf32>
    %69 = tpu.matmul %57, %0, %cst_52 {dimension_numbers = #tpu.dot_dimension_numbers<[1], [0], [0], [1], [0, 0, 1, 1], [], []>} : vector<1x128xf32>, vector<128x128xf32>, vector<1x128xf32> -> vector<1x128xf32>
    %70 = arith.addf %68, %69 : vector<1x128xf32>
    %71 = math.tanh %70 : vector<1x128xf32>
    %c0_53 = arith.constant 0 : index
    %c0_54 = arith.constant 0 : index
    %72 = vector.load %arg4[%c0_53, %c0_54] : memref<128x128xf32, #tpu.memory_space<vmem>>, vector<128x128xf32>
    %cst_55 = arith.constant dense<0.000000e+00> : vector<1x128xf32>
    %73 = tpu.matmul %71, %72, %cst_55 {dimension_numbers = #tpu.dot_dimension_numbers<[1], [0], [0], [1], [0, 0, 1, 1], [], []>} : vector<1x128xf32>, vector<128x128xf32>, vector<1x128xf32> -> vector<1x128xf32>
    %cst_56 = arith.constant dense<0.000000e+00> : vector<1x128xf32>
    %74 = tpu.matmul %63, %1, %cst_56 {dimension_numbers = #tpu.dot_dimension_numbers<[1], [0], [0], [1], [0, 0, 1, 1], [], []>} : vector<1x128xf32>, vector<128x128xf32>, vector<1x128xf32> -> vector<1x128xf32>
    %75 = arith.addf %73, %74 : vector<1x128xf32>
    %76 = arith.addf %75, %2 : vector<1x128xf32>
    %77 = math.tanh %76 : vector<1x128xf32>
    %c0_57 = arith.constant 0 : index
    %c0_58 = arith.constant 0 : index
    %78 = vector.load %arg7[%c0_57, %c0_58] : memref<128x128xf32, #tpu.memory_space<vmem>>, vector<128x128xf32>
    %cst_59 = arith.constant dense<0.000000e+00> : vector<1x128xf32>
    %79 = tpu.matmul %77, %78, %cst_59 {dimension_numbers = #tpu.dot_dimension_numbers<[1], [0], [0], [1], [0, 0, 1, 1], [], []>} : vector<1x128xf32>, vector<128x128xf32>, vector<1x128xf32> -> vector<1x128xf32>
    %80 = arith.addf %79, %3 : vector<1x128xf32>
    %c4 = arith.constant 4 : index
    %c0_60 = arith.constant 0 : index
    %81 = vector.load %arg9[%c4, %c0_60] : memref<8x128xf32, #tpu.memory_space<vmem>>, vector<1x128xf32>
    tpu.vector_store %arg9[%c4, %c0_60], %80 {strides = array<i32>} : memref<8x128xf32, #tpu.memory_space<vmem>>, vector<1x128xf32>,
    %82 = vector.extract_strided_slice %9 {offsets = [5, 0], sizes = [1, 128], strides = [1, 1]} : vector<8x128xf32> to vector<1x128xf32>
    %cst_61 = arith.constant dense<0.000000e+00> : vector<1x128xf32>
    %83 = tpu.matmul %71, %0, %cst_61 {dimension_numbers = #tpu.dot_dimension_numbers<[1], [0], [0], [1], [0, 0, 1, 1], [], []>} : vector<1x128xf32>, vector<128x128xf32>, vector<1x128xf32> -> vector<1x128xf32>
    %84 = arith.addf %82, %83 : vector<1x128xf32>
    %85 = math.tanh %84 : vector<1x128xf32>
    %c0_62 = arith.constant 0 : index
    %c0_63 = arith.constant 0 : index
    %86 = vector.load %arg4[%c0_62, %c0_63] : memref<128x128xf32, #tpu.memory_space<vmem>>, vector<128x128xf32>
    %cst_64 = arith.constant dense<0.000000e+00> : vector<1x128xf32>
    %87 = tpu.matmul %85, %86, %cst_64 {dimension_numbers = #tpu.dot_dimension_numbers<[1], [0], [0], [1], [0, 0, 1, 1], [], []>} : vector<1x128xf32>, vector<128x128xf32>, vector<1x128xf32> -> vector<1x128xf32>
    %cst_65 = arith.constant dense<0.000000e+00> : vector<1x128xf32>
    %88 = tpu.matmul %77, %1, %cst_65 {dimension_numbers = #tpu.dot_dimension_numbers<[1], [0], [0], [1], [0, 0, 1, 1], [], []>} : vector<1x128xf32>, vector<128x128xf32>, vector<1x128xf32> -> vector<1x128xf32>
    %89 = arith.addf %87, %88 : vector<1x128xf32>
    %90 = arith.addf %89, %2 : vector<1x128xf32>
    %91 = math.tanh %90 : vector<1x128xf32>
    %c0_66 = arith.constant 0 : index
    %c0_67 = arith.constant 0 : index
    %92 = vector.load %arg7[%c0_66, %c0_67] : memref<128x128xf32, #tpu.memory_space<vmem>>, vector<128x128xf32>
    %cst_68 = arith.constant dense<0.000000e+00> : vector<1x128xf32>
    %93 = tpu.matmul %91, %92, %cst_68 {dimension_numbers = #tpu.dot_dimension_numbers<[1], [0], [0], [1], [0, 0, 1, 1], [], []>} : vector<1x128xf32>, vector<128x128xf32>, vector<1x128xf32> -> vector<1x128xf32>
    %94 = arith.addf %93, %3 : vector<1x128xf32>
    %c5 = arith.constant 5 : index
    %c0_69 = arith.constant 0 : index
    %95 = vector.load %arg9[%c5, %c0_69] : memref<8x128xf32, #tpu.memory_space<vmem>>, vector<1x128xf32>
    tpu.vector_store %arg9[%c5, %c0_69], %94 {strides = array<i32>} : memref<8x128xf32, #tpu.memory_space<vmem>>, vector<1x128xf32>,
    %96 = vector.extract_strided_slice %9 {offsets = [6, 0], sizes = [1, 128], strides = [1, 1]} : vector<8x128xf32> to vector<1x128xf32>
    %cst_70 = arith.constant dense<0.000000e+00> : vector<1x128xf32>
    %97 = tpu.matmul %85, %0, %cst_70 {dimension_numbers = #tpu.dot_dimension_numbers<[1], [0], [0], [1], [0, 0, 1, 1], [], []>} : vector<1x128xf32>, vector<128x128xf32>, vector<1x128xf32> -> vector<1x128xf32>
    %98 = arith.addf %96, %97 : vector<1x128xf32>
    %99 = math.tanh %98 : vector<1x128xf32>
    %c0_71 = arith.constant 0 : index
    %c0_72 = arith.constant 0 : index
    %100 = vector.load %arg4[%c0_71, %c0_72] : memref<128x128xf32, #tpu.memory_space<vmem>>, vector<128x128xf32>
    %cst_73 = arith.constant dense<0.000000e+00> : vector<1x128xf32>
    %101 = tpu.matmul %99, %100, %cst_73 {dimension_numbers = #tpu.dot_dimension_numbers<[1], [0], [0], [1], [0, 0, 1, 1], [], []>} : vector<1x128xf32>, vector<128x128xf32>, vector<1x128xf32> -> vector<1x128xf32>
    %cst_74 = arith.constant dense<0.000000e+00> : vector<1x128xf32>
    %102 = tpu.matmul %91, %1, %cst_74 {dimension_numbers = #tpu.dot_dimension_numbers<[1], [0], [0], [1], [0, 0, 1, 1], [], []>} : vector<1x128xf32>, vector<128x128xf32>, vector<1x128xf32> -> vector<1x128xf32>
    %103 = arith.addf %101, %102 : vector<1x128xf32>
    %104 = arith.addf %103, %2 : vector<1x128xf32>
    %105 = math.tanh %104 : vector<1x128xf32>
    %c0_75 = arith.constant 0 : index
    %c0_76 = arith.constant 0 : index
    %106 = vector.load %arg7[%c0_75, %c0_76] : memref<128x128xf32, #tpu.memory_space<vmem>>, vector<128x128xf32>
    %cst_77 = arith.constant dense<0.000000e+00> : vector<1x128xf32>
    %107 = tpu.matmul %105, %106, %cst_77 {dimension_numbers = #tpu.dot_dimension_numbers<[1], [0], [0], [1], [0, 0, 1, 1], [], []>} : vector<1x128xf32>, vector<128x128xf32>, vector<1x128xf32> -> vector<1x128xf32>
    %108 = arith.addf %107, %3 : vector<1x128xf32>
    %c6 = arith.constant 6 : index
    %c0_78 = arith.constant 0 : index
    %109 = vector.load %arg9[%c6, %c0_78] : memref<8x128xf32, #tpu.memory_space<vmem>>, vector<1x128xf32>
    tpu.vector_store %arg9[%c6, %c0_78], %108 {strides = array<i32>} : memref<8x128xf32, #tpu.memory_space<vmem>>, vector<1x128xf32>,
    %110 = vector.extract_strided_slice %9 {offsets = [7, 0], sizes = [1, 128], strides = [1, 1]} : vector<8x128xf32> to vector<1x128xf32>
    %cst_79 = arith.constant dense<0.000000e+00> : vector<1x128xf32>
    %111 = tpu.matmul %99, %0, %cst_79 {dimension_numbers = #tpu.dot_dimension_numbers<[1], [0], [0], [1], [0, 0, 1, 1], [], []>} : vector<1x128xf32>, vector<128x128xf32>, vector<1x128xf32> -> vector<1x128xf32>
    %112 = arith.addf %110, %111 : vector<1x128xf32>
    %113 = math.tanh %112 : vector<1x128xf32>
    %c0_80 = arith.constant 0 : index
    %c0_81 = arith.constant 0 : index
    %114 = vector.load %arg4[%c0_80, %c0_81] : memref<128x128xf32, #tpu.memory_space<vmem>>, vector<128x128xf32>
    %cst_82 = arith.constant dense<0.000000e+00> : vector<1x128xf32>
    %115 = tpu.matmul %113, %114, %cst_82 {dimension_numbers = #tpu.dot_dimension_numbers<[1], [0], [0], [1], [0, 0, 1, 1], [], []>} : vector<1x128xf32>, vector<128x128xf32>, vector<1x128xf32> -> vector<1x128xf32>
    %cst_83 = arith.constant dense<0.000000e+00> : vector<1x128xf32>
    %116 = tpu.matmul %105, %1, %cst_83 {dimension_numbers = #tpu.dot_dimension_numbers<[1], [0], [0], [1], [0, 0, 1, 1], [], []>} : vector<1x128xf32>, vector<128x128xf32>, vector<1x128xf32> -> vector<1x128xf32>
    %117 = arith.addf %115, %116 : vector<1x128xf32>
    %118 = arith.addf %117, %2 : vector<1x128xf32>
    %119 = math.tanh %118 : vector<1x128xf32>
    %c0_84 = arith.constant 0 : index
    %c0_85 = arith.constant 0 : index
    %120 = vector.load %arg7[%c0_84, %c0_85] : memref<128x128xf32, #tpu.memory_space<vmem>>, vector<128x128xf32>
    %cst_86 = arith.constant dense<0.000000e+00> : vector<1x128xf32>
    %121 = tpu.matmul %119, %120, %cst_86 {dimension_numbers = #tpu.dot_dimension_numbers<[1], [0], [0], [1], [0, 0, 1, 1], [], []>} : vector<1x128xf32>, vector<128x128xf32>, vector<1x128xf32> -> vector<1x128xf32>
    %122 = arith.addf %121, %3 : vector<1x128xf32>
    %c7 = arith.constant 7 : index
    %c0_87 = arith.constant 0 : index
    %123 = vector.load %arg9[%c7, %c0_87] : memref<8x128xf32, #tpu.memory_space<vmem>>, vector<1x128xf32>
    tpu.vector_store %arg9[%c7, %c0_87], %122 {strides = array<i32>} : memref<8x128xf32, #tpu.memory_space<vmem>>, vector<1x128xf32>,
    %c0_88 = arith.constant 0 : index
    %c0_89 = arith.constant 0 : index
    %124 = vector.load %arg10[%c0_88, %c0_89] : memref<2x128xf32, #tpu.memory_space<vmem>>, vector<1x128xf32>
    tpu.vector_store %arg10[%c0_88, %c0_89], %113 {strides = array<i32>} : memref<2x128xf32, #tpu.memory_space<vmem>>, vector<1x128xf32>,
    %c1_90 = arith.constant 1 : index
    %c0_91 = arith.constant 0 : index
    %125 = vector.load %arg10[%c1_90, %c0_91] : memref<2x128xf32, #tpu.memory_space<vmem>>, vector<1x128xf32>
    tpu.vector_store %arg10[%c1_90, %c0_91], %119 {strides = array<i32>} : memref<2x128xf32, #tpu.memory_space<vmem>>, vector<1x128xf32>,
    return
  }
}

</mosaic_0001>

<llo_original>
// kernel: rnn_model_forward.1
$region0: #{rnn_model_forward.1}
  #allocation0 [shape = 'u32[]', space=smem, size = 0x4, offset = 0x4, fixed_abs, tag = 'smem constant byte address 0x4 - core index']
  #allocation1 [shape = 'u32[144,128]{1,0:T(1,128)}', space=vmem, size = 0x12000, scoped, tag = 'internal scratch']
  %s0 = inlined_call_operand.vmem [shape: f32[8,128], index: 0, kind: input, shape index: {}]
  %s1 = inlined_call_operand.vmem [shape: f32[128,128], index: 1, kind: input, shape index: {}]
  %s2 = inlined_call_operand.vmem [shape: f32[128,128], index: 2, kind: input, shape index: {}]
  %s3 = inlined_call_operand.vmem [shape: f32[1,128], index: 3, kind: input, shape index: {}]
  %s4 = inlined_call_operand.vmem [shape: f32[128,128], index: 4, kind: input, shape index: {}]
  %s5 = inlined_call_operand.vmem [shape: f32[128,128], index: 5, kind: input, shape index: {}]
  %s6 = inlined_call_operand.vmem [shape: f32[1,128], index: 6, kind: input, shape index: {}]
  %s7 = inlined_call_operand.vmem [shape: f32[128,128], index: 7, kind: input, shape index: {}]
  %s8 = inlined_call_operand.vmem [shape: f32[1,128], index: 8, kind: input, shape index: {}]
  %s9 = inlined_call_operand.hbm [shape: f32[8,128], index: 9, kind: output, shape index: {0}]
  %s10 = inlined_call_operand.hbm [shape: f32[2,128], index: 10, kind: output, shape index: {1}]
  %11 = xla_tuple %s9, %s10
  %s12 = sld [smem:[#allocation0]]
  $region54: #{rnn_model_forward.1} parent=0
    _
  %s14 = ssub.s32 1, %s12
  %s15 = scalar_select 0, %s14, %s12
  $region1: #{rnn_model_forward.1} parent=0
    #allocation2 [shape = 'u8[4096]{0}', space=vmem, size = 0x1000, scoped, tag = 'output window, operand 0, single buffered']
    #allocation3 [shape = 's32[1]{0}', space=sflag, size = 0x4, scoped, tag = 'scoped memory for rnn_model_forward.1']
    #allocation4 [shape = 'u8[1024]{0}', space=vmem, size = 0x400, scoped, tag = 'output window, operand 1, single buffered']
    #allocation5 [shape = 's32[1]{0}', space=sflag, size = 0x4, scoped, tag = 'scoped memory for rnn_model_forward.1']
    %16 = vsyncpa [#allocation3], 0
    %17 = vsyncpa [#allocation5], 0
    // Predicated region
    $region2: #{rnn_model_forward.1} parent=1 // pred_check
      _
    $region3: #{rnn_model_forward.1} parent=1 // pred_check_branch
      %19 = sbr.rel (0) target = $region5
    $region4: #{rnn_model_forward.1} parent=1 // pred_region
      _
    $region5: #{rnn_model_forward.1} parent=1 // pred_fallthru
      _
    // Predicated region
    $region6: #{rnn_model_forward.1} parent=1 // pred_check
      _
    $region7: #{rnn_model_forward.1} parent=1 // pred_check_branch
      %21 = sbr.rel (0) target = $region9
    $region8: #{rnn_model_forward.1} parent=1 // pred_region
      _
    $region9: #{rnn_model_forward.1} parent=1 // pred_fallthru
      _
    // Predicated region
    $region10: #{rnn_model_forward.1} parent=1 // pred_check
      _
    $region11: #{rnn_model_forward.1} parent=1 // pred_check_branch
      %23 = sbr.rel (0) target = $region13
    $region12: #{rnn_model_forward.1} parent=1 // pred_region
      _
    $region13: #{rnn_model_forward.1} parent=1 // pred_fallthru
      _
    // Predicated region
    $region14: #{rnn_model_forward.1} parent=1 // pred_check
      _
    $region15: #{rnn_model_forward.1} parent=1 // pred_check_branch
      %25 = sbr.rel (0) target = $region17
    $region16: #{rnn_model_forward.1} parent=1 // pred_region
      _
    $region17: #{rnn_model_forward.1} parent=1 // pred_fallthru
      _
    // Predicated region
    $region18: #{rnn_model_forward.1} parent=1 // pred_check
      _
    $region19: #{rnn_model_forward.1} parent=1 // pred_check_branch
      %27 = sbr.rel (0) target = $region21
    $region20: #{rnn_model_forward.1} parent=1 // pred_region
      _
    $region21: #{rnn_model_forward.1} parent=1 // pred_fallthru
      _
    // Predicated region
    $region22: #{rnn_model_forward.1} parent=1 // pred_check
      _
    $region23: #{rnn_model_forward.1} parent=1 // pred_check_branch
      %29 = sbr.rel (0) target = $region25
    $region24: #{rnn_model_forward.1} parent=1 // pred_region
      _
    $region25: #{rnn_model_forward.1} parent=1 // pred_fallthru
      _
    // Predicated region
    $region26: #{rnn_model_forward.1} parent=1 // pred_check
      _
    $region27: #{rnn_model_forward.1} parent=1 // pred_check_branch
      %31 = sbr.rel (0) target = $region29
    $region28: #{rnn_model_forward.1} parent=1 // pred_region
      _
    $region29: #{rnn_model_forward.1} parent=1 // pred_fallthru
      _
    // Predicated region
    $region30: #{rnn_model_forward.1} parent=1 // pred_check
      _
    $region31: #{rnn_model_forward.1} parent=1 // pred_check_branch
      %33 = sbr.rel (0) target = $region33
    $region32: #{rnn_model_forward.1} parent=1 // pred_region
      _
    $region33: #{rnn_model_forward.1} parent=1 // pred_fallthru
      _
    // Predicated region
    $region34: #{rnn_model_forward.1} parent=1 // pred_check
      _
    $region35: #{rnn_model_forward.1} parent=1 // pred_check_branch
      %35 = sbr.rel (0) target = $region37
    $region36: #{rnn_model_forward.1} parent=1 // pred_region
      _
    $region37: #{rnn_model_forward.1} parent=1 // pred_fallthru
      _
    %v36 = vld [vmem:[%s2] sm:$0xff]
    %v37 = vld [vmem:[%s2 + $0x8] sm:$0xff]
    %v38 = vld [vmem:[%s2 + $0x10] sm:$0xff]
    %v39 = vld [vmem:[%s2 + $0x18] sm:$0xff]
    %v40 = vld [vmem:[%s2 + $0x20] sm:$0xff]
    %v41 = vld [vmem:[%s2 + $0x28] sm:$0xff]
    %v42 = vld [vmem:[%s2 + $0x30] sm:$0xff]
    %v43 = vld [vmem:[%s2 + $0x38] sm:$0xff]
    %v44 = vld [vmem:[%s2 + $0x40] sm:$0xff]
    %v45 = vld [vmem:[%s2 + $0x48] sm:$0xff]
    %v46 = vld [vmem:[%s2 + $0x50] sm:$0xff]
    %v47 = vld [vmem:[%s2 + $0x58] sm:$0xff]
    %v48 = vld [vmem:[%s2 + $0x60] sm:$0xff]
    %v49 = vld [vmem:[%s2 + $0x68] sm:$0xff]
    %v50 = vld [vmem:[%s2 + $0x70] sm:$0xff]
    %v51 = vld [vmem:[%s2 + $0x78] sm:$0xff]
    %v52 = vld [vmem:[%s5] sm:$0xff]
    %v53 = vld [vmem:[%s5 + $0x8] sm:$0xff]
    %v54 = vld [vmem:[%s5 + $0x10] sm:$0xff]
    %v55 = vld [vmem:[%s5 + $0x18] sm:$0xff]
    %v56 = vld [vmem:[%s5 + $0x20] sm:$0xff]
    %v57 = vld [vmem:[%s5 + $0x28] sm:$0xff]
    %v58 = vld [vmem:[%s5 + $0x30] sm:$0xff]
    %v59 = vld [vmem:[%s5 + $0x38] sm:$0xff]
    %v60 = vld [vmem:[%s5 + $0x40] sm:$0xff]
    %v61 = vld [vmem:[%s5 + $0x48] sm:$0xff]
    %v62 = vld [vmem:[%s5 + $0x50] sm:$0xff]
    %v63 = vld [vmem:[%s5 + $0x58] sm:$0xff]
    %v64 = vld [vmem:[%s5 + $0x60] sm:$0xff]
    %v65 = vld [vmem:[%s5 + $0x68] sm:$0xff]
    %v66 = vld [vmem:[%s5 + $0x70] sm:$0xff]
    %v67 = vld [vmem:[%s5 + $0x78] sm:$0xff]
    %v68 = vld [vmem:[%s6] sm:$0x1]
    %v69 = vld [vmem:[%s8] sm:$0x1]
    %v70 = vld [vmem:[%s0] sm:$0xff]
    %v71 = vld [vmem:[%s1] sm:$0xff]
    %v72 = vld [vmem:[%s1 + $0x8] sm:$0xff]
    %v73 = vld [vmem:[%s1 + $0x10] sm:$0xff]
    %v74 = vld [vmem:[%s1 + $0x18] sm:$0xff]
    %v75 = vld [vmem:[%s1 + $0x20] sm:$0xff]
    %v76 = vld [vmem:[%s1 + $0x28] sm:$0xff]
    %v77 = vld [vmem:[%s1 + $0x30] sm:$0xff]
    %v78 = vld [vmem:[%s1 + $0x38] sm:$0xff]
    %v79 = vld [vmem:[%s1 + $0x40] sm:$0xff]
    %v80 = vld [vmem:[%s1 + $0x48] sm:$0xff]
    %v81 = vld [vmem:[%s1 + $0x50] sm:$0xff]
    %v82 = vld [vmem:[%s1 + $0x58] sm:$0xff]
    %v83 = vld [vmem:[%s1 + $0x60] sm:$0xff]
    %v84 = vld [vmem:[%s1 + $0x68] sm:$0xff]
    %v85 = vld [vmem:[%s1 + $0x70] sm:$0xff]
    %v86 = vld [vmem:[%s1 + $0x78] sm:$0xff]
    %v87 = vld [vmem:[%s3] sm:$0x1]
    %v89 = vlaneseq
    %v90 = vshrl.u32 %v89, 7
    %v91 = vsub.s32 0, %v90
    %v92 = vrot.slane %v87, %v91
    %94 = vmatprep.subr.mxu0 0.0
    %95 = vmatpush1.msra.mxu0 %v86
    %96 = vmatprep.subr.mxu0 0.0
    %97 = vmatpush1.msra.mxu0 %v85
    %98 = vmatprep.subr.mxu0 0.0
    %99 = vmatpush1.msra.mxu0 %v84
    %100 = vmatprep.subr.mxu0 0.0
    %101 = vmatpush1.msra.mxu0 %v83
    %102 = vmatprep.subr.mxu0 0.0
    %103 = vmatpush1.msra.mxu0 %v82
    %104 = vmatprep.subr.mxu0 0.0
    %105 = vmatpush1.msra.mxu0 %v81
    %106 = vmatprep.subr.mxu0 0.0
    %107 = vmatpush1.msra.mxu0 %v80
    %108 = vmatprep.subr.mxu0 0.0
    %109 = vmatpush1.msra.mxu0 %v79
    %110 = vmatprep.subr.mxu0 0.0
    %111 = vmatpush1.msra.mxu0 %v78
    %112 = vmatprep.subr.mxu0 0.0
    %113 = vmatpush1.msra.mxu0 %v77
    %114 = vmatprep.subr.mxu0 0.0
    %115 = vmatpush1.msra.mxu0 %v76
    %116 = vmatprep.subr.mxu0 0.0
    %117 = vmatpush1.msra.mxu0 %v75
    %118 = vmatprep.subr.mxu0 0.0
    %119 = vmatpush1.msra.mxu0 %v74
    %120 = vmatprep.subr.mxu0 0.0
    %121 = vmatpush1.msra.mxu0 %v73
    %122 = vmatprep.subr.mxu0 0.0
    %123 = vmatpush1.msra.mxu0 %v72
    %124 = vmatprep.subr.mxu0 0.0
    %125 = vmatpush1.msra.mxu0 %v71
    %126 = vmatprep.subr.mxu0 0.0
    %127 = vmatpush2.msra.mxu0 0.0
    %128 = vmatprep.subr.mxu0 0.0
    %129 = vmatpush2.msra.mxu0 0.0
    %130 = vmatprep.subr.mxu0 0.0
    %131 = vmatpush2.msra.mxu0 0.0
    %132 = vmatprep.subr.mxu0 0.0
    %133 = vmatpush2.msra.mxu0 0.0
    %134 = vmatprep.subr.mxu0 0.0
    %135 = vmatpush2.msra.mxu0 0.0
    %136 = vmatprep.subr.mxu0 0.0
    %137 = vmatpush2.msra.mxu0 0.0
    %138 = vmatprep.subr.mxu0 0.0
    %139 = vmatpush2.msra.mxu0 0.0
    %140 = vmatprep.subr.mxu0 0.0
    %141 = vmatpush2.msra.mxu0 0.0
    %142 = vmatprep.subr.mxu0 0.0
    %143 = vmatpush2.msra.mxu0 0.0
    %144 = vmatprep.subr.mxu0 0.0
    %145 = vmatpush2.msra.mxu0 0.0
    %146 = vmatprep.subr.mxu0 0.0
    %147 = vmatpush2.msra.mxu0 0.0
    %148 = vmatprep.subr.mxu0 0.0
    %149 = vmatpush2.msra.mxu0 0.0
    %150 = vmatprep.subr.mxu0 0.0
    %151 = vmatpush2.msra.mxu0 0.0
    %152 = vmatprep.subr.mxu0 0.0
    %153 = vmatpush2.msra.mxu0 0.0
    %154 = vmatprep.subr.mxu0 0.0
    %155 = vmatpush2.msra.mxu0 0.0
    %156 = vmatprep.subr.mxu0 0.0
    %157 = vmatpush2.msra.mxu0 0.0
    %158 = vmatprep.mubr.f32.mxu0 0.0
    %159 = vmatmul.mubr.f32.gmra.mxu0 %v70
    %v160 = vpop.f32.mrf.mxu0
    %v161 = vadd.f32 %v92, %v160
    %v162 = vpop.f32.mrf.mxu0
    %163 = vdwg.mxu0
    %164 = vmatprep.subr.mxu0 0.0
    %165 = vmatpush1.msra.mxu0 %v51
    %166 = vmatprep.subr.mxu0 0.0
    %167 = vmatpush1.msra.mxu0 %v50
    %168 = vmatprep.subr.mxu0 0.0
    %169 = vmatpush1.msra.mxu0 %v49
    %170 = vmatprep.subr.mxu0 0.0
    %171 = vmatpush1.msra.mxu0 %v48
    %172 = vmatprep.subr.mxu0 0.0
    %173 = vmatpush1.msra.mxu0 %v47
    %174 = vmatprep.subr.mxu0 0.0
    %175 = vmatpush1.msra.mxu0 %v46
    %176 = vmatprep.subr.mxu0 0.0
    %177 = vmatpush1.msra.mxu0 %v45
    %178 = vmatprep.subr.mxu0 0.0
    %179 = vmatpush1.msra.mxu0 %v44
    %180 = vmatprep.subr.mxu0 0.0
    %181 = vmatpush1.msra.mxu0 %v43
    %182 = vmatprep.subr.mxu0 0.0
    %183 = vmatpush1.msra.mxu0 %v42
    %184 = vmatprep.subr.mxu0 0.0
    %185 = vmatpush1.msra.mxu0 %v41
    %186 = vmatprep.subr.mxu0 0.0
    %187 = vmatpush1.msra.mxu0 %v40
    %188 = vmatprep.subr.mxu0 0.0
    %189 = vmatpush1.msra.mxu0 %v39
    %190 = vmatprep.subr.mxu0 0.0
    %191 = vmatpush1.msra.mxu0 %v38
    %192 = vmatprep.subr.mxu0 0.0
    %193 = vmatpush1.msra.mxu0 %v37
    %194 = vmatprep.subr.mxu0 0.0
    %195 = vmatpush1.msra.mxu0 %v36
    %196 = vmatprep.subr.mxu0 0.0
    %197 = vmatpush2.msra.mxu0 0.0
    %198 = vmatprep.subr.mxu0 0.0
    %199 = vmatpush2.msra.mxu0 0.0
    %200 = vmatprep.subr.mxu0 0.0
    %201 = vmatpush2.msra.mxu0 0.0
    %202 = vmatprep.subr.mxu0 0.0
    %203 = vmatpush2.msra.mxu0 0.0
    %204 = vmatprep.subr.mxu0 0.0
    %205 = vmatpush2.msra.mxu0 0.0
    %206 = vmatprep.subr.mxu0 0.0
    %207 = vmatpush2.msra.mxu0 0.0
    %208 = vmatprep.subr.mxu0 0.0
    %209 = vmatpush2.msra.mxu0 0.0
    %210 = vmatprep.subr.mxu0 0.0
    %211 = vmatpush2.msra.mxu0 0.0
    %212 = vmatprep.subr.mxu0 0.0
    %213 = vmatpush2.msra.mxu0 0.0
    %214 = vmatprep.subr.mxu0 0.0
    %215 = vmatpush2.msra.mxu0 0.0
    %216 = vmatprep.subr.mxu0 0.0
    %217 = vmatpush2.msra.mxu0 0.0
    %218 = vmatprep.subr.mxu0 0.0
    %219 = vmatpush2.msra.mxu0 0.0
    %220 = vmatprep.subr.mxu0 0.0
    %221 = vmatpush2.msra.mxu0 0.0
    %222 = vmatprep.subr.mxu0 0.0
    %223 = vmatpush2.msra.mxu0 0.0
    %224 = vmatprep.subr.mxu0 0.0
    %225 = vmatpush2.msra.mxu0 0.0
    %226 = vmatprep.subr.mxu0 0.0
    %227 = vmatpush2.msra.mxu0 0.0
    %228 = vmatprep.mubr.f32.mxu0 0.0
    %229 = vmatmul.mubr.f32.gmra.mxu0 0.0
    %v230 = vpop.f32.mrf.mxu0
    %v231 = vadd.f32 0.0, %v230
    %v232 = vpop.f32.mrf.mxu0
    %233 = vdwg.mxu0
    %v234 = vadd.f32 %v161, %v231
    %v235 = vtanh.pop %v234
    %v236 = vld [vmem:[%s4] sm:$0xff]
    %v237 = vld [vmem:[%s4 + $0x8] sm:$0xff]
    %v238 = vld [vmem:[%s4 + $0x10] sm:$0xff]
    %v239 = vld [vmem:[%s4 + $0x18] sm:$0xff]
    %v240 = vld [vmem:[%s4 + $0x20] sm:$0xff]
    %v241 = vld [vmem:[%s4 + $0x28] sm:$0xff]
    %v242 = vld [vmem:[%s4 + $0x30] sm:$0xff]
    %v243 = vld [vmem:[%s4 + $0x38] sm:$0xff]
    %v244 = vld [vmem:[%s4 + $0x40] sm:$0xff]
    %v245 = vld [vmem:[%s4 + $0x48] sm:$0xff]
    %v246 = vld [vmem:[%s4 + $0x50] sm:$0xff]
    %v247 = vld [vmem:[%s4 + $0x58] sm:$0xff]
    %v248 = vld [vmem:[%s4 + $0x60] sm:$0xff]
    %v249 = vld [vmem:[%s4 + $0x68] sm:$0xff]
    %v250 = vld [vmem:[%s4 + $0x70] sm:$0xff]
    %v251 = vld [vmem:[%s4 + $0x78] sm:$0xff]
    %252 = vmatprep.subr.mxu0 0.0
    %253 = vmatpush1.msra.mxu0 %v67
    %254 = vmatprep.subr.mxu0 0.0
    %255 = vmatpush1.msra.mxu0 %v66
    %256 = vmatprep.subr.mxu0 0.0
    %257 = vmatpush1.msra.mxu0 %v65
    %258 = vmatprep.subr.mxu0 0.0
    %259 = vmatpush1.msra.mxu0 %v64
    %260 = vmatprep.subr.mxu0 0.0
    %261 = vmatpush1.msra.mxu0 %v63
    %262 = vmatprep.subr.mxu0 0.0
    %263 = vmatpush1.msra.mxu0 %v62
    %264 = vmatprep.subr.mxu0 0.0
    %265 = vmatpush1.msra.mxu0 %v61
    %266 = vmatprep.subr.mxu0 0.0
    %267 = vmatpush1.msra.mxu0 %v60
    %268 = vmatprep.subr.mxu0 0.0
    %269 = vmatpush1.msra.mxu0 %v59
    %270 = vmatprep.subr.mxu0 0.0
    %271 = vmatpush1.msra.mxu0 %v58
    %272 = vmatprep.subr.mxu0 0.0
    %273 = vmatpush1.msra.mxu0 %v57
    %274 = vmatprep.subr.mxu0 0.0
    %275 = vmatpush1.msra.mxu0 %v56
    %276 = vmatprep.subr.mxu0 0.0
    %277 = vmatpush1.msra.mxu0 %v55
    %278 = vmatprep.subr.mxu0 0.0
    %279 = vmatpush1.msra.mxu0 %v54
    %280 = vmatprep.subr.mxu0 0.0
    %281 = vmatpush1.msra.mxu0 %v53
    %282 = vmatprep.subr.mxu0 0.0
    %283 = vmatpush1.msra.mxu0 %v52
    %284 = vmatprep.subr.mxu0 0.0
    %285 = vmatpush2.msra.mxu0 0.0
    %286 = vmatprep.subr.mxu0 0.0
    %287 = vmatpush2.msra.mxu0 0.0
    %288 = vmatprep.subr.mxu0 0.0
    %289 = vmatpush2.msra.mxu0 0.0
    %290 = vmatprep.subr.mxu0 0.0
    %291 = vmatpush2.msra.mxu0 0.0
    %292 = vmatprep.subr.mxu0 0.0
    %293 = vmatpush2.msra.mxu0 0.0
    %294 = vmatprep.subr.mxu0 0.0
    %295 = vmatpush2.msra.mxu0 0.0
    %296 = vmatprep.subr.mxu0 0.0
    %297 = vmatpush2.msra.mxu0 0.0
    %298 = vmatprep.subr.mxu0 0.0
    %299 = vmatpush2.msra.mxu0 0.0
    %300 = vmatprep.subr.mxu0 0.0
    %301 = vmatpush2.msra.mxu0 0.0
    %302 = vmatprep.subr.mxu0 0.0
    %303 = vmatpush2.msra.mxu0 0.0
    %304 = vmatprep.subr.mxu0 0.0
    %305 = vmatpush2.msra.mxu0 0.0
    %306 = vmatprep.subr.mxu0 0.0
    %307 = vmatpush2.msra.mxu0 0.0
    %308 = vmatprep.subr.mxu0 0.0
    %309 = vmatpush2.msra.mxu0 0.0
    %310 = vmatprep.subr.mxu0 0.0
    %311 = vmatpush2.msra.mxu0 0.0
    %312 = vmatprep.subr.mxu0 0.0
    %313 = vmatpush2.msra.mxu0 0.0
    %314 = vmatprep.subr.mxu0 0.0
    %315 = vmatpush2.msra.mxu0 0.0
    %316 = vmatprep.mubr.f32.mxu0 0.0
    %317 = vmatmul.mubr.f32.gmra.mxu0 0.0
    %v318 = vpop.f32.mrf.mxu0
    %v319 = vadd.f32 0.0, %v318
    %v320 = vpop.f32.mrf.mxu0
    %321 = vdwg.mxu0
    %322 = vmatprep.subr.mxu0 0.0
    %323 = vmatpush1.msra.mxu0 %v251
    %324 = vmatprep.subr.mxu0 0.0
    %325 = vmatpush1.msra.mxu0 %v250
    %326 = vmatprep.subr.mxu0 0.0
    %327 = vmatpush1.msra.mxu0 %v249
    %328 = vmatprep.subr.mxu0 0.0
    %329 = vmatpush1.msra.mxu0 %v248
    %330 = vmatprep.subr.mxu0 0.0
    %331 = vmatpush1.msra.mxu0 %v247
    %332 = vmatprep.subr.mxu0 0.0
    %333 = vmatpush1.msra.mxu0 %v246
    %334 = vmatprep.subr.mxu0 0.0
    %335 = vmatpush1.msra.mxu0 %v245
    %336 = vmatprep.subr.mxu0 0.0
    %337 = vmatpush1.msra.mxu0 %v244
    %338 = vmatprep.subr.mxu0 0.0
    %339 = vmatpush1.msra.mxu0 %v243
    %340 = vmatprep.subr.mxu0 0.0
    %341 = vmatpush1.msra.mxu0 %v242
    %342 = vmatprep.subr.mxu0 0.0
    %343 = vmatpush1.msra.mxu0 %v241
    %344 = vmatprep.subr.mxu0 0.0
    %345 = vmatpush1.msra.mxu0 %v240
    %346 = vmatprep.subr.mxu0 0.0
    %347 = vmatpush1.msra.mxu0 %v239
    %348 = vmatprep.subr.mxu0 0.0
    %349 = vmatpush1.msra.mxu0 %v238
    %350 = vmatprep.subr.mxu0 0.0
    %351 = vmatpush1.msra.mxu0 %v237
    %352 = vmatprep.subr.mxu0 0.0
    %353 = vmatpush1.msra.mxu0 %v236
    %354 = vmatprep.subr.mxu0 0.0
    %355 = vmatpush2.msra.mxu0 0.0
    %356 = vmatprep.subr.mxu0 0.0
    %357 = vmatpush2.msra.mxu0 0.0
    %358 = vmatprep.subr.mxu0 0.0
    %359 = vmatpush2.msra.mxu0 0.0
    %360 = vmatprep.subr.mxu0 0.0
    %361 = vmatpush2.msra.mxu0 0.0
    %362 = vmatprep.subr.mxu0 0.0
    %363 = vmatpush2.msra.mxu0 0.0
    %364 = vmatprep.subr.mxu0 0.0
    %365 = vmatpush2.msra.mxu0 0.0
    %366 = vmatprep.subr.mxu0 0.0
    %367 = vmatpush2.msra.mxu0 0.0
    %368 = vmatprep.subr.mxu0 0.0
    %369 = vmatpush2.msra.mxu0 0.0
    %370 = vmatprep.subr.mxu0 0.0
    %371 = vmatpush2.msra.mxu0 0.0
    %372 = vmatprep.subr.mxu0 0.0
    %373 = vmatpush2.msra.mxu0 0.0
    %374 = vmatprep.subr.mxu0 0.0
    %375 = vmatpush2.msra.mxu0 0.0
    %376 = vmatprep.subr.mxu0 0.0
    %377 = vmatpush2.msra.mxu0 0.0
    %378 = vmatprep.subr.mxu0 0.0
    %379 = vmatpush2.msra.mxu0 0.0
    %380 = vmatprep.subr.mxu0 0.0
    %381 = vmatpush2.msra.mxu0 0.0
    %382 = vmatprep.subr.mxu0 0.0
    %383 = vmatpush2.msra.mxu0 0.0
    %384 = vmatprep.subr.mxu0 0.0
    %385 = vmatpush2.msra.mxu0 0.0
    %386 = vmatprep.mubr.f32.mxu0 0.0
    %387 = vmatmul.mubr.f32.gmra.mxu0 %v235
    %v388 = vpop.f32.mrf.mxu0
    %v389 = vadd.f32 %v319, %v388
    %v390 = vpop.f32.mrf.mxu0
    %391 = vdwg.mxu0
    %v392 = vadd.f32 %v389, %v68
    %v393 = vtanh.pop %v392
    %v394 = vld [vmem:[%s7] sm:$0xff]
    %v395 = vld [vmem:[%s7 + $0x8] sm:$0xff]
    %v396 = vld [vmem:[%s7 + $0x10] sm:$0xff]
    %v397 = vld [vmem:[%s7 + $0x18] sm:$0xff]
    %v398 = vld [vmem:[%s7 + $0x20] sm:$0xff]
    %v399 = vld [vmem:[%s7 + $0x28] sm:$0xff]
    %v400 = vld [vmem:[%s7 + $0x30] sm:$0xff]
    %v401 = vld [vmem:[%s7 + $0x38] sm:$0xff]
    %v402 = vld [vmem:[%s7 + $0x40] sm:$0xff]
    %v403 = vld [vmem:[%s7 + $0x48] sm:$0xff]
    %v404 = vld [vmem:[%s7 + $0x50] sm:$0xff]
    %v405 = vld [vmem:[%s7 + $0x58] sm:$0xff]
    %v406 = vld [vmem:[%s7 + $0x60] sm:$0xff]
    %v407 = vld [vmem:[%s7 + $0x68] sm:$0xff]
    %v408 = vld [vmem:[%s7 + $0x70] sm:$0xff]
    %v409 = vld [vmem:[%s7 + $0x78] sm:$0xff]
    %410 = vmatprep.subr.mxu0 0.0
    %411 = vmatpush1.msra.mxu0 %v409
    %412 = vmatprep.subr.mxu0 0.0
    %413 = vmatpush1.msra.mxu0 %v408
    %414 = vmatprep.subr.mxu0 0.0
    %415 = vmatpush1.msra.mxu0 %v407
    %416 = vmatprep.subr.mxu0 0.0
    %417 = vmatpush1.msra.mxu0 %v406
    %418 = vmatprep.subr.mxu0 0.0
    %419 = vmatpush1.msra.mxu0 %v405
    %420 = vmatprep.subr.mxu0 0.0
    %421 = vmatpush1.msra.mxu0 %v404
    %422 = vmatprep.subr.mxu0 0.0
    %423 = vmatpush1.msra.mxu0 %v403
    %424 = vmatprep.subr.mxu0 0.0
    %425 = vmatpush1.msra.mxu0 %v402
    %426 = vmatprep.subr.mxu0 0.0
    %427 = vmatpush1.msra.mxu0 %v401
    %428 = vmatprep.subr.mxu0 0.0
    %429 = vmatpush1.msra.mxu0 %v400
    %430 = vmatprep.subr.mxu0 0.0
    %431 = vmatpush1.msra.mxu0 %v399
    %432 = vmatprep.subr.mxu0 0.0
    %433 = vmatpush1.msra.mxu0 %v398
    %434 = vmatprep.subr.mxu0 0.0
    %435 = vmatpush1.msra.mxu0 %v397
    %436 = vmatprep.subr.mxu0 0.0
    %437 = vmatpush1.msra.mxu0 %v396
    %438 = vmatprep.subr.mxu0 0.0
    %439 = vmatpush1.msra.mxu0 %v395
    %440 = vmatprep.subr.mxu0 0.0
    %441 = vmatpush1.msra.mxu0 %v394
    %442 = vmatprep.subr.mxu0 0.0
    %443 = vmatpush2.msra.mxu0 0.0
    %444 = vmatprep.subr.mxu0 0.0
    %445 = vmatpush2.msra.mxu0 0.0
    %446 = vmatprep.subr.mxu0 0.0
    %447 = vmatpush2.msra.mxu0 0.0
    %448 = vmatprep.subr.mxu0 0.0
    %449 = vmatpush2.msra.mxu0 0.0
    %450 = vmatprep.subr.mxu0 0.0
    %451 = vmatpush2.msra.mxu0 0.0
    %452 = vmatprep.subr.mxu0 0.0
    %453 = vmatpush2.msra.mxu0 0.0
    %454 = vmatprep.subr.mxu0 0.0
    %455 = vmatpush2.msra.mxu0 0.0
    %456 = vmatprep.subr.mxu0 0.0
    %457 = vmatpush2.msra.mxu0 0.0
    %458 = vmatprep.subr.mxu0 0.0
    %459 = vmatpush2.msra.mxu0 0.0
    %460 = vmatprep.subr.mxu0 0.0
    %461 = vmatpush2.msra.mxu0 0.0
    %462 = vmatprep.subr.mxu0 0.0
    %463 = vmatpush2.msra.mxu0 0.0
    %464 = vmatprep.subr.mxu0 0.0
    %465 = vmatpush2.msra.mxu0 0.0
    %466 = vmatprep.subr.mxu0 0.0
    %467 = vmatpush2.msra.mxu0 0.0
    %468 = vmatprep.subr.mxu0 0.0
    %469 = vmatpush2.msra.mxu0 0.0
    %470 = vmatprep.subr.mxu0 0.0
    %471 = vmatpush2.msra.mxu0 0.0
    %472 = vmatprep.subr.mxu0 0.0
    %473 = vmatpush2.msra.mxu0 0.0
    %474 = vmatprep.mubr.f32.mxu0 0.0
    %475 = vmatmul.mubr.f32.gmra.mxu0 %v393
    %v476 = vpop.f32.mrf.mxu0
    %v477 = vadd.f32 %v69, %v476
    %v478 = vpop.f32.mrf.mxu0
    %479 = vdwg.mxu0
    %480 = vst [vmem:[#allocation2] sm:$0x1] %v477
    %481 = vmatprep.subr.mxu0 0.0
    %482 = vmatpush1.msra.mxu0 %v51
    %483 = vmatprep.subr.mxu0 0.0
    %484 = vmatpush1.msra.mxu0 %v50
    %485 = vmatprep.subr.mxu0 0.0
    %486 = vmatpush1.msra.mxu0 %v49
    %487 = vmatprep.subr.mxu0 0.0
    %488 = vmatpush1.msra.mxu0 %v48
    %489 = vmatprep.subr.mxu0 0.0
    %490 = vmatpush1.msra.mxu0 %v47
    %491 = vmatprep.subr.mxu0 0.0
    %492 = vmatpush1.msra.mxu0 %v46
    %493 = vmatprep.subr.mxu0 0.0
    %494 = vmatpush1.msra.mxu0 %v45
    %495 = vmatprep.subr.mxu0 0.0
    %496 = vmatpush1.msra.mxu0 %v44
    %497 = vmatprep.subr.mxu0 0.0
    %498 = vmatpush1.msra.mxu0 %v43
    %499 = vmatprep.subr.mxu0 0.0
    %500 = vmatpush1.msra.mxu0 %v42
    %501 = vmatprep.subr.mxu0 0.0
    %502 = vmatpush1.msra.mxu0 %v41
    %503 = vmatprep.subr.mxu0 0.0
    %504 = vmatpush1.msra.mxu0 %v40
    %505 = vmatprep.subr.mxu0 0.0
    %506 = vmatpush1.msra.mxu0 %v39
    %507 = vmatprep.subr.mxu0 0.0
    %508 = vmatpush1.msra.mxu0 %v38
    %509 = vmatprep.subr.mxu0 0.0
    %510 = vmatpush1.msra.mxu0 %v37
    %511 = vmatprep.subr.mxu0 0.0
    %512 = vmatpush1.msra.mxu0 %v36
    %513 = vmatprep.subr.mxu0 0.0
    %514 = vmatpush2.msra.mxu0 0.0
    %515 = vmatprep.subr.mxu0 0.0
    %516 = vmatpush2.msra.mxu0 0.0
    %517 = vmatprep.subr.mxu0 0.0
    %518 = vmatpush2.msra.mxu0 0.0
    %519 = vmatprep.subr.mxu0 0.0
    %520 = vmatpush2.msra.mxu0 0.0
    %521 = vmatprep.subr.mxu0 0.0
    %522 = vmatpush2.msra.mxu0 0.0
    %523 = vmatprep.subr.mxu0 0.0
    %524 = vmatpush2.msra.mxu0 0.0
    %525 = vmatprep.subr.mxu0 0.0
    %526 = vmatpush2.msra.mxu0 0.0
    %527 = vmatprep.subr.mxu0 0.0
    %528 = vmatpush2.msra.mxu0 0.0
    %529 = vmatprep.subr.mxu0 0.0
    %530 = vmatpush2.msra.mxu0 0.0
    %531 = vmatprep.subr.mxu0 0.0
    %532 = vmatpush2.msra.mxu0 0.0
    %533 = vmatprep.subr.mxu0 0.0
    %534 = vmatpush2.msra.mxu0 0.0
    %535 = vmatprep.subr.mxu0 0.0
    %536 = vmatpush2.msra.mxu0 0.0
    %537 = vmatprep.subr.mxu0 0.0
    %538 = vmatpush2.msra.mxu0 0.0
    %539 = vmatprep.subr.mxu0 0.0
    %540 = vmatpush2.msra.mxu0 0.0
    %541 = vmatprep.subr.mxu0 0.0
    %542 = vmatpush2.msra.mxu0 0.0
    %543 = vmatprep.subr.mxu0 0.0
    %544 = vmatpush2.msra.mxu0 0.0
    %545 = vmatprep.mubr.f32.mxu0 0.0
    %546 = vmatmul.mubr.f32.gmra.mxu0 %v235
    %v547 = vpop.f32.mrf.mxu0
    %v548 = vadd.f32 0.0, %v547
    %v549 = vpop.f32.mrf.mxu0
    %550 = vdwg.mxu0
    %v552 = vrot.slane %v548, 7
    %v554 = vadd.f32 %v161, %v552
    %v555 = vtanh.pop %v554
    %v556 = vld [vmem:[%s4] sm:$0xff]
    %v557 = vld [vmem:[%s4 + $0x8] sm:$0xff]
    %v558 = vld [vmem:[%s4 + $0x10] sm:$0xff]
    %v559 = vld [vmem:[%s4 + $0x18] sm:$0xff]
    %v560 = vld [vmem:[%s4 + $0x20] sm:$0xff]
    %v561 = vld [vmem:[%s4 + $0x28] sm:$0xff]
    %v562 = vld [vmem:[%s4 + $0x30] sm:$0xff]
    %v563 = vld [vmem:[%s4 + $0x38] sm:$0xff]
    %v564 = vld [vmem:[%s4 + $0x40] sm:$0xff]
    %v565 = vld [vmem:[%s4 + $0x48] sm:$0xff]
    %v566 = vld [vmem:[%s4 + $0x50] sm:$0xff]
    %v567 = vld [vmem:[%s4 + $0x58] sm:$0xff]
    %v568 = vld [vmem:[%s4 + $0x60] sm:$0xff]
    %v569 = vld [vmem:[%s4 + $0x68] sm:$0xff]
    %v570 = vld [vmem:[%s4 + $0x70] sm:$0xff]
    %v571 = vld [vmem:[%s4 + $0x78] sm:$0xff]
    %572 = vmatprep.subr.mxu0 0.0
    %573 = vmatpush1.msra.mxu0 %v67
    %574 = vmatprep.subr.mxu0 0.0
    %575 = vmatpush1.msra.mxu0 %v66
    %576 = vmatprep.subr.mxu0 0.0
    %577 = vmatpush1.msra.mxu0 %v65
    %578 = vmatprep.subr.mxu0 0.0
    %579 = vmatpush1.msra.mxu0 %v64
    %580 = vmatprep.subr.mxu0 0.0
    %581 = vmatpush1.msra.mxu0 %v63
    %582 = vmatprep.subr.mxu0 0.0
    %583 = vmatpush1.msra.mxu0 %v62
    %584 = vmatprep.subr.mxu0 0.0
    %585 = vmatpush1.msra.mxu0 %v61
    %586 = vmatprep.subr.mxu0 0.0
    %587 = vmatpush1.msra.mxu0 %v60
    %588 = vmatprep.subr.mxu0 0.0
    %589 = vmatpush1.msra.mxu0 %v59
    %590 = vmatprep.subr.mxu0 0.0
    %591 = vmatpush1.msra.mxu0 %v58
    %592 = vmatprep.subr.mxu0 0.0
    %593 = vmatpush1.msra.mxu0 %v57
    %594 = vmatprep.subr.mxu0 0.0
    %595 = vmatpush1.msra.mxu0 %v56
    %596 = vmatprep.subr.mxu0 0.0
    %597 = vmatpush1.msra.mxu0 %v55
    %598 = vmatprep.subr.mxu0 0.0
    %599 = vmatpush1.msra.mxu0 %v54
    %600 = vmatprep.subr.mxu0 0.0
    %601 = vmatpush1.msra.mxu0 %v53
    %602 = vmatprep.subr.mxu0 0.0
    %603 = vmatpush1.msra.mxu0 %v52
    %604 = vmatprep.subr.mxu0 0.0
    %605 = vmatpush2.msra.mxu0 0.0
    %606 = vmatprep.subr.mxu0 0.0
    %607 = vmatpush2.msra.mxu0 0.0
    %608 = vmatprep.subr.mxu0 0.0
    %609 = vmatpush2.msra.mxu0 0.0
    %610 = vmatprep.subr.mxu0 0.0
    %611 = vmatpush2.msra.mxu0 0.0
    %612 = vmatprep.subr.mxu0 0.0
    %613 = vmatpush2.msra.mxu0 0.0
    %614 = vmatprep.subr.mxu0 0.0
    %615 = vmatpush2.msra.mxu0 0.0
    %616 = vmatprep.subr.mxu0 0.0
    %617 = vmatpush2.msra.mxu0 0.0
    %618 = vmatprep.subr.mxu0 0.0
    %619 = vmatpush2.msra.mxu0 0.0
    %620 = vmatprep.subr.mxu0 0.0
    %621 = vmatpush2.msra.mxu0 0.0
    %622 = vmatprep.subr.mxu0 0.0
    %623 = vmatpush2.msra.mxu0 0.0
    %624 = vmatprep.subr.mxu0 0.0
    %625 = vmatpush2.msra.mxu0 0.0
    %626 = vmatprep.subr.mxu0 0.0
    %627 = vmatpush2.msra.mxu0 0.0
    %628 = vmatprep.subr.mxu0 0.0
    %629 = vmatpush2.msra.mxu0 0.0
    %630 = vmatprep.subr.mxu0 0.0
    %631 = vmatpush2.msra.mxu0 0.0
    %632 = vmatprep.subr.mxu0 0.0
    %633 = vmatpush2.msra.mxu0 0.0
    %634 = vmatprep.subr.mxu0 0.0
    %635 = vmatpush2.msra.mxu0 0.0
    %636 = vmatprep.mubr.f32.mxu0 0.0
    %637 = vmatmul.mubr.f32.gmra.mxu0 %v393
    %v638 = vpop.f32.mrf.mxu0
    %v639 = vadd.f32 0.0, %v638
    %v640 = vpop.f32.mrf.mxu0
    %641 = vdwg.mxu0
    %v643 = vrot.slane %v555, 1
    %645 = vmatprep.subr.mxu0 0.0
    %646 = vmatpush1.msra.mxu0 %v571
    %647 = vmatprep.subr.mxu0 0.0
    %648 = vmatpush1.msra.mxu0 %v570
    %649 = vmatprep.subr.mxu0 0.0
    %650 = vmatpush1.msra.mxu0 %v569
    %651 = vmatprep.subr.mxu0 0.0
    %652 = vmatpush1.msra.mxu0 %v568
    %653 = vmatprep.subr.mxu0 0.0
    %654 = vmatpush1.msra.mxu0 %v567
    %655 = vmatprep.subr.mxu0 0.0
    %656 = vmatpush1.msra.mxu0 %v566
    %657 = vmatprep.subr.mxu0 0.0
    %658 = vmatpush1.msra.mxu0 %v565
    %659 = vmatprep.subr.mxu0 0.0
    %660 = vmatpush1.msra.mxu0 %v564
    %661 = vmatprep.subr.mxu0 0.0
    %662 = vmatpush1.msra.mxu0 %v563
    %663 = vmatprep.subr.mxu0 0.0
    %664 = vmatpush1.msra.mxu0 %v562
    %665 = vmatprep.subr.mxu0 0.0
    %666 = vmatpush1.msra.mxu0 %v561
    %667 = vmatprep.subr.mxu0 0.0
    %668 = vmatpush1.msra.mxu0 %v560
    %669 = vmatprep.subr.mxu0 0.0
    %670 = vmatpush1.msra.mxu0 %v559
    %671 = vmatprep.subr.mxu0 0.0
    %672 = vmatpush1.msra.mxu0 %v558
    %673 = vmatprep.subr.mxu0 0.0
    %674 = vmatpush1.msra.mxu0 %v557
    %675 = vmatprep.subr.mxu0 0.0
    %676 = vmatpush1.msra.mxu0 %v556
    %677 = vmatprep.subr.mxu0 0.0
    %678 = vmatpush2.msra.mxu0 0.0
    %679 = vmatprep.subr.mxu0 0.0
    %680 = vmatpush2.msra.mxu0 0.0
    %681 = vmatprep.subr.mxu0 0.0
    %682 = vmatpush2.msra.mxu0 0.0
    %683 = vmatprep.subr.mxu0 0.0
    %684 = vmatpush2.msra.mxu0 0.0
    %685 = vmatprep.subr.mxu0 0.0
    %686 = vmatpush2.msra.mxu0 0.0
    %687 = vmatprep.subr.mxu0 0.0
    %688 = vmatpush2.msra.mxu0 0.0
    %689 = vmatprep.subr.mxu0 0.0
    %690 = vmatpush2.msra.mxu0 0.0
    %691 = vmatprep.subr.mxu0 0.0
    %692 = vmatpush2.msra.mxu0 0.0
    %693 = vmatprep.subr.mxu0 0.0
    %694 = vmatpush2.msra.mxu0 0.0
    %695 = vmatprep.subr.mxu0 0.0
    %696 = vmatpush2.msra.mxu0 0.0
    %697 = vmatprep.subr.mxu0 0.0
    %698 = vmatpush2.msra.mxu0 0.0
    %699 = vmatprep.subr.mxu0 0.0
    %700 = vmatpush2.msra.mxu0 0.0
    %701 = vmatprep.subr.mxu0 0.0
    %702 = vmatpush2.msra.mxu0 0.0
    %703 = vmatprep.subr.mxu0 0.0
    %704 = vmatpush2.msra.mxu0 0.0
    %705 = vmatprep.subr.mxu0 0.0
    %706 = vmatpush2.msra.mxu0 0.0
    %707 = vmatprep.subr.mxu0 0.0
    %708 = vmatpush2.msra.mxu0 0.0
    %709 = vmatprep.mubr.f32.mxu0 0.0
    %710 = vmatmul.mubr.f32.gmra.mxu0 %v643
    %v711 = vpop.f32.mrf.mxu0
    %v712 = vadd.f32 %v639, %v711
    %v713 = vpop.f32.mrf.mxu0
    %714 = vdwg.mxu0
    %v715 = vadd.f32 %v712, %v68
    %v716 = vtanh.pop %v715
    %v717 = vld [vmem:[%s7] sm:$0xff]
    %v718 = vld [vmem:[%s7 + $0x8] sm:$0xff]
    %v719 = vld [vmem:[%s7 + $0x10] sm:$0xff]
    %v720 = vld [vmem:[%s7 + $0x18] sm:$0xff]
    %v721 = vld [vmem:[%s7 + $0x20] sm:$0xff]
    %v722 = vld [vmem:[%s7 + $0x28] sm:$0xff]
    %v723 = vld [vmem:[%s7 + $0x30] sm:$0xff]
    %v724 = vld [vmem:[%s7 + $0x38] sm:$0xff]
    %v725 = vld [vmem:[%s7 + $0x40] sm:$0xff]
    %v726 = vld [vmem:[%s7 + $0x48] sm:$0xff]
    %v727 = vld [vmem:[%s7 + $0x50] sm:$0xff]
    %v728 = vld [vmem:[%s7 + $0x58] sm:$0xff]
    %v729 = vld [vmem:[%s7 + $0x60] sm:$0xff]
    %v730 = vld [vmem:[%s7 + $0x68] sm:$0xff]
    %v731 = vld [vmem:[%s7 + $0x70] sm:$0xff]
    %v732 = vld [vmem:[%s7 + $0x78] sm:$0xff]
    %733 = vmatprep.subr.mxu0 0.0
    %734 = vmatpush1.msra.mxu0 %v732
    %735 = vmatprep.subr.mxu0 0.0
    %736 = vmatpush1.msra.mxu0 %v731
    %737 = vmatprep.subr.mxu0 0.0
    %738 = vmatpush1.msra.mxu0 %v730
    %739 = vmatprep.subr.mxu0 0.0
    %740 = vmatpush1.msra.mxu0 %v729
    %741 = vmatprep.subr.mxu0 0.0
    %742 = vmatpush1.msra.mxu0 %v728
    %743 = vmatprep.subr.mxu0 0.0
    %744 = vmatpush1.msra.mxu0 %v727
    %745 = vmatprep.subr.mxu0 0.0
    %746 = vmatpush1.msra.mxu0 %v726
    %747 = vmatprep.subr.mxu0 0.0
    %748 = vmatpush1.msra.mxu0 %v725
    %749 = vmatprep.subr.mxu0 0.0
    %750 = vmatpush1.msra.mxu0 %v724
    %751 = vmatprep.subr.mxu0 0.0
    %752 = vmatpush1.msra.mxu0 %v723
    %753 = vmatprep.subr.mxu0 0.0
    %754 = vmatpush1.msra.mxu0 %v722
    %755 = vmatprep.subr.mxu0 0.0
    %756 = vmatpush1.msra.mxu0 %v721
    %757 = vmatprep.subr.mxu0 0.0
    %758 = vmatpush1.msra.mxu0 %v720
    %759 = vmatprep.subr.mxu0 0.0
    %760 = vmatpush1.msra.mxu0 %v719
    %761 = vmatprep.subr.mxu0 0.0
    %762 = vmatpush1.msra.mxu0 %v718
    %763 = vmatprep.subr.mxu0 0.0
    %764 = vmatpush1.msra.mxu0 %v717
    %765 = vmatprep.subr.mxu0 0.0
    %766 = vmatpush2.msra.mxu0 0.0
    %767 = vmatprep.subr.mxu0 0.0
    %768 = vmatpush2.msra.mxu0 0.0
    %769 = vmatprep.subr.mxu0 0.0
    %770 = vmatpush2.msra.mxu0 0.0
    %771 = vmatprep.subr.mxu0 0.0
    %772 = vmatpush2.msra.mxu0 0.0
    %773 = vmatprep.subr.mxu0 0.0
    %774 = vmatpush2.msra.mxu0 0.0
    %775 = vmatprep.subr.mxu0 0.0
    %776 = vmatpush2.msra.mxu0 0.0
    %777 = vmatprep.subr.mxu0 0.0
    %778 = vmatpush2.msra.mxu0 0.0
    %779 = vmatprep.subr.mxu0 0.0
    %780 = vmatpush2.msra.mxu0 0.0
    %781 = vmatprep.subr.mxu0 0.0
    %782 = vmatpush2.msra.mxu0 0.0
    %783 = vmatprep.subr.mxu0 0.0
    %784 = vmatpush2.msra.mxu0 0.0
    %785 = vmatprep.subr.mxu0 0.0
    %786 = vmatpush2.msra.mxu0 0.0
    %787 = vmatprep.subr.mxu0 0.0
    %788 = vmatpush2.msra.mxu0 0.0
    %789 = vmatprep.subr.mxu0 0.0
    %790 = vmatpush2.msra.mxu0 0.0
    %791 = vmatprep.subr.mxu0 0.0
    %792 = vmatpush2.msra.mxu0 0.0
    %793 = vmatprep.subr.mxu0 0.0
    %794 = vmatpush2.msra.mxu0 0.0
    %795 = vmatprep.subr.mxu0 0.0
    %796 = vmatpush2.msra.mxu0 0.0
    %797 = vmatprep.mubr.f32.mxu0 0.0
    %798 = vmatmul.mubr.f32.gmra.mxu0 %v716
    %v799 = vpop.f32.mrf.mxu0
    %v800 = vadd.f32 %v69, %v799
    %v801 = vpop.f32.mrf.mxu0
    %802 = vdwg.mxu0
    %803 = vst [vmem:[#allocation2 + $0x1] sm:$0x1] %v800
    %804 = vmatprep.subr.mxu0 0.0
    %805 = vmatpush1.msra.mxu0 %v51
    %806 = vmatprep.subr.mxu0 0.0
    %807 = vmatpush1.msra.mxu0 %v50
    %808 = vmatprep.subr.mxu0 0.0
    %809 = vmatpush1.msra.mxu0 %v49
    %810 = vmatprep.subr.mxu0 0.0
    %811 = vmatpush1.msra.mxu0 %v48
    %812 = vmatprep.subr.mxu0 0.0
    %813 = vmatpush1.msra.mxu0 %v47
    %814 = vmatprep.subr.mxu0 0.0
    %815 = vmatpush1.msra.mxu0 %v46
    %816 = vmatprep.subr.mxu0 0.0
    %817 = vmatpush1.msra.mxu0 %v45
    %818 = vmatprep.subr.mxu0 0.0
    %819 = vmatpush1.msra.mxu0 %v44
    %820 = vmatprep.subr.mxu0 0.0
    %821 = vmatpush1.msra.mxu0 %v43
    %822 = vmatprep.subr.mxu0 0.0
    %823 = vmatpush1.msra.mxu0 %v42
    %824 = vmatprep.subr.mxu0 0.0
    %825 = vmatpush1.msra.mxu0 %v41
    %826 = vmatprep.subr.mxu0 0.0
    %827 = vmatpush1.msra.mxu0 %v40
    %828 = vmatprep.subr.mxu0 0.0
    %829 = vmatpush1.msra.mxu0 %v39
    %830 = vmatprep.subr.mxu0 0.0
    %831 = vmatpush1.msra.mxu0 %v38
    %832 = vmatprep.subr.mxu0 0.0
    %833 = vmatpush1.msra.mxu0 %v37
    %834 = vmatprep.subr.mxu0 0.0
    %835 = vmatpush1.msra.mxu0 %v36
    %836 = vmatprep.subr.mxu0 0.0
    %837 = vmatpush2.msra.mxu0 0.0
    %838 = vmatprep.subr.mxu0 0.0
    %839 = vmatpush2.msra.mxu0 0.0
    %840 = vmatprep.subr.mxu0 0.0
    %841 = vmatpush2.msra.mxu0 0.0
    %842 = vmatprep.subr.mxu0 0.0
    %843 = vmatpush2.msra.mxu0 0.0
    %844 = vmatprep.subr.mxu0 0.0
    %845 = vmatpush2.msra.mxu0 0.0
    %846 = vmatprep.subr.mxu0 0.0
    %847 = vmatpush2.msra.mxu0 0.0
    %848 = vmatprep.subr.mxu0 0.0
    %849 = vmatpush2.msra.mxu0 0.0
    %850 = vmatprep.subr.mxu0 0.0
    %851 = vmatpush2.msra.mxu0 0.0
    %852 = vmatprep.subr.mxu0 0.0
    %853 = vmatpush2.msra.mxu0 0.0
    %854 = vmatprep.subr.mxu0 0.0
    %855 = vmatpush2.msra.mxu0 0.0
    %856 = vmatprep.subr.mxu0 0.0
    %857 = vmatpush2.msra.mxu0 0.0
    %858 = vmatprep.subr.mxu0 0.0
    %859 = vmatpush2.msra.mxu0 0.0
    %860 = vmatprep.subr.mxu0 0.0
    %861 = vmatpush2.msra.mxu0 0.0
    %862 = vmatprep.subr.mxu0 0.0
    %863 = vmatpush2.msra.mxu0 0.0
    %864 = vmatprep.subr.mxu0 0.0
    %865 = vmatpush2.msra.mxu0 0.0
    %866 = vmatprep.subr.mxu0 0.0
    %867 = vmatpush2.msra.mxu0 0.0
    %868 = vmatprep.mubr.f32.mxu0 0.0
    %869 = vmatmul.mubr.f32.gmra.mxu0 %v643
    %v870 = vpop.f32.mrf.mxu0
    %v871 = vadd.f32 0.0, %v870
    %v872 = vpop.f32.mrf.mxu0
    %873 = vdwg.mxu0
    %v875 = vrot.slane %v871, 6
    %v877 = vadd.f32 %v161, %v875
    %v878 = vtanh.pop %v877
    %v879 = vld [vmem:[%s4] sm:$0xff]
    %v880 = vld [vmem:[%s4 + $0x8] sm:$0xff]
    %v881 = vld [vmem:[%s4 + $0x10] sm:$0xff]
    %v882 = vld [vmem:[%s4 + $0x18] sm:$0xff]
    %v883 = vld [vmem:[%s4 + $0x20] sm:$0xff]
    %v884 = vld [vmem:[%s4 + $0x28] sm:$0xff]
    %v885 = vld [vmem:[%s4 + $0x30] sm:$0xff]
    %v886 = vld [vmem:[%s4 + $0x38] sm:$0xff]
    %v887 = vld [vmem:[%s4 + $0x40] sm:$0xff]
    %v888 = vld [vmem:[%s4 + $0x48] sm:$0xff]
    %v889 = vld [vmem:[%s4 + $0x50] sm:$0xff]
    %v890 = vld [vmem:[%s4 + $0x58] sm:$0xff]
    %v891 = vld [vmem:[%s4 + $0x60] sm:$0xff]
    %v892 = vld [vmem:[%s4 + $0x68] sm:$0xff]
    %v893 = vld [vmem:[%s4 + $0x70] sm:$0xff]
    %v894 = vld [vmem:[%s4 + $0x78] sm:$0xff]
    %895 = vmatprep.subr.mxu0 0.0
    %896 = vmatpush1.msra.mxu0 %v67
    %897 = vmatprep.subr.mxu0 0.0
    %898 = vmatpush1.msra.mxu0 %v66
    %899 = vmatprep.subr.mxu0 0.0
    %900 = vmatpush1.msra.mxu0 %v65
    %901 = vmatprep.subr.mxu0 0.0
    %902 = vmatpush1.msra.mxu0 %v64
    %903 = vmatprep.subr.mxu0 0.0
    %904 = vmatpush1.msra.mxu0 %v63
    %905 = vmatprep.subr.mxu0 0.0
    %906 = vmatpush1.msra.mxu0 %v62
    %907 = vmatprep.subr.mxu0 0.0
    %908 = vmatpush1.msra.mxu0 %v61
    %909 = vmatprep.subr.mxu0 0.0
    %910 = vmatpush1.msra.mxu0 %v60
    %911 = vmatprep.subr.mxu0 0.0
    %912 = vmatpush1.msra.mxu0 %v59
    %913 = vmatprep.subr.mxu0 0.0
    %914 = vmatpush1.msra.mxu0 %v58
    %915 = vmatprep.subr.mxu0 0.0
    %916 = vmatpush1.msra.mxu0 %v57
    %917 = vmatprep.subr.mxu0 0.0
    %918 = vmatpush1.msra.mxu0 %v56
    %919 = vmatprep.subr.mxu0 0.0
    %920 = vmatpush1.msra.mxu0 %v55
    %921 = vmatprep.subr.mxu0 0.0
    %922 = vmatpush1.msra.mxu0 %v54
    %923 = vmatprep.subr.mxu0 0.0
    %924 = vmatpush1.msra.mxu0 %v53
    %925 = vmatprep.subr.mxu0 0.0
    %926 = vmatpush1.msra.mxu0 %v52
    %927 = vmatprep.subr.mxu0 0.0
    %928 = vmatpush2.msra.mxu0 0.0
    %929 = vmatprep.subr.mxu0 0.0
    %930 = vmatpush2.msra.mxu0 0.0
    %931 = vmatprep.subr.mxu0 0.0
    %932 = vmatpush2.msra.mxu0 0.0
    %933 = vmatprep.subr.mxu0 0.0
    %934 = vmatpush2.msra.mxu0 0.0
    %935 = vmatprep.subr.mxu0 0.0
    %936 = vmatpush2.msra.mxu0 0.0
    %937 = vmatprep.subr.mxu0 0.0
    %938 = vmatpush2.msra.mxu0 0.0
    %939 = vmatprep.subr.mxu0 0.0
    %940 = vmatpush2.msra.mxu0 0.0
    %941 = vmatprep.subr.mxu0 0.0
    %942 = vmatpush2.msra.mxu0 0.0
    %943 = vmatprep.subr.mxu0 0.0
    %944 = vmatpush2.msra.mxu0 0.0
    %945 = vmatprep.subr.mxu0 0.0
    %946 = vmatpush2.msra.mxu0 0.0
    %947 = vmatprep.subr.mxu0 0.0
    %948 = vmatpush2.msra.mxu0 0.0
    %949 = vmatprep.subr.mxu0 0.0
    %950 = vmatpush2.msra.mxu0 0.0
    %951 = vmatprep.subr.mxu0 0.0
    %952 = vmatpush2.msra.mxu0 0.0
    %953 = vmatprep.subr.mxu0 0.0
    %954 = vmatpush2.msra.mxu0 0.0
    %955 = vmatprep.subr.mxu0 0.0
    %956 = vmatpush2.msra.mxu0 0.0
    %957 = vmatprep.subr.mxu0 0.0
    %958 = vmatpush2.msra.mxu0 0.0
    %959 = vmatprep.mubr.f32.mxu0 0.0
    %960 = vmatmul.mubr.f32.gmra.mxu0 %v716
    %v961 = vpop.f32.mrf.mxu0
    %v962 = vadd.f32 0.0, %v961
    %v963 = vpop.f32.mrf.mxu0
    %964 = vdwg.mxu0
    %v966 = vrot.slane %v878, 2
    %968 = vmatprep.subr.mxu0 0.0
    %969 = vmatpush1.msra.mxu0 %v894
    %970 = vmatprep.subr.mxu0 0.0
    %971 = vmatpush1.msra.mxu0 %v893
    %972 = vmatprep.subr.mxu0 0.0
    %973 = vmatpush1.msra.mxu0 %v892
    %974 = vmatprep.subr.mxu0 0.0
    %975 = vmatpush1.msra.mxu0 %v891
    %976 = vmatprep.subr.mxu0 0.0
    %977 = vmatpush1.msra.mxu0 %v890
    %978 = vmatprep.subr.mxu0 0.0
    %979 = vmatpush1.msra.mxu0 %v889
    %980 = vmatprep.subr.mxu0 0.0
    %981 = vmatpush1.msra.mxu0 %v888
    %982 = vmatprep.subr.mxu0 0.0
    %983 = vmatpush1.msra.mxu0 %v887
    %984 = vmatprep.subr.mxu0 0.0
    %985 = vmatpush1.msra.mxu0 %v886
    %986 = vmatprep.subr.mxu0 0.0
    %987 = vmatpush1.msra.mxu0 %v885
    %988 = vmatprep.subr.mxu0 0.0
    %989 = vmatpush1.msra.mxu0 %v884
    %990 = vmatprep.subr.mxu0 0.0
    %991 = vmatpush1.msra.mxu0 %v883
    %992 = vmatprep.subr.mxu0 0.0
    %993 = vmatpush1.msra.mxu0 %v882
    %994 = vmatprep.subr.mxu0 0.0
    %995 = vmatpush1.msra.mxu0 %v881
    %996 = vmatprep.subr.mxu0 0.0
    %997 = vmatpush1.msra.mxu0 %v880
    %998 = vmatprep.subr.mxu0 0.0
    %999 = vmatpush1.msra.mxu0 %v879
    %1000 = vmatprep.subr.mxu0 0.0
    %1001 = vmatpush2.msra.mxu0 0.0
    %1002 = vmatprep.subr.mxu0 0.0
    %1003 = vmatpush2.msra.mxu0 0.0
    %1004 = vmatprep.subr.mxu0 0.0
    %1005 = vmatpush2.msra.mxu0 0.0
    %1006 = vmatprep.subr.mxu0 0.0
    %1007 = vmatpush2.msra.mxu0 0.0
    %1008 = vmatprep.subr.mxu0 0.0
    %1009 = vmatpush2.msra.mxu0 0.0
    %1010 = vmatprep.subr.mxu0 0.0
    %1011 = vmatpush2.msra.mxu0 0.0
    %1012 = vmatprep.subr.mxu0 0.0
    %1013 = vmatpush2.msra.mxu0 0.0
    %1014 = vmatprep.subr.mxu0 0.0
    %1015 = vmatpush2.msra.mxu0 0.0
    %1016 = vmatprep.subr.mxu0 0.0
    %1017 = vmatpush2.msra.mxu0 0.0
    %1018 = vmatprep.subr.mxu0 0.0
    %1019 = vmatpush2.msra.mxu0 0.0
    %1020 = vmatprep.subr.mxu0 0.0
    %1021 = vmatpush2.msra.mxu0 0.0
    %1022 = vmatprep.subr.mxu0 0.0
    %1023 = vmatpush2.msra.mxu0 0.0
    %1024 = vmatprep.subr.mxu0 0.0
    %1025 = vmatpush2.msra.mxu0 0.0
    %1026 = vmatprep.subr.mxu0 0.0
    %1027 = vmatpush2.msra.mxu0 0.0
    %1028 = vmatprep.subr.mxu0 0.0
    %1029 = vmatpush2.msra.mxu0 0.0
    %1030 = vmatprep.subr.mxu0 0.0
    %1031 = vmatpush2.msra.mxu0 0.0
    %1032 = vmatprep.mubr.f32.mxu0 0.0
    %1033 = vmatmul.mubr.f32.gmra.mxu0 %v966
    %v1034 = vpop.f32.mrf.mxu0
    %v1035 = vadd.f32 %v962, %v1034
    %v1036 = vpop.f32.mrf.mxu0
    %1037 = vdwg.mxu0
    %v1038 = vadd.f32 %v1035, %v68
    %v1039 = vtanh.pop %v1038
    %v1040 = vld [vmem:[%s7] sm:$0xff]
    %v1041 = vld [vmem:[%s7 + $0x8] sm:$0xff]
    %v1042 = vld [vmem:[%s7 + $0x10] sm:$0xff]
    %v1043 = vld [vmem:[%s7 + $0x18] sm:$0xff]
    %v1044 = vld [vmem:[%s7 + $0x20] sm:$0xff]
    %v1045 = vld [vmem:[%s7 + $0x28] sm:$0xff]
    %v1046 = vld [vmem:[%s7 + $0x30] sm:$0xff]
    %v1047 = vld [vmem:[%s7 + $0x38] sm:$0xff]
    %v1048 = vld [vmem:[%s7 + $0x40] sm:$0xff]
    %v1049 = vld [vmem:[%s7 + $0x48] sm:$0xff]
    %v1050 = vld [vmem:[%s7 + $0x50] sm:$0xff]
    %v1051 = vld [vmem:[%s7 + $0x58] sm:$0xff]
    %v1052 = vld [vmem:[%s7 + $0x60] sm:$0xff]
    %v1053 = vld [vmem:[%s7 + $0x68] sm:$0xff]
    %v1054 = vld [vmem:[%s7 + $0x70] sm:$0xff]
    %v1055 = vld [vmem:[%s7 + $0x78] sm:$0xff]
    %1056 = vmatprep.subr.mxu0 0.0
    %1057 = vmatpush1.msra.mxu0 %v1055
    %1058 = vmatprep.subr.mxu0 0.0
    %1059 = vmatpush1.msra.mxu0 %v1054
    %1060 = vmatprep.subr.mxu0 0.0
    %1061 = vmatpush1.msra.mxu0 %v1053
    %1062 = vmatprep.subr.mxu0 0.0
    %1063 = vmatpush1.msra.mxu0 %v1052
    %1064 = vmatprep.subr.mxu0 0.0
    %1065 = vmatpush1.msra.mxu0 %v1051
    %1066 = vmatprep.subr.mxu0 0.0
    %1067 = vmatpush1.msra.mxu0 %v1050
    %1068 = vmatprep.subr.mxu0 0.0
    %1069 = vmatpush1.msra.mxu0 %v1049
    %1070 = vmatprep.subr.mxu0 0.0
    %1071 = vmatpush1.msra.mxu0 %v1048
    %1072 = vmatprep.subr.mxu0 0.0
    %1073 = vmatpush1.msra.mxu0 %v1047
    %1074 = vmatprep.subr.mxu0 0.0
    %1075 = vmatpush1.msra.mxu0 %v1046
    %1076 = vmatprep.subr.mxu0 0.0
    %1077 = vmatpush1.msra.mxu0 %v1045
    %1078 = vmatprep.subr.mxu0 0.0
    %1079 = vmatpush1.msra.mxu0 %v1044
    %1080 = vmatprep.subr.mxu0 0.0
    %1081 = vmatpush1.msra.mxu0 %v1043
    %1082 = vmatprep.subr.mxu0 0.0
    %1083 = vmatpush1.msra.mxu0 %v1042
    %1084 = vmatprep.subr.mxu0 0.0
    %1085 = vmatpush1.msra.mxu0 %v1041
    %1086 = vmatprep.subr.mxu0 0.0
    %1087 = vmatpush1.msra.mxu0 %v1040
    %1088 = vmatprep.subr.mxu0 0.0
    %1089 = vmatpush2.msra.mxu0 0.0
    %1090 = vmatprep.subr.mxu0 0.0
    %1091 = vmatpush2.msra.mxu0 0.0
    %1092 = vmatprep.subr.mxu0 0.0
    %1093 = vmatpush2.msra.mxu0 0.0
    %1094 = vmatprep.subr.mxu0 0.0
    %1095 = vmatpush2.msra.mxu0 0.0
    %1096 = vmatprep.subr.mxu0 0.0
    %1097 = vmatpush2.msra.mxu0 0.0
    %1098 = vmatprep.subr.mxu0 0.0
    %1099 = vmatpush2.msra.mxu0 0.0
    %1100 = vmatprep.subr.mxu0 0.0
    %1101 = vmatpush2.msra.mxu0 0.0
    %1102 = vmatprep.subr.mxu0 0.0
    %1103 = vmatpush2.msra.mxu0 0.0
    %1104 = vmatprep.subr.mxu0 0.0
    %1105 = vmatpush2.msra.mxu0 0.0
    %1106 = vmatprep.subr.mxu0 0.0
    %1107 = vmatpush2.msra.mxu0 0.0
    %1108 = vmatprep.subr.mxu0 0.0
    %1109 = vmatpush2.msra.mxu0 0.0
    %1110 = vmatprep.subr.mxu0 0.0
    %1111 = vmatpush2.msra.mxu0 0.0
    %1112 = vmatprep.subr.mxu0 0.0
    %1113 = vmatpush2.msra.mxu0 0.0
    %1114 = vmatprep.subr.mxu0 0.0
    %1115 = vmatpush2.msra.mxu0 0.0
    %1116 = vmatprep.subr.mxu0 0.0
    %1117 = vmatpush2.msra.mxu0 0.0
    %1118 = vmatprep.subr.mxu0 0.0
    %1119 = vmatpush2.msra.mxu0 0.0
    %1120 = vmatprep.mubr.f32.mxu0 0.0
    %1121 = vmatmul.mubr.f32.gmra.mxu0 %v1039
    %v1122 = vpop.f32.mrf.mxu0
    %v1123 = vadd.f32 %v69, %v1122
    %v1124 = vpop.f32.mrf.mxu0
    %1125 = vdwg.mxu0
    %1126 = vst [vmem:[#allocation2 + $0x2] sm:$0x1] %v1123
    %1127 = vmatprep.subr.mxu0 0.0
    %1128 = vmatpush1.msra.mxu0 %v51
    %1129 = vmatprep.subr.mxu0 0.0
    %1130 = vmatpush1.msra.mxu0 %v50
    %1131 = vmatprep.subr.mxu0 0.0
    %1132 = vmatpush1.msra.mxu0 %v49
    %1133 = vmatprep.subr.mxu0 0.0
    %1134 = vmatpush1.msra.mxu0 %v48
    %1135 = vmatprep.subr.mxu0 0.0
    %1136 = vmatpush1.msra.mxu0 %v47
    %1137 = vmatprep.subr.mxu0 0.0
    %1138 = vmatpush1.msra.mxu0 %v46
    %1139 = vmatprep.subr.mxu0 0.0
    %1140 = vmatpush1.msra.mxu0 %v45
    %1141 = vmatprep.subr.mxu0 0.0
    %1142 = vmatpush1.msra.mxu0 %v44
    %1143 = vmatprep.subr.mxu0 0.0
    %1144 = vmatpush1.msra.mxu0 %v43
    %1145 = vmatprep.subr.mxu0 0.0
    %1146 = vmatpush1.msra.mxu0 %v42
    %1147 = vmatprep.subr.mxu0 0.0
    %1148 = vmatpush1.msra.mxu0 %v41
    %1149 = vmatprep.subr.mxu0 0.0
    %1150 = vmatpush1.msra.mxu0 %v40
    %1151 = vmatprep.subr.mxu0 0.0
    %1152 = vmatpush1.msra.mxu0 %v39
    %1153 = vmatprep.subr.mxu0 0.0
    %1154 = vmatpush1.msra.mxu0 %v38
    %1155 = vmatprep.subr.mxu0 0.0
    %1156 = vmatpush1.msra.mxu0 %v37
    %1157 = vmatprep.subr.mxu0 0.0
    %1158 = vmatpush1.msra.mxu0 %v36
    %1159 = vmatprep.subr.mxu0 0.0
    %1160 = vmatpush2.msra.mxu0 0.0
    %1161 = vmatprep.subr.mxu0 0.0
    %1162 = vmatpush2.msra.mxu0 0.0
    %1163 = vmatprep.subr.mxu0 0.0
    %1164 = vmatpush2.msra.mxu0 0.0
    %1165 = vmatprep.subr.mxu0 0.0
    %1166 = vmatpush2.msra.mxu0 0.0
    %1167 = vmatprep.subr.mxu0 0.0
    %1168 = vmatpush2.msra.mxu0 0.0
    %1169 = vmatprep.subr.mxu0 0.0
    %1170 = vmatpush2.msra.mxu0 0.0
    %1171 = vmatprep.subr.mxu0 0.0
    %1172 = vmatpush2.msra.mxu0 0.0
    %1173 = vmatprep.subr.mxu0 0.0
    %1174 = vmatpush2.msra.mxu0 0.0
    %1175 = vmatprep.subr.mxu0 0.0
    %1176 = vmatpush2.msra.mxu0 0.0
    %1177 = vmatprep.subr.mxu0 0.0
    %1178 = vmatpush2.msra.mxu0 0.0
    %1179 = vmatprep.subr.mxu0 0.0
    %1180 = vmatpush2.msra.mxu0 0.0
    %1181 = vmatprep.subr.mxu0 0.0
    %1182 = vmatpush2.msra.mxu0 0.0
    %1183 = vmatprep.subr.mxu0 0.0
    %1184 = vmatpush2.msra.mxu0 0.0
    %1185 = vmatprep.subr.mxu0 0.0
    %1186 = vmatpush2.msra.mxu0 0.0
    %1187 = vmatprep.subr.mxu0 0.0
    %1188 = vmatpush2.msra.mxu0 0.0
    %1189 = vmatprep.subr.mxu0 0.0
    %1190 = vmatpush2.msra.mxu0 0.0
    %1191 = vmatprep.mubr.f32.mxu0 0.0
    %1192 = vmatmul.mubr.f32.gmra.mxu0 %v966
    %v1193 = vpop.f32.mrf.mxu0
    %v1194 = vadd.f32 0.0, %v1193
    %v1195 = vpop.f32.mrf.mxu0
    %1196 = vdwg.mxu0
    %v1198 = vrot.slane %v1194, 5
    %v1200 = vadd.f32 %v161, %v1198
    %v1201 = vtanh.pop %v1200
    %v1202 = vld [vmem:[%s4] sm:$0xff]
    %v1203 = vld [vmem:[%s4 + $0x8] sm:$0xff]
    %v1204 = vld [vmem:[%s4 + $0x10] sm:$0xff]
    %v1205 = vld [vmem:[%s4 + $0x18] sm:$0xff]
    %v1206 = vld [vmem:[%s4 + $0x20] sm:$0xff]
    %v1207 = vld [vmem:[%s4 + $0x28] sm:$0xff]
    %v1208 = vld [vmem:[%s4 + $0x30] sm:$0xff]
    %v1209 = vld [vmem:[%s4 + $0x38] sm:$0xff]
    %v1210 = vld [vmem:[%s4 + $0x40] sm:$0xff]
    %v1211 = vld [vmem:[%s4 + $0x48] sm:$0xff]
    %v1212 = vld [vmem:[%s4 + $0x50] sm:$0xff]
    %v1213 = vld [vmem:[%s4 + $0x58] sm:$0xff]
    %v1214 = vld [vmem:[%s4 + $0x60] sm:$0xff]
    %v1215 = vld [vmem:[%s4 + $0x68] sm:$0xff]
    %v1216 = vld [vmem:[%s4 + $0x70] sm:$0xff]
    %v1217 = vld [vmem:[%s4 + $0x78] sm:$0xff]
    %1218 = vmatprep.subr.mxu0 0.0
    %1219 = vmatpush1.msra.mxu0 %v67
    %1220 = vmatprep.subr.mxu0 0.0
    %1221 = vmatpush1.msra.mxu0 %v66
    %1222 = vmatprep.subr.mxu0 0.0
    %1223 = vmatpush1.msra.mxu0 %v65
    %1224 = vmatprep.subr.mxu0 0.0
    %1225 = vmatpush1.msra.mxu0 %v64
    %1226 = vmatprep.subr.mxu0 0.0
    %1227 = vmatpush1.msra.mxu0 %v63
    %1228 = vmatprep.subr.mxu0 0.0
    %1229 = vmatpush1.msra.mxu0 %v62
    %1230 = vmatprep.subr.mxu0 0.0
    %1231 = vmatpush1.msra.mxu0 %v61
    %1232 = vmatprep.subr.mxu0 0.0
    %1233 = vmatpush1.msra.mxu0 %v60
    %1234 = vmatprep.subr.mxu0 0.0
    %1235 = vmatpush1.msra.mxu0 %v59
    %1236 = vmatprep.subr.mxu0 0.0
    %1237 = vmatpush1.msra.mxu0 %v58
    %1238 = vmatprep.subr.mxu0 0.0
    %1239 = vmatpush1.msra.mxu0 %v57
    %1240 = vmatprep.subr.mxu0 0.0
    %1241 = vmatpush1.msra.mxu0 %v56
    %1242 = vmatprep.subr.mxu0 0.0
    %1243 = vmatpush1.msra.mxu0 %v55
    %1244 = vmatprep.subr.mxu0 0.0
    %1245 = vmatpush1.msra.mxu0 %v54
    %1246 = vmatprep.subr.mxu0 0.0
    %1247 = vmatpush1.msra.mxu0 %v53
    %1248 = vmatprep.subr.mxu0 0.0
    %1249 = vmatpush1.msra.mxu0 %v52
    %1250 = vmatprep.subr.mxu0 0.0
    %1251 = vmatpush2.msra.mxu0 0.0
    %1252 = vmatprep.subr.mxu0 0.0
    %1253 = vmatpush2.msra.mxu0 0.0
    %1254 = vmatprep.subr.mxu0 0.0
    %1255 = vmatpush2.msra.mxu0 0.0
    %1256 = vmatprep.subr.mxu0 0.0
    %1257 = vmatpush2.msra.mxu0 0.0
    %1258 = vmatprep.subr.mxu0 0.0
    %1259 = vmatpush2.msra.mxu0 0.0
    %1260 = vmatprep.subr.mxu0 0.0
    %1261 = vmatpush2.msra.mxu0 0.0
    %1262 = vmatprep.subr.mxu0 0.0
    %1263 = vmatpush2.msra.mxu0 0.0
    %1264 = vmatprep.subr.mxu0 0.0
    %1265 = vmatpush2.msra.mxu0 0.0
    %1266 = vmatprep.subr.mxu0 0.0
    %1267 = vmatpush2.msra.mxu0 0.0
    %1268 = vmatprep.subr.mxu0 0.0
    %1269 = vmatpush2.msra.mxu0 0.0
    %1270 = vmatprep.subr.mxu0 0.0
    %1271 = vmatpush2.msra.mxu0 0.0
    %1272 = vmatprep.subr.mxu0 0.0
    %1273 = vmatpush2.msra.mxu0 0.0
    %1274 = vmatprep.subr.mxu0 0.0
    %1275 = vmatpush2.msra.mxu0 0.0
    %1276 = vmatprep.subr.mxu0 0.0
    %1277 = vmatpush2.msra.mxu0 0.0
    %1278 = vmatprep.subr.mxu0 0.0
    %1279 = vmatpush2.msra.mxu0 0.0
    %1280 = vmatprep.subr.mxu0 0.0
    %1281 = vmatpush2.msra.mxu0 0.0
    %1282 = vmatprep.mubr.f32.mxu0 0.0
    %1283 = vmatmul.mubr.f32.gmra.mxu0 %v1039
    %v1284 = vpop.f32.mrf.mxu0
    %v1285 = vadd.f32 0.0, %v1284
    %v1286 = vpop.f32.mrf.mxu0
    %1287 = vdwg.mxu0
    %v1289 = vrot.slane %v1201, 3
    %1291 = vmatprep.subr.mxu0 0.0
    %1292 = vmatpush1.msra.mxu0 %v1217
    %1293 = vmatprep.subr.mxu0 0.0
    %1294 = vmatpush1.msra.mxu0 %v1216
    %1295 = vmatprep.subr.mxu0 0.0
    %1296 = vmatpush1.msra.mxu0 %v1215
    %1297 = vmatprep.subr.mxu0 0.0
    %1298 = vmatpush1.msra.mxu0 %v1214
    %1299 = vmatprep.subr.mxu0 0.0
    %1300 = vmatpush1.msra.mxu0 %v1213
    %1301 = vmatprep.subr.mxu0 0.0
    %1302 = vmatpush1.msra.mxu0 %v1212
    %1303 = vmatprep.subr.mxu0 0.0
    %1304 = vmatpush1.msra.mxu0 %v1211
    %1305 = vmatprep.subr.mxu0 0.0
    %1306 = vmatpush1.msra.mxu0 %v1210
    %1307 = vmatprep.subr.mxu0 0.0
    %1308 = vmatpush1.msra.mxu0 %v1209
    %1309 = vmatprep.subr.mxu0 0.0
    %1310 = vmatpush1.msra.mxu0 %v1208
    %1311 = vmatprep.subr.mxu0 0.0
    %1312 = vmatpush1.msra.mxu0 %v1207
    %1313 = vmatprep.subr.mxu0 0.0
    %1314 = vmatpush1.msra.mxu0 %v1206
    %1315 = vmatprep.subr.mxu0 0.0
    %1316 = vmatpush1.msra.mxu0 %v1205
    %1317 = vmatprep.subr.mxu0 0.0
    %1318 = vmatpush1.msra.mxu0 %v1204
    %1319 = vmatprep.subr.mxu0 0.0
    %1320 = vmatpush1.msra.mxu0 %v1203
    %1321 = vmatprep.subr.mxu0 0.0
    %1322 = vmatpush1.msra.mxu0 %v1202
    %1323 = vmatprep.subr.mxu0 0.0
    %1324 = vmatpush2.msra.mxu0 0.0
    %1325 = vmatprep.subr.mxu0 0.0
    %1326 = vmatpush2.msra.mxu0 0.0
    %1327 = vmatprep.subr.mxu0 0.0
    %1328 = vmatpush2.msra.mxu0 0.0
    %1329 = vmatprep.subr.mxu0 0.0
    %1330 = vmatpush2.msra.mxu0 0.0
    %1331 = vmatprep.subr.mxu0 0.0
    %1332 = vmatpush2.msra.mxu0 0.0
    %1333 = vmatprep.subr.mxu0 0.0
    %1334 = vmatpush2.msra.mxu0 0.0
    %1335 = vmatprep.subr.mxu0 0.0
    %1336 = vmatpush2.msra.mxu0 0.0
    %1337 = vmatprep.subr.mxu0 0.0
    %1338 = vmatpush2.msra.mxu0 0.0
    %1339 = vmatprep.subr.mxu0 0.0
    %1340 = vmatpush2.msra.mxu0 0.0
    %1341 = vmatprep.subr.mxu0 0.0
    %1342 = vmatpush2.msra.mxu0 0.0
    %1343 = vmatprep.subr.mxu0 0.0
    %1344 = vmatpush2.msra.mxu0 0.0
    %1345 = vmatprep.subr.mxu0 0.0
    %1346 = vmatpush2.msra.mxu0 0.0
    %1347 = vmatprep.subr.mxu0 0.0
    %1348 = vmatpush2.msra.mxu0 0.0
    %1349 = vmatprep.subr.mxu0 0.0
    %1350 = vmatpush2.msra.mxu0 0.0
    %1351 = vmatprep.subr.mxu0 0.0
    %1352 = vmatpush2.msra.mxu0 0.0
    %1353 = vmatprep.subr.mxu0 0.0
    %1354 = vmatpush2.msra.mxu0 0.0
    %1355 = vmatprep.mubr.f32.mxu0 0.0
    %1356 = vmatmul.mubr.f32.gmra.mxu0 %v1289
    %v1357 = vpop.f32.mrf.mxu0
    %v1358 = vadd.f32 %v1285, %v1357
    %v1359 = vpop.f32.mrf.mxu0
    %1360 = vdwg.mxu0
    %v1361 = vadd.f32 %v1358, %v68
    %v1362 = vtanh.pop %v1361
    %v1363 = vld [vmem:[%s7] sm:$0xff]
    %v1364 = vld [vmem:[%s7 + $0x8] sm:$0xff]
    %v1365 = vld [vmem:[%s7 + $0x10] sm:$0xff]
    %v1366 = vld [vmem:[%s7 + $0x18] sm:$0xff]
    %v1367 = vld [vmem:[%s7 + $0x20] sm:$0xff]
    %v1368 = vld [vmem:[%s7 + $0x28] sm:$0xff]
    %v1369 = vld [vmem:[%s7 + $0x30] sm:$0xff]
    %v1370 = vld [vmem:[%s7 + $0x38] sm:$0xff]
    %v1371 = vld [vmem:[%s7 + $0x40] sm:$0xff]
    %v1372 = vld [vmem:[%s7 + $0x48] sm:$0xff]
    %v1373 = vld [vmem:[%s7 + $0x50] sm:$0xff]
    %v1374 = vld [vmem:[%s7 + $0x58] sm:$0xff]
    %v1375 = vld [vmem:[%s7 + $0x60] sm:$0xff]
    %v1376 = vld [vmem:[%s7 + $0x68] sm:$0xff]
    %v1377 = vld [vmem:[%s7 + $0x70] sm:$0xff]
    %v1378 = vld [vmem:[%s7 + $0x78] sm:$0xff]
    %1379 = vmatprep.subr.mxu0 0.0
    %1380 = vmatpush1.msra.mxu0 %v1378
    %1381 = vmatprep.subr.mxu0 0.0
    %1382 = vmatpush1.msra.mxu0 %v1377
    %1383 = vmatprep.subr.mxu0 0.0
    %1384 = vmatpush1.msra.mxu0 %v1376
    %1385 = vmatprep.subr.mxu0 0.0
    %1386 = vmatpush1.msra.mxu0 %v1375
    %1387 = vmatprep.subr.mxu0 0.0
    %1388 = vmatpush1.msra.mxu0 %v1374
    %1389 = vmatprep.subr.mxu0 0.0
    %1390 = vmatpush1.msra.mxu0 %v1373
    %1391 = vmatprep.subr.mxu0 0.0
    %1392 = vmatpush1.msra.mxu0 %v1372
    %1393 = vmatprep.subr.mxu0 0.0
    %1394 = vmatpush1.msra.mxu0 %v1371
    %1395 = vmatprep.subr.mxu0 0.0
    %1396 = vmatpush1.msra.mxu0 %v1370
    %1397 = vmatprep.subr.mxu0 0.0
    %1398 = vmatpush1.msra.mxu0 %v1369
    %1399 = vmatprep.subr.mxu0 0.0
    %1400 = vmatpush1.msra.mxu0 %v1368
    %1401 = vmatprep.subr.mxu0 0.0
    %1402 = vmatpush1.msra.mxu0 %v1367
    %1403 = vmatprep.subr.mxu0 0.0
    %1404 = vmatpush1.msra.mxu0 %v1366
    %1405 = vmatprep.subr.mxu0 0.0
    %1406 = vmatpush1.msra.mxu0 %v1365
    %1407 = vmatprep.subr.mxu0 0.0
    %1408 = vmatpush1.msra.mxu0 %v1364
    %1409 = vmatprep.subr.mxu0 0.0
    %1410 = vmatpush1.msra.mxu0 %v1363
    %1411 = vmatprep.subr.mxu0 0.0
    %1412 = vmatpush2.msra.mxu0 0.0
    %1413 = vmatprep.subr.mxu0 0.0
    %1414 = vmatpush2.msra.mxu0 0.0
    %1415 = vmatprep.subr.mxu0 0.0
    %1416 = vmatpush2.msra.mxu0 0.0
    %1417 = vmatprep.subr.mxu0 0.0
    %1418 = vmatpush2.msra.mxu0 0.0
    %1419 = vmatprep.subr.mxu0 0.0
    %1420 = vmatpush2.msra.mxu0 0.0
    %1421 = vmatprep.subr.mxu0 0.0
    %1422 = vmatpush2.msra.mxu0 0.0
    %1423 = vmatprep.subr.mxu0 0.0
    %1424 = vmatpush2.msra.mxu0 0.0
    %1425 = vmatprep.subr.mxu0 0.0
    %1426 = vmatpush2.msra.mxu0 0.0
    %1427 = vmatprep.subr.mxu0 0.0
    %1428 = vmatpush2.msra.mxu0 0.0
    %1429 = vmatprep.subr.mxu0 0.0
    %1430 = vmatpush2.msra.mxu0 0.0
    %1431 = vmatprep.subr.mxu0 0.0
    %1432 = vmatpush2.msra.mxu0 0.0
    %1433 = vmatprep.subr.mxu0 0.0
    %1434 = vmatpush2.msra.mxu0 0.0
    %1435 = vmatprep.subr.mxu0 0.0
    %1436 = vmatpush2.msra.mxu0 0.0
    %1437 = vmatprep.subr.mxu0 0.0
    %1438 = vmatpush2.msra.mxu0 0.0
    %1439 = vmatprep.subr.mxu0 0.0
    %1440 = vmatpush2.msra.mxu0 0.0
    %1441 = vmatprep.subr.mxu0 0.0
    %1442 = vmatpush2.msra.mxu0 0.0
    %1443 = vmatprep.mubr.f32.mxu0 0.0
    %1444 = vmatmul.mubr.f32.gmra.mxu0 %v1362
    %v1445 = vpop.f32.mrf.mxu0
    %v1446 = vadd.f32 %v69, %v1445
    %v1447 = vpop.f32.mrf.mxu0
    %1448 = vdwg.mxu0
    %1449 = vst [vmem:[#allocation2 + $0x3] sm:$0x1] %v1446
    %1450 = vmatprep.subr.mxu0 0.0
    %1451 = vmatpush1.msra.mxu0 %v51
    %1452 = vmatprep.subr.mxu0 0.0
    %1453 = vmatpush1.msra.mxu0 %v50
    %1454 = vmatprep.subr.mxu0 0.0
    %1455 = vmatpush1.msra.mxu0 %v49
    %1456 = vmatprep.subr.mxu0 0.0
    %1457 = vmatpush1.msra.mxu0 %v48
    %1458 = vmatprep.subr.mxu0 0.0
    %1459 = vmatpush1.msra.mxu0 %v47
    %1460 = vmatprep.subr.mxu0 0.0
    %1461 = vmatpush1.msra.mxu0 %v46
    %1462 = vmatprep.subr.mxu0 0.0
    %1463 = vmatpush1.msra.mxu0 %v45
    %1464 = vmatprep.subr.mxu0 0.0
    %1465 = vmatpush1.msra.mxu0 %v44
    %1466 = vmatprep.subr.mxu0 0.0
    %1467 = vmatpush1.msra.mxu0 %v43
    %1468 = vmatprep.subr.mxu0 0.0
    %1469 = vmatpush1.msra.mxu0 %v42
    %1470 = vmatprep.subr.mxu0 0.0
    %1471 = vmatpush1.msra.mxu0 %v41
    %1472 = vmatprep.subr.mxu0 0.0
    %1473 = vmatpush1.msra.mxu0 %v40
    %1474 = vmatprep.subr.mxu0 0.0
    %1475 = vmatpush1.msra.mxu0 %v39
    %1476 = vmatprep.subr.mxu0 0.0
    %1477 = vmatpush1.msra.mxu0 %v38
    %1478 = vmatprep.subr.mxu0 0.0
    %1479 = vmatpush1.msra.mxu0 %v37
    %1480 = vmatprep.subr.mxu0 0.0
    %1481 = vmatpush1.msra.mxu0 %v36
    %1482 = vmatprep.subr.mxu0 0.0
    %1483 = vmatpush2.msra.mxu0 0.0
    %1484 = vmatprep.subr.mxu0 0.0
    %1485 = vmatpush2.msra.mxu0 0.0
    %1486 = vmatprep.subr.mxu0 0.0
    %1487 = vmatpush2.msra.mxu0 0.0
    %1488 = vmatprep.subr.mxu0 0.0
    %1489 = vmatpush2.msra.mxu0 0.0
    %1490 = vmatprep.subr.mxu0 0.0
    %1491 = vmatpush2.msra.mxu0 0.0
    %1492 = vmatprep.subr.mxu0 0.0
    %1493 = vmatpush2.msra.mxu0 0.0
    %1494 = vmatprep.subr.mxu0 0.0
    %1495 = vmatpush2.msra.mxu0 0.0
    %1496 = vmatprep.subr.mxu0 0.0
    %1497 = vmatpush2.msra.mxu0 0.0
    %1498 = vmatprep.subr.mxu0 0.0
    %1499 = vmatpush2.msra.mxu0 0.0
    %1500 = vmatprep.subr.mxu0 0.0
    %1501 = vmatpush2.msra.mxu0 0.0
    %1502 = vmatprep.subr.mxu0 0.0
    %1503 = vmatpush2.msra.mxu0 0.0
    %1504 = vmatprep.subr.mxu0 0.0
    %1505 = vmatpush2.msra.mxu0 0.0
    %1506 = vmatprep.subr.mxu0 0.0
    %1507 = vmatpush2.msra.mxu0 0.0
    %1508 = vmatprep.subr.mxu0 0.0
    %1509 = vmatpush2.msra.mxu0 0.0
    %1510 = vmatprep.subr.mxu0 0.0
    %1511 = vmatpush2.msra.mxu0 0.0
    %1512 = vmatprep.subr.mxu0 0.0
    %1513 = vmatpush2.msra.mxu0 0.0
    %1514 = vmatprep.mubr.f32.mxu0 0.0
    %1515 = vmatmul.mubr.f32.gmra.mxu0 %v1289
    %v1516 = vpop.f32.mrf.mxu0
    %v1517 = vadd.f32 0.0, %v1516
    %v1518 = vpop.f32.mrf.mxu0
    %1519 = vdwg.mxu0
    %v1521 = vrot.slane %v1517, 4
    %v1523 = vadd.f32 %v161, %v1521
    %v1524 = vtanh.pop %v1523
    %v1525 = vld [vmem:[%s4] sm:$0xff]
    %v1526 = vld [vmem:[%s4 + $0x8] sm:$0xff]
    %v1527 = vld [vmem:[%s4 + $0x10] sm:$0xff]
    %v1528 = vld [vmem:[%s4 + $0x18] sm:$0xff]
    %v1529 = vld [vmem:[%s4 + $0x20] sm:$0xff]
    %v1530 = vld [vmem:[%s4 + $0x28] sm:$0xff]
    %v1531 = vld [vmem:[%s4 + $0x30] sm:$0xff]
    %v1532 = vld [vmem:[%s4 + $0x38] sm:$0xff]
    %v1533 = vld [vmem:[%s4 + $0x40] sm:$0xff]
    %v1534 = vld [vmem:[%s4 + $0x48] sm:$0xff]
    %v1535 = vld [vmem:[%s4 + $0x50] sm:$0xff]
    %v1536 = vld [vmem:[%s4 + $0x58] sm:$0xff]
    %v1537 = vld [vmem:[%s4 + $0x60] sm:$0xff]
    %v1538 = vld [vmem:[%s4 + $0x68] sm:$0xff]
    %v1539 = vld [vmem:[%s4 + $0x70] sm:$0xff]
    %v1540 = vld [vmem:[%s4 + $0x78] sm:$0xff]
    %1541 = vmatprep.subr.mxu0 0.0
    %1542 = vmatpush1.msra.mxu0 %v67
    %1543 = vmatprep.subr.mxu0 0.0
    %1544 = vmatpush1.msra.mxu0 %v66
    %1545 = vmatprep.subr.mxu0 0.0
    %1546 = vmatpush1.msra.mxu0 %v65
    %1547 = vmatprep.subr.mxu0 0.0
    %1548 = vmatpush1.msra.mxu0 %v64
    %1549 = vmatprep.subr.mxu0 0.0
    %1550 = vmatpush1.msra.mxu0 %v63
    %1551 = vmatprep.subr.mxu0 0.0
    %1552 = vmatpush1.msra.mxu0 %v62
    %1553 = vmatprep.subr.mxu0 0.0
    %1554 = vmatpush1.msra.mxu0 %v61
    %1555 = vmatprep.subr.mxu0 0.0
    %1556 = vmatpush1.msra.mxu0 %v60
    %1557 = vmatprep.subr.mxu0 0.0
    %1558 = vmatpush1.msra.mxu0 %v59
    %1559 = vmatprep.subr.mxu0 0.0
    %1560 = vmatpush1.msra.mxu0 %v58
    %1561 = vmatprep.subr.mxu0 0.0
    %1562 = vmatpush1.msra.mxu0 %v57
    %1563 = vmatprep.subr.mxu0 0.0
    %1564 = vmatpush1.msra.mxu0 %v56
    %1565 = vmatprep.subr.mxu0 0.0
    %1566 = vmatpush1.msra.mxu0 %v55
    %1567 = vmatprep.subr.mxu0 0.0
    %1568 = vmatpush1.msra.mxu0 %v54
    %1569 = vmatprep.subr.mxu0 0.0
    %1570 = vmatpush1.msra.mxu0 %v53
    %1571 = vmatprep.subr.mxu0 0.0
    %1572 = vmatpush1.msra.mxu0 %v52
    %1573 = vmatprep.subr.mxu0 0.0
    %1574 = vmatpush2.msra.mxu0 0.0
    %1575 = vmatprep.subr.mxu0 0.0
    %1576 = vmatpush2.msra.mxu0 0.0
    %1577 = vmatprep.subr.mxu0 0.0
    %1578 = vmatpush2.msra.mxu0 0.0
    %1579 = vmatprep.subr.mxu0 0.0
    %1580 = vmatpush2.msra.mxu0 0.0
    %1581 = vmatprep.subr.mxu0 0.0
    %1582 = vmatpush2.msra.mxu0 0.0
    %1583 = vmatprep.subr.mxu0 0.0
    %1584 = vmatpush2.msra.mxu0 0.0
    %1585 = vmatprep.subr.mxu0 0.0
    %1586 = vmatpush2.msra.mxu0 0.0
    %1587 = vmatprep.subr.mxu0 0.0
    %1588 = vmatpush2.msra.mxu0 0.0
    %1589 = vmatprep.subr.mxu0 0.0
    %1590 = vmatpush2.msra.mxu0 0.0
    %1591 = vmatprep.subr.mxu0 0.0
    %1592 = vmatpush2.msra.mxu0 0.0
    %1593 = vmatprep.subr.mxu0 0.0
    %1594 = vmatpush2.msra.mxu0 0.0
    %1595 = vmatprep.subr.mxu0 0.0
    %1596 = vmatpush2.msra.mxu0 0.0
    %1597 = vmatprep.subr.mxu0 0.0
    %1598 = vmatpush2.msra.mxu0 0.0
    %1599 = vmatprep.subr.mxu0 0.0
    %1600 = vmatpush2.msra.mxu0 0.0
    %1601 = vmatprep.subr.mxu0 0.0
    %1602 = vmatpush2.msra.mxu0 0.0
    %1603 = vmatprep.subr.mxu0 0.0
    %1604 = vmatpush2.msra.mxu0 0.0
    %1605 = vmatprep.mubr.f32.mxu0 0.0
    %1606 = vmatmul.mubr.f32.gmra.mxu0 %v1362
    %v1607 = vpop.f32.mrf.mxu0
    %v1608 = vadd.f32 0.0, %v1607
    %v1609 = vpop.f32.mrf.mxu0
    %1610 = vdwg.mxu0
    %v1612 = vrot.slane %v1524, 4
    %1614 = vmatprep.subr.mxu0 0.0
    %1615 = vmatpush1.msra.mxu0 %v1540
    %1616 = vmatprep.subr.mxu0 0.0
    %1617 = vmatpush1.msra.mxu0 %v1539
    %1618 = vmatprep.subr.mxu0 0.0
    %1619 = vmatpush1.msra.mxu0 %v1538
    %1620 = vmatprep.subr.mxu0 0.0
    %1621 = vmatpush1.msra.mxu0 %v1537
    %1622 = vmatprep.subr.mxu0 0.0
    %1623 = vmatpush1.msra.mxu0 %v1536
    %1624 = vmatprep.subr.mxu0 0.0
    %1625 = vmatpush1.msra.mxu0 %v1535
    %1626 = vmatprep.subr.mxu0 0.0
    %1627 = vmatpush1.msra.mxu0 %v1534
    %1628 = vmatprep.subr.mxu0 0.0
    %1629 = vmatpush1.msra.mxu0 %v1533
    %1630 = vmatprep.subr.mxu0 0.0
    %1631 = vmatpush1.msra.mxu0 %v1532
    %1632 = vmatprep.subr.mxu0 0.0
    %1633 = vmatpush1.msra.mxu0 %v1531
    %1634 = vmatprep.subr.mxu0 0.0
    %1635 = vmatpush1.msra.mxu0 %v1530
    %1636 = vmatprep.subr.mxu0 0.0
    %1637 = vmatpush1.msra.mxu0 %v1529
    %1638 = vmatprep.subr.mxu0 0.0
    %1639 = vmatpush1.msra.mxu0 %v1528
    %1640 = vmatprep.subr.mxu0 0.0
    %1641 = vmatpush1.msra.mxu0 %v1527
    %1642 = vmatprep.subr.mxu0 0.0
    %1643 = vmatpush1.msra.mxu0 %v1526
    %1644 = vmatprep.subr.mxu0 0.0
    %1645 = vmatpush1.msra.mxu0 %v1525
    %1646 = vmatprep.subr.mxu0 0.0
    %1647 = vmatpush2.msra.mxu0 0.0
    %1648 = vmatprep.subr.mxu0 0.0
    %1649 = vmatpush2.msra.mxu0 0.0
    %1650 = vmatprep.subr.mxu0 0.0
    %1651 = vmatpush2.msra.mxu0 0.0
    %1652 = vmatprep.subr.mxu0 0.0
    %1653 = vmatpush2.msra.mxu0 0.0
    %1654 = vmatprep.subr.mxu0 0.0
    %1655 = vmatpush2.msra.mxu0 0.0
    %1656 = vmatprep.subr.mxu0 0.0
    %1657 = vmatpush2.msra.mxu0 0.0
    %1658 = vmatprep.subr.mxu0 0.0
    %1659 = vmatpush2.msra.mxu0 0.0
    %1660 = vmatprep.subr.mxu0 0.0
    %1661 = vmatpush2.msra.mxu0 0.0
    %1662 = vmatprep.subr.mxu0 0.0
    %1663 = vmatpush2.msra.mxu0 0.0
    %1664 = vmatprep.subr.mxu0 0.0
    %1665 = vmatpush2.msra.mxu0 0.0
    %1666 = vmatprep.subr.mxu0 0.0
    %1667 = vmatpush2.msra.mxu0 0.0
    %1668 = vmatprep.subr.mxu0 0.0
    %1669 = vmatpush2.msra.mxu0 0.0
    %1670 = vmatprep.subr.mxu0 0.0
    %1671 = vmatpush2.msra.mxu0 0.0
    %1672 = vmatprep.subr.mxu0 0.0
    %1673 = vmatpush2.msra.mxu0 0.0
    %1674 = vmatprep.subr.mxu0 0.0
    %1675 = vmatpush2.msra.mxu0 0.0
    %1676 = vmatprep.subr.mxu0 0.0
    %1677 = vmatpush2.msra.mxu0 0.0
    %1678 = vmatprep.mubr.f32.mxu0 0.0
    %1679 = vmatmul.mubr.f32.gmra.mxu0 %v1612
    %v1680 = vpop.f32.mrf.mxu0
    %v1681 = vadd.f32 %v1608, %v1680
    %v1682 = vpop.f32.mrf.mxu0
    %1683 = vdwg.mxu0
    %v1684 = vadd.f32 %v1681, %v68
    %v1685 = vtanh.pop %v1684
    %v1686 = vld [vmem:[%s7] sm:$0xff]
    %v1687 = vld [vmem:[%s7 + $0x8] sm:$0xff]
    %v1688 = vld [vmem:[%s7 + $0x10] sm:$0xff]
    %v1689 = vld [vmem:[%s7 + $0x18] sm:$0xff]
    %v1690 = vld [vmem:[%s7 + $0x20] sm:$0xff]
    %v1691 = vld [vmem:[%s7 + $0x28] sm:$0xff]
    %v1692 = vld [vmem:[%s7 + $0x30] sm:$0xff]
    %v1693 = vld [vmem:[%s7 + $0x38] sm:$0xff]
    %v1694 = vld [vmem:[%s7 + $0x40] sm:$0xff]
    %v1695 = vld [vmem:[%s7 + $0x48] sm:$0xff]
    %v1696 = vld [vmem:[%s7 + $0x50] sm:$0xff]
    %v1697 = vld [vmem:[%s7 + $0x58] sm:$0xff]
    %v1698 = vld [vmem:[%s7 + $0x60] sm:$0xff]
    %v1699 = vld [vmem:[%s7 + $0x68] sm:$0xff]
    %v1700 = vld [vmem:[%s7 + $0x70] sm:$0xff]
    %v1701 = vld [vmem:[%s7 + $0x78] sm:$0xff]
    %1702 = vmatprep.subr.mxu0 0.0
    %1703 = vmatpush1.msra.mxu0 %v1701
    %1704 = vmatprep.subr.mxu0 0.0
    %1705 = vmatpush1.msra.mxu0 %v1700
    %1706 = vmatprep.subr.mxu0 0.0
    %1707 = vmatpush1.msra.mxu0 %v1699
    %1708 = vmatprep.subr.mxu0 0.0
    %1709 = vmatpush1.msra.mxu0 %v1698
    %1710 = vmatprep.subr.mxu0 0.0
    %1711 = vmatpush1.msra.mxu0 %v1697
    %1712 = vmatprep.subr.mxu0 0.0
    %1713 = vmatpush1.msra.mxu0 %v1696
    %1714 = vmatprep.subr.mxu0 0.0
    %1715 = vmatpush1.msra.mxu0 %v1695
    %1716 = vmatprep.subr.mxu0 0.0
    %1717 = vmatpush1.msra.mxu0 %v1694
    %1718 = vmatprep.subr.mxu0 0.0
    %1719 = vmatpush1.msra.mxu0 %v1693
    %1720 = vmatprep.subr.mxu0 0.0
    %1721 = vmatpush1.msra.mxu0 %v1692
    %1722 = vmatprep.subr.mxu0 0.0
    %1723 = vmatpush1.msra.mxu0 %v1691
    %1724 = vmatprep.subr.mxu0 0.0
    %1725 = vmatpush1.msra.mxu0 %v1690
    %1726 = vmatprep.subr.mxu0 0.0
    %1727 = vmatpush1.msra.mxu0 %v1689
    %1728 = vmatprep.subr.mxu0 0.0
    %1729 = vmatpush1.msra.mxu0 %v1688
    %1730 = vmatprep.subr.mxu0 0.0
    %1731 = vmatpush1.msra.mxu0 %v1687
    %1732 = vmatprep.subr.mxu0 0.0
    %1733 = vmatpush1.msra.mxu0 %v1686
    %1734 = vmatprep.subr.mxu0 0.0
    %1735 = vmatpush2.msra.mxu0 0.0
    %1736 = vmatprep.subr.mxu0 0.0
    %1737 = vmatpush2.msra.mxu0 0.0
    %1738 = vmatprep.subr.mxu0 0.0
    %1739 = vmatpush2.msra.mxu0 0.0
    %1740 = vmatprep.subr.mxu0 0.0
    %1741 = vmatpush2.msra.mxu0 0.0
    %1742 = vmatprep.subr.mxu0 0.0
    %1743 = vmatpush2.msra.mxu0 0.0
    %1744 = vmatprep.subr.mxu0 0.0
    %1745 = vmatpush2.msra.mxu0 0.0
    %1746 = vmatprep.subr.mxu0 0.0
    %1747 = vmatpush2.msra.mxu0 0.0
    %1748 = vmatprep.subr.mxu0 0.0
    %1749 = vmatpush2.msra.mxu0 0.0
    %1750 = vmatprep.subr.mxu0 0.0
    %1751 = vmatpush2.msra.mxu0 0.0
    %1752 = vmatprep.subr.mxu0 0.0
    %1753 = vmatpush2.msra.mxu0 0.0
    %1754 = vmatprep.subr.mxu0 0.0
    %1755 = vmatpush2.msra.mxu0 0.0
    %1756 = vmatprep.subr.mxu0 0.0
    %1757 = vmatpush2.msra.mxu0 0.0
    %1758 = vmatprep.subr.mxu0 0.0
    %1759 = vmatpush2.msra.mxu0 0.0
    %1760 = vmatprep.subr.mxu0 0.0
    %1761 = vmatpush2.msra.mxu0 0.0
    %1762 = vmatprep.subr.mxu0 0.0
    %1763 = vmatpush2.msra.mxu0 0.0
    %1764 = vmatprep.subr.mxu0 0.0
    %1765 = vmatpush2.msra.mxu0 0.0
    %1766 = vmatprep.mubr.f32.mxu0 0.0
    %1767 = vmatmul.mubr.f32.gmra.mxu0 %v1685
    %v1768 = vpop.f32.mrf.mxu0
    %v1769 = vadd.f32 %v69, %v1768
    %v1770 = vpop.f32.mrf.mxu0
    %1771 = vdwg.mxu0
    %1772 = vst [vmem:[#allocation2 + $0x4] sm:$0x1] %v1769
    %1773 = vmatprep.subr.mxu0 0.0
    %1774 = vmatpush1.msra.mxu0 %v51
    %1775 = vmatprep.subr.mxu0 0.0
    %1776 = vmatpush1.msra.mxu0 %v50
    %1777 = vmatprep.subr.mxu0 0.0
    %1778 = vmatpush1.msra.mxu0 %v49
    %1779 = vmatprep.subr.mxu0 0.0
    %1780 = vmatpush1.msra.mxu0 %v48
    %1781 = vmatprep.subr.mxu0 0.0
    %1782 = vmatpush1.msra.mxu0 %v47
    %1783 = vmatprep.subr.mxu0 0.0
    %1784 = vmatpush1.msra.mxu0 %v46
    %1785 = vmatprep.subr.mxu0 0.0
    %1786 = vmatpush1.msra.mxu0 %v45
    %1787 = vmatprep.subr.mxu0 0.0
    %1788 = vmatpush1.msra.mxu0 %v44
    %1789 = vmatprep.subr.mxu0 0.0
    %1790 = vmatpush1.msra.mxu0 %v43
    %1791 = vmatprep.subr.mxu0 0.0
    %1792 = vmatpush1.msra.mxu0 %v42
    %1793 = vmatprep.subr.mxu0 0.0
    %1794 = vmatpush1.msra.mxu0 %v41
    %1795 = vmatprep.subr.mxu0 0.0
    %1796 = vmatpush1.msra.mxu0 %v40
    %1797 = vmatprep.subr.mxu0 0.0
    %1798 = vmatpush1.msra.mxu0 %v39
    %1799 = vmatprep.subr.mxu0 0.0
    %1800 = vmatpush1.msra.mxu0 %v38
    %1801 = vmatprep.subr.mxu0 0.0
    %1802 = vmatpush1.msra.mxu0 %v37
    %1803 = vmatprep.subr.mxu0 0.0
    %1804 = vmatpush1.msra.mxu0 %v36
    %1805 = vmatprep.subr.mxu0 0.0
    %1806 = vmatpush2.msra.mxu0 0.0
    %1807 = vmatprep.subr.mxu0 0.0
    %1808 = vmatpush2.msra.mxu0 0.0
    %1809 = vmatprep.subr.mxu0 0.0
    %1810 = vmatpush2.msra.mxu0 0.0
    %1811 = vmatprep.subr.mxu0 0.0
    %1812 = vmatpush2.msra.mxu0 0.0
    %1813 = vmatprep.subr.mxu0 0.0
    %1814 = vmatpush2.msra.mxu0 0.0
    %1815 = vmatprep.subr.mxu0 0.0
    %1816 = vmatpush2.msra.mxu0 0.0
    %1817 = vmatprep.subr.mxu0 0.0
    %1818 = vmatpush2.msra.mxu0 0.0
    %1819 = vmatprep.subr.mxu0 0.0
    %1820 = vmatpush2.msra.mxu0 0.0
    %1821 = vmatprep.subr.mxu0 0.0
    %1822 = vmatpush2.msra.mxu0 0.0
    %1823 = vmatprep.subr.mxu0 0.0
    %1824 = vmatpush2.msra.mxu0 0.0
    %1825 = vmatprep.subr.mxu0 0.0
    %1826 = vmatpush2.msra.mxu0 0.0
    %1827 = vmatprep.subr.mxu0 0.0
    %1828 = vmatpush2.msra.mxu0 0.0
    %1829 = vmatprep.subr.mxu0 0.0
    %1830 = vmatpush2.msra.mxu0 0.0
    %1831 = vmatprep.subr.mxu0 0.0
    %1832 = vmatpush2.msra.mxu0 0.0
    %1833 = vmatprep.subr.mxu0 0.0
    %1834 = vmatpush2.msra.mxu0 0.0
    %1835 = vmatprep.subr.mxu0 0.0
    %1836 = vmatpush2.msra.mxu0 0.0
    %1837 = vmatprep.mubr.f32.mxu0 0.0
    %1838 = vmatmul.mubr.f32.gmra.mxu0 %v1612
    %v1839 = vpop.f32.mrf.mxu0
    %v1840 = vadd.f32 0.0, %v1839
    %v1841 = vpop.f32.mrf.mxu0
    %1842 = vdwg.mxu0
    %v1844 = vrot.slane %v1840, 3
    %v1846 = vadd.f32 %v161, %v1844
    %v1847 = vtanh.pop %v1846
    %v1848 = vld [vmem:[%s4] sm:$0xff]
    %v1849 = vld [vmem:[%s4 + $0x8] sm:$0xff]
    %v1850 = vld [vmem:[%s4 + $0x10] sm:$0xff]
    %v1851 = vld [vmem:[%s4 + $0x18] sm:$0xff]
    %v1852 = vld [vmem:[%s4 + $0x20] sm:$0xff]
    %v1853 = vld [vmem:[%s4 + $0x28] sm:$0xff]
    %v1854 = vld [vmem:[%s4 + $0x30] sm:$0xff]
    %v1855 = vld [vmem:[%s4 + $0x38] sm:$0xff]
    %v1856 = vld [vmem:[%s4 + $0x40] sm:$0xff]
    %v1857 = vld [vmem:[%s4 + $0x48] sm:$0xff]
    %v1858 = vld [vmem:[%s4 + $0x50] sm:$0xff]
    %v1859 = vld [vmem:[%s4 + $0x58] sm:$0xff]
    %v1860 = vld [vmem:[%s4 + $0x60] sm:$0xff]
    %v1861 = vld [vmem:[%s4 + $0x68] sm:$0xff]
    %v1862 = vld [vmem:[%s4 + $0x70] sm:$0xff]
    %v1863 = vld [vmem:[%s4 + $0x78] sm:$0xff]
    %1864 = vmatprep.subr.mxu0 0.0
    %1865 = vmatpush1.msra.mxu0 %v67
    %1866 = vmatprep.subr.mxu0 0.0
    %1867 = vmatpush1.msra.mxu0 %v66
    %1868 = vmatprep.subr.mxu0 0.0
    %1869 = vmatpush1.msra.mxu0 %v65
    %1870 = vmatprep.subr.mxu0 0.0
    %1871 = vmatpush1.msra.mxu0 %v64
    %1872 = vmatprep.subr.mxu0 0.0
    %1873 = vmatpush1.msra.mxu0 %v63
    %1874 = vmatprep.subr.mxu0 0.0
    %1875 = vmatpush1.msra.mxu0 %v62
    %1876 = vmatprep.subr.mxu0 0.0
    %1877 = vmatpush1.msra.mxu0 %v61
    %1878 = vmatprep.subr.mxu0 0.0
    %1879 = vmatpush1.msra.mxu0 %v60
    %1880 = vmatprep.subr.mxu0 0.0
    %1881 = vmatpush1.msra.mxu0 %v59
    %1882 = vmatprep.subr.mxu0 0.0
    %1883 = vmatpush1.msra.mxu0 %v58
    %1884 = vmatprep.subr.mxu0 0.0
    %1885 = vmatpush1.msra.mxu0 %v57
    %1886 = vmatprep.subr.mxu0 0.0
    %1887 = vmatpush1.msra.mxu0 %v56
    %1888 = vmatprep.subr.mxu0 0.0
    %1889 = vmatpush1.msra.mxu0 %v55
    %1890 = vmatprep.subr.mxu0 0.0
    %1891 = vmatpush1.msra.mxu0 %v54
    %1892 = vmatprep.subr.mxu0 0.0
    %1893 = vmatpush1.msra.mxu0 %v53
    %1894 = vmatprep.subr.mxu0 0.0
    %1895 = vmatpush1.msra.mxu0 %v52
    %1896 = vmatprep.subr.mxu0 0.0
    %1897 = vmatpush2.msra.mxu0 0.0
    %1898 = vmatprep.subr.mxu0 0.0
    %1899 = vmatpush2.msra.mxu0 0.0
    %1900 = vmatprep.subr.mxu0 0.0
    %1901 = vmatpush2.msra.mxu0 0.0
    %1902 = vmatprep.subr.mxu0 0.0
    %1903 = vmatpush2.msra.mxu0 0.0
    %1904 = vmatprep.subr.mxu0 0.0
    %1905 = vmatpush2.msra.mxu0 0.0
    %1906 = vmatprep.subr.mxu0 0.0
    %1907 = vmatpush2.msra.mxu0 0.0
    %1908 = vmatprep.subr.mxu0 0.0
    %1909 = vmatpush2.msra.mxu0 0.0
    %1910 = vmatprep.subr.mxu0 0.0
    %1911 = vmatpush2.msra.mxu0 0.0
    %1912 = vmatprep.subr.mxu0 0.0
    %1913 = vmatpush2.msra.mxu0 0.0
    %1914 = vmatprep.subr.mxu0 0.0
    %1915 = vmatpush2.msra.mxu0 0.0
    %1916 = vmatprep.subr.mxu0 0.0
    %1917 = vmatpush2.msra.mxu0 0.0
    %1918 = vmatprep.subr.mxu0 0.0
    %1919 = vmatpush2.msra.mxu0 0.0
    %1920 = vmatprep.subr.mxu0 0.0
    %1921 = vmatpush2.msra.mxu0 0.0
    %1922 = vmatprep.subr.mxu0 0.0
    %1923 = vmatpush2.msra.mxu0 0.0
    %1924 = vmatprep.subr.mxu0 0.0
    %1925 = vmatpush2.msra.mxu0 0.0
    %1926 = vmatprep.subr.mxu0 0.0
    %1927 = vmatpush2.msra.mxu0 0.0
    %1928 = vmatprep.mubr.f32.mxu0 0.0
    %1929 = vmatmul.mubr.f32.gmra.mxu0 %v1685
    %v1930 = vpop.f32.mrf.mxu0
    %v1931 = vadd.f32 0.0, %v1930
    %v1932 = vpop.f32.mrf.mxu0
    %1933 = vdwg.mxu0
    %v1935 = vrot.slane %v1847, 5
    %1937 = vmatprep.subr.mxu0 0.0
    %1938 = vmatpush1.msra.mxu0 %v1863
    %1939 = vmatprep.subr.mxu0 0.0
    %1940 = vmatpush1.msra.mxu0 %v1862
    %1941 = vmatprep.subr.mxu0 0.0
    %1942 = vmatpush1.msra.mxu0 %v1861
    %1943 = vmatprep.subr.mxu0 0.0
    %1944 = vmatpush1.msra.mxu0 %v1860
    %1945 = vmatprep.subr.mxu0 0.0
    %1946 = vmatpush1.msra.mxu0 %v1859
    %1947 = vmatprep.subr.mxu0 0.0
    %1948 = vmatpush1.msra.mxu0 %v1858
    %1949 = vmatprep.subr.mxu0 0.0
    %1950 = vmatpush1.msra.mxu0 %v1857
    %1951 = vmatprep.subr.mxu0 0.0
    %1952 = vmatpush1.msra.mxu0 %v1856
    %1953 = vmatprep.subr.mxu0 0.0
    %1954 = vmatpush1.msra.mxu0 %v1855
    %1955 = vmatprep.subr.mxu0 0.0
    %1956 = vmatpush1.msra.mxu0 %v1854
    %1957 = vmatprep.subr.mxu0 0.0
    %1958 = vmatpush1.msra.mxu0 %v1853
    %1959 = vmatprep.subr.mxu0 0.0
    %1960 = vmatpush1.msra.mxu0 %v1852
    %1961 = vmatprep.subr.mxu0 0.0
    %1962 = vmatpush1.msra.mxu0 %v1851
    %1963 = vmatprep.subr.mxu0 0.0
    %1964 = vmatpush1.msra.mxu0 %v1850
    %1965 = vmatprep.subr.mxu0 0.0
    %1966 = vmatpush1.msra.mxu0 %v1849
    %1967 = vmatprep.subr.mxu0 0.0
    %1968 = vmatpush1.msra.mxu0 %v1848
    %1969 = vmatprep.subr.mxu0 0.0
    %1970 = vmatpush2.msra.mxu0 0.0
    %1971 = vmatprep.subr.mxu0 0.0
    %1972 = vmatpush2.msra.mxu0 0.0
    %1973 = vmatprep.subr.mxu0 0.0
    %1974 = vmatpush2.msra.mxu0 0.0
    %1975 = vmatprep.subr.mxu0 0.0
    %1976 = vmatpush2.msra.mxu0 0.0
    %1977 = vmatprep.subr.mxu0 0.0
    %1978 = vmatpush2.msra.mxu0 0.0
    %1979 = vmatprep.subr.mxu0 0.0
    %1980 = vmatpush2.msra.mxu0 0.0
    %1981 = vmatprep.subr.mxu0 0.0
    %1982 = vmatpush2.msra.mxu0 0.0
    %1983 = vmatprep.subr.mxu0 0.0
    %1984 = vmatpush2.msra.mxu0 0.0
    %1985 = vmatprep.subr.mxu0 0.0
    %1986 = vmatpush2.msra.mxu0 0.0
    %1987 = vmatprep.subr.mxu0 0.0
    %1988 = vmatpush2.msra.mxu0 0.0
    %1989 = vmatprep.subr.mxu0 0.0
    %1990 = vmatpush2.msra.mxu0 0.0
    %1991 = vmatprep.subr.mxu0 0.0
    %1992 = vmatpush2.msra.mxu0 0.0
    %1993 = vmatprep.subr.mxu0 0.0
    %1994 = vmatpush2.msra.mxu0 0.0
    %1995 = vmatprep.subr.mxu0 0.0
    %1996 = vmatpush2.msra.mxu0 0.0
    %1997 = vmatprep.subr.mxu0 0.0
    %1998 = vmatpush2.msra.mxu0 0.0
    %1999 = vmatprep.subr.mxu0 0.0
    %2000 = vmatpush2.msra.mxu0 0.0
    %2001 = vmatprep.mubr.f32.mxu0 0.0
    %2002 = vmatmul.mubr.f32.gmra.mxu0 %v1935
    %v2003 = vpop.f32.mrf.mxu0
    %v2004 = vadd.f32 %v1931, %v2003
    %v2005 = vpop.f32.mrf.mxu0
    %2006 = vdwg.mxu0
    %v2007 = vadd.f32 %v2004, %v68
    %v2008 = vtanh.pop %v2007
    %v2009 = vld [vmem:[%s7] sm:$0xff]
    %v2010 = vld [vmem:[%s7 + $0x8] sm:$0xff]
    %v2011 = vld [vmem:[%s7 + $0x10] sm:$0xff]
    %v2012 = vld [vmem:[%s7 + $0x18] sm:$0xff]
    %v2013 = vld [vmem:[%s7 + $0x20] sm:$0xff]
    %v2014 = vld [vmem:[%s7 + $0x28] sm:$0xff]
    %v2015 = vld [vmem:[%s7 + $0x30] sm:$0xff]
    %v2016 = vld [vmem:[%s7 + $0x38] sm:$0xff]
    %v2017 = vld [vmem:[%s7 + $0x40] sm:$0xff]
    %v2018 = vld [vmem:[%s7 + $0x48] sm:$0xff]
    %v2019 = vld [vmem:[%s7 + $0x50] sm:$0xff]
    %v2020 = vld [vmem:[%s7 + $0x58] sm:$0xff]
    %v2021 = vld [vmem:[%s7 + $0x60] sm:$0xff]
    %v2022 = vld [vmem:[%s7 + $0x68] sm:$0xff]
    %v2023 = vld [vmem:[%s7 + $0x70] sm:$0xff]
    %v2024 = vld [vmem:[%s7 + $0x78] sm:$0xff]
    %2025 = vmatprep.subr.mxu0 0.0
    %2026 = vmatpush1.msra.mxu0 %v2024
    %2027 = vmatprep.subr.mxu0 0.0
    %2028 = vmatpush1.msra.mxu0 %v2023
    %2029 = vmatprep.subr.mxu0 0.0
    %2030 = vmatpush1.msra.mxu0 %v2022
    %2031 = vmatprep.subr.mxu0 0.0
    %2032 = vmatpush1.msra.mxu0 %v2021
    %2033 = vmatprep.subr.mxu0 0.0
    %2034 = vmatpush1.msra.mxu0 %v2020
    %2035 = vmatprep.subr.mxu0 0.0
    %2036 = vmatpush1.msra.mxu0 %v2019
    %2037 = vmatprep.subr.mxu0 0.0
    %2038 = vmatpush1.msra.mxu0 %v2018
    %2039 = vmatprep.subr.mxu0 0.0
    %2040 = vmatpush1.msra.mxu0 %v2017
    %2041 = vmatprep.subr.mxu0 0.0
    %2042 = vmatpush1.msra.mxu0 %v2016
    %2043 = vmatprep.subr.mxu0 0.0
    %2044 = vmatpush1.msra.mxu0 %v2015
    %2045 = vmatprep.subr.mxu0 0.0
    %2046 = vmatpush1.msra.mxu0 %v2014
    %2047 = vmatprep.subr.mxu0 0.0
    %2048 = vmatpush1.msra.mxu0 %v2013
    %2049 = vmatprep.subr.mxu0 0.0
    %2050 = vmatpush1.msra.mxu0 %v2012
    %2051 = vmatprep.subr.mxu0 0.0
    %2052 = vmatpush1.msra.mxu0 %v2011
    %2053 = vmatprep.subr.mxu0 0.0
    %2054 = vmatpush1.msra.mxu0 %v2010
    %2055 = vmatprep.subr.mxu0 0.0
    %2056 = vmatpush1.msra.mxu0 %v2009
    %2057 = vmatprep.subr.mxu0 0.0
    %2058 = vmatpush2.msra.mxu0 0.0
    %2059 = vmatprep.subr.mxu0 0.0
    %2060 = vmatpush2.msra.mxu0 0.0
    %2061 = vmatprep.subr.mxu0 0.0
    %2062 = vmatpush2.msra.mxu0 0.0
    %2063 = vmatprep.subr.mxu0 0.0
    %2064 = vmatpush2.msra.mxu0 0.0
    %2065 = vmatprep.subr.mxu0 0.0
    %2066 = vmatpush2.msra.mxu0 0.0
    %2067 = vmatprep.subr.mxu0 0.0
    %2068 = vmatpush2.msra.mxu0 0.0
    %2069 = vmatprep.subr.mxu0 0.0
    %2070 = vmatpush2.msra.mxu0 0.0
    %2071 = vmatprep.subr.mxu0 0.0
    %2072 = vmatpush2.msra.mxu0 0.0
    %2073 = vmatprep.subr.mxu0 0.0
    %2074 = vmatpush2.msra.mxu0 0.0
    %2075 = vmatprep.subr.mxu0 0.0
    %2076 = vmatpush2.msra.mxu0 0.0
    %2077 = vmatprep.subr.mxu0 0.0
    %2078 = vmatpush2.msra.mxu0 0.0
    %2079 = vmatprep.subr.mxu0 0.0
    %2080 = vmatpush2.msra.mxu0 0.0
    %2081 = vmatprep.subr.mxu0 0.0
    %2082 = vmatpush2.msra.mxu0 0.0
    %2083 = vmatprep.subr.mxu0 0.0
    %2084 = vmatpush2.msra.mxu0 0.0
    %2085 = vmatprep.subr.mxu0 0.0
    %2086 = vmatpush2.msra.mxu0 0.0
    %2087 = vmatprep.subr.mxu0 0.0
    %2088 = vmatpush2.msra.mxu0 0.0
    %2089 = vmatprep.mubr.f32.mxu0 0.0
    %2090 = vmatmul.mubr.f32.gmra.mxu0 %v2008
    %v2091 = vpop.f32.mrf.mxu0
    %v2092 = vadd.f32 %v69, %v2091
    %v2093 = vpop.f32.mrf.mxu0
    %2094 = vdwg.mxu0
    %2095 = vst [vmem:[#allocation2 + $0x5] sm:$0x1] %v2092
    %2096 = vmatprep.subr.mxu0 0.0
    %2097 = vmatpush1.msra.mxu0 %v51
    %2098 = vmatprep.subr.mxu0 0.0
    %2099 = vmatpush1.msra.mxu0 %v50
    %2100 = vmatprep.subr.mxu0 0.0
    %2101 = vmatpush1.msra.mxu0 %v49
    %2102 = vmatprep.subr.mxu0 0.0
    %2103 = vmatpush1.msra.mxu0 %v48
    %2104 = vmatprep.subr.mxu0 0.0
    %2105 = vmatpush1.msra.mxu0 %v47
    %2106 = vmatprep.subr.mxu0 0.0
    %2107 = vmatpush1.msra.mxu0 %v46
    %2108 = vmatprep.subr.mxu0 0.0
    %2109 = vmatpush1.msra.mxu0 %v45
    %2110 = vmatprep.subr.mxu0 0.0
    %2111 = vmatpush1.msra.mxu0 %v44
    %2112 = vmatprep.subr.mxu0 0.0
    %2113 = vmatpush1.msra.mxu0 %v43
    %2114 = vmatprep.subr.mxu0 0.0
    %2115 = vmatpush1.msra.mxu0 %v42
    %2116 = vmatprep.subr.mxu0 0.0
    %2117 = vmatpush1.msra.mxu0 %v41
    %2118 = vmatprep.subr.mxu0 0.0
    %2119 = vmatpush1.msra.mxu0 %v40
    %2120 = vmatprep.subr.mxu0 0.0
    %2121 = vmatpush1.msra.mxu0 %v39
    %2122 = vmatprep.subr.mxu0 0.0
    %2123 = vmatpush1.msra.mxu0 %v38
    %2124 = vmatprep.subr.mxu0 0.0
    %2125 = vmatpush1.msra.mxu0 %v37
    %2126 = vmatprep.subr.mxu0 0.0
    %2127 = vmatpush1.msra.mxu0 %v36
    %2128 = vmatprep.subr.mxu0 0.0
    %2129 = vmatpush2.msra.mxu0 0.0
    %2130 = vmatprep.subr.mxu0 0.0
    %2131 = vmatpush2.msra.mxu0 0.0
    %2132 = vmatprep.subr.mxu0 0.0
    %2133 = vmatpush2.msra.mxu0 0.0
    %2134 = vmatprep.subr.mxu0 0.0
    %2135 = vmatpush2.msra.mxu0 0.0
    %2136 = vmatprep.subr.mxu0 0.0
    %2137 = vmatpush2.msra.mxu0 0.0
    %2138 = vmatprep.subr.mxu0 0.0
    %2139 = vmatpush2.msra.mxu0 0.0
    %2140 = vmatprep.subr.mxu0 0.0
    %2141 = vmatpush2.msra.mxu0 0.0
    %2142 = vmatprep.subr.mxu0 0.0
    %2143 = vmatpush2.msra.mxu0 0.0
    %2144 = vmatprep.subr.mxu0 0.0
    %2145 = vmatpush2.msra.mxu0 0.0
    %2146 = vmatprep.subr.mxu0 0.0
    %2147 = vmatpush2.msra.mxu0 0.0
    %2148 = vmatprep.subr.mxu0 0.0
    %2149 = vmatpush2.msra.mxu0 0.0
    %2150 = vmatprep.subr.mxu0 0.0
    %2151 = vmatpush2.msra.mxu0 0.0
    %2152 = vmatprep.subr.mxu0 0.0
    %2153 = vmatpush2.msra.mxu0 0.0
    %2154 = vmatprep.subr.mxu0 0.0
    %2155 = vmatpush2.msra.mxu0 0.0
    %2156 = vmatprep.subr.mxu0 0.0
    %2157 = vmatpush2.msra.mxu0 0.0
    %2158 = vmatprep.subr.mxu0 0.0
    %2159 = vmatpush2.msra.mxu0 0.0
    %2160 = vmatprep.mubr.f32.mxu0 0.0
    %2161 = vmatmul.mubr.f32.gmra.mxu0 %v1935
    %v2162 = vpop.f32.mrf.mxu0
    %v2163 = vadd.f32 0.0, %v2162
    %v2164 = vpop.f32.mrf.mxu0
    %2165 = vdwg.mxu0
    %v2167 = vrot.slane %v2163, 2
    %v2169 = vadd.f32 %v161, %v2167
    %v2170 = vtanh.pop %v2169
    %v2171 = vld [vmem:[%s4] sm:$0xff]
    %v2172 = vld [vmem:[%s4 + $0x8] sm:$0xff]
    %v2173 = vld [vmem:[%s4 + $0x10] sm:$0xff]
    %v2174 = vld [vmem:[%s4 + $0x18] sm:$0xff]
    %v2175 = vld [vmem:[%s4 + $0x20] sm:$0xff]
    %v2176 = vld [vmem:[%s4 + $0x28] sm:$0xff]
    %v2177 = vld [vmem:[%s4 + $0x30] sm:$0xff]
    %v2178 = vld [vmem:[%s4 + $0x38] sm:$0xff]
    %v2179 = vld [vmem:[%s4 + $0x40] sm:$0xff]
    %v2180 = vld [vmem:[%s4 + $0x48] sm:$0xff]
    %v2181 = vld [vmem:[%s4 + $0x50] sm:$0xff]
    %v2182 = vld [vmem:[%s4 + $0x58] sm:$0xff]
    %v2183 = vld [vmem:[%s4 + $0x60] sm:$0xff]
    %v2184 = vld [vmem:[%s4 + $0x68] sm:$0xff]
    %v2185 = vld [vmem:[%s4 + $0x70] sm:$0xff]
    %v2186 = vld [vmem:[%s4 + $0x78] sm:$0xff]
    %2187 = vmatprep.subr.mxu0 0.0
    %2188 = vmatpush1.msra.mxu0 %v67
    %2189 = vmatprep.subr.mxu0 0.0
    %2190 = vmatpush1.msra.mxu0 %v66
    %2191 = vmatprep.subr.mxu0 0.0
    %2192 = vmatpush1.msra.mxu0 %v65
    %2193 = vmatprep.subr.mxu0 0.0
    %2194 = vmatpush1.msra.mxu0 %v64
    %2195 = vmatprep.subr.mxu0 0.0
    %2196 = vmatpush1.msra.mxu0 %v63
    %2197 = vmatprep.subr.mxu0 0.0
    %2198 = vmatpush1.msra.mxu0 %v62
    %2199 = vmatprep.subr.mxu0 0.0
    %2200 = vmatpush1.msra.mxu0 %v61
    %2201 = vmatprep.subr.mxu0 0.0
    %2202 = vmatpush1.msra.mxu0 %v60
    %2203 = vmatprep.subr.mxu0 0.0
    %2204 = vmatpush1.msra.mxu0 %v59
    %2205 = vmatprep.subr.mxu0 0.0
    %2206 = vmatpush1.msra.mxu0 %v58
    %2207 = vmatprep.subr.mxu0 0.0
    %2208 = vmatpush1.msra.mxu0 %v57
    %2209 = vmatprep.subr.mxu0 0.0
    %2210 = vmatpush1.msra.mxu0 %v56
    %2211 = vmatprep.subr.mxu0 0.0
    %2212 = vmatpush1.msra.mxu0 %v55
    %2213 = vmatprep.subr.mxu0 0.0
    %2214 = vmatpush1.msra.mxu0 %v54
    %2215 = vmatprep.subr.mxu0 0.0
    %2216 = vmatpush1.msra.mxu0 %v53
    %2217 = vmatprep.subr.mxu0 0.0
    %2218 = vmatpush1.msra.mxu0 %v52
    %2219 = vmatprep.subr.mxu0 0.0
    %2220 = vmatpush2.msra.mxu0 0.0
    %2221 = vmatprep.subr.mxu0 0.0
    %2222 = vmatpush2.msra.mxu0 0.0
    %2223 = vmatprep.subr.mxu0 0.0
    %2224 = vmatpush2.msra.mxu0 0.0
    %2225 = vmatprep.subr.mxu0 0.0
    %2226 = vmatpush2.msra.mxu0 0.0
    %2227 = vmatprep.subr.mxu0 0.0
    %2228 = vmatpush2.msra.mxu0 0.0
    %2229 = vmatprep.subr.mxu0 0.0
    %2230 = vmatpush2.msra.mxu0 0.0
    %2231 = vmatprep.subr.mxu0 0.0
    %2232 = vmatpush2.msra.mxu0 0.0
    %2233 = vmatprep.subr.mxu0 0.0
    %2234 = vmatpush2.msra.mxu0 0.0
    %2235 = vmatprep.subr.mxu0 0.0
    %2236 = vmatpush2.msra.mxu0 0.0
    %2237 = vmatprep.subr.mxu0 0.0
    %2238 = vmatpush2.msra.mxu0 0.0
    %2239 = vmatprep.subr.mxu0 0.0
    %2240 = vmatpush2.msra.mxu0 0.0
    %2241 = vmatprep.subr.mxu0 0.0
    %2242 = vmatpush2.msra.mxu0 0.0
    %2243 = vmatprep.subr.mxu0 0.0
    %2244 = vmatpush2.msra.mxu0 0.0
    %2245 = vmatprep.subr.mxu0 0.0
    %2246 = vmatpush2.msra.mxu0 0.0
    %2247 = vmatprep.subr.mxu0 0.0
    %2248 = vmatpush2.msra.mxu0 0.0
    %2249 = vmatprep.subr.mxu0 0.0
    %2250 = vmatpush2.msra.mxu0 0.0
    %2251 = vmatprep.mubr.f32.mxu0 0.0
    %2252 = vmatmul.mubr.f32.gmra.mxu0 %v2008
    %v2253 = vpop.f32.mrf.mxu0
    %v2254 = vadd.f32 0.0, %v2253
    %v2255 = vpop.f32.mrf.mxu0
    %2256 = vdwg.mxu0
    %v2258 = vrot.slane %v2170, 6
    %2260 = vmatprep.subr.mxu0 0.0
    %2261 = vmatpush1.msra.mxu0 %v2186
    %2262 = vmatprep.subr.mxu0 0.0
    %2263 = vmatpush1.msra.mxu0 %v2185
    %2264 = vmatprep.subr.mxu0 0.0
    %2265 = vmatpush1.msra.mxu0 %v2184
    %2266 = vmatprep.subr.mxu0 0.0
    %2267 = vmatpush1.msra.mxu0 %v2183
    %2268 = vmatprep.subr.mxu0 0.0
    %2269 = vmatpush1.msra.mxu0 %v2182
    %2270 = vmatprep.subr.mxu0 0.0
    %2271 = vmatpush1.msra.mxu0 %v2181
    %2272 = vmatprep.subr.mxu0 0.0
    %2273 = vmatpush1.msra.mxu0 %v2180
    %2274 = vmatprep.subr.mxu0 0.0
    %2275 = vmatpush1.msra.mxu0 %v2179
    %2276 = vmatprep.subr.mxu0 0.0
    %2277 = vmatpush1.msra.mxu0 %v2178
    %2278 = vmatprep.subr.mxu0 0.0
    %2279 = vmatpush1.msra.mxu0 %v2177
    %2280 = vmatprep.subr.mxu0 0.0
    %2281 = vmatpush1.msra.mxu0 %v2176
    %2282 = vmatprep.subr.mxu0 0.0
    %2283 = vmatpush1.msra.mxu0 %v2175
    %2284 = vmatprep.subr.mxu0 0.0
    %2285 = vmatpush1.msra.mxu0 %v2174
    %2286 = vmatprep.subr.mxu0 0.0
    %2287 = vmatpush1.msra.mxu0 %v2173
    %2288 = vmatprep.subr.mxu0 0.0
    %2289 = vmatpush1.msra.mxu0 %v2172
    %2290 = vmatprep.subr.mxu0 0.0
    %2291 = vmatpush1.msra.mxu0 %v2171
    %2292 = vmatprep.subr.mxu0 0.0
    %2293 = vmatpush2.msra.mxu0 0.0
    %2294 = vmatprep.subr.mxu0 0.0
    %2295 = vmatpush2.msra.mxu0 0.0
    %2296 = vmatprep.subr.mxu0 0.0
    %2297 = vmatpush2.msra.mxu0 0.0
    %2298 = vmatprep.subr.mxu0 0.0
    %2299 = vmatpush2.msra.mxu0 0.0
    %2300 = vmatprep.subr.mxu0 0.0
    %2301 = vmatpush2.msra.mxu0 0.0
    %2302 = vmatprep.subr.mxu0 0.0
    %2303 = vmatpush2.msra.mxu0 0.0
    %2304 = vmatprep.subr.mxu0 0.0
    %2305 = vmatpush2.msra.mxu0 0.0
    %2306 = vmatprep.subr.mxu0 0.0
    %2307 = vmatpush2.msra.mxu0 0.0
    %2308 = vmatprep.subr.mxu0 0.0
    %2309 = vmatpush2.msra.mxu0 0.0
    %2310 = vmatprep.subr.mxu0 0.0
    %2311 = vmatpush2.msra.mxu0 0.0
    %2312 = vmatprep.subr.mxu0 0.0
    %2313 = vmatpush2.msra.mxu0 0.0
    %2314 = vmatprep.subr.mxu0 0.0
    %2315 = vmatpush2.msra.mxu0 0.0
    %2316 = vmatprep.subr.mxu0 0.0
    %2317 = vmatpush2.msra.mxu0 0.0
    %2318 = vmatprep.subr.mxu0 0.0
    %2319 = vmatpush2.msra.mxu0 0.0
    %2320 = vmatprep.subr.mxu0 0.0
    %2321 = vmatpush2.msra.mxu0 0.0
    %2322 = vmatprep.subr.mxu0 0.0
    %2323 = vmatpush2.msra.mxu0 0.0
    %2324 = vmatprep.mubr.f32.mxu0 0.0
    %2325 = vmatmul.mubr.f32.gmra.mxu0 %v2258
    %v2326 = vpop.f32.mrf.mxu0
    %v2327 = vadd.f32 %v2254, %v2326
    %v2328 = vpop.f32.mrf.mxu0
    %2329 = vdwg.mxu0
    %v2330 = vadd.f32 %v2327, %v68
    %v2331 = vtanh.pop %v2330
    %v2332 = vld [vmem:[%s7] sm:$0xff]
    %v2333 = vld [vmem:[%s7 + $0x8] sm:$0xff]
    %v2334 = vld [vmem:[%s7 + $0x10] sm:$0xff]
    %v2335 = vld [vmem:[%s7 + $0x18] sm:$0xff]
    %v2336 = vld [vmem:[%s7 + $0x20] sm:$0xff]
    %v2337 = vld [vmem:[%s7 + $0x28] sm:$0xff]
    %v2338 = vld [vmem:[%s7 + $0x30] sm:$0xff]
    %v2339 = vld [vmem:[%s7 + $0x38] sm:$0xff]
    %v2340 = vld [vmem:[%s7 + $0x40] sm:$0xff]
    %v2341 = vld [vmem:[%s7 + $0x48] sm:$0xff]
    %v2342 = vld [vmem:[%s7 + $0x50] sm:$0xff]
    %v2343 = vld [vmem:[%s7 + $0x58] sm:$0xff]
    %v2344 = vld [vmem:[%s7 + $0x60] sm:$0xff]
    %v2345 = vld [vmem:[%s7 + $0x68] sm:$0xff]
    %v2346 = vld [vmem:[%s7 + $0x70] sm:$0xff]
    %v2347 = vld [vmem:[%s7 + $0x78] sm:$0xff]
    %2348 = vmatprep.subr.mxu0 0.0
    %2349 = vmatpush1.msra.mxu0 %v2347
    %2350 = vmatprep.subr.mxu0 0.0
    %2351 = vmatpush1.msra.mxu0 %v2346
    %2352 = vmatprep.subr.mxu0 0.0
    %2353 = vmatpush1.msra.mxu0 %v2345
    %2354 = vmatprep.subr.mxu0 0.0
    %2355 = vmatpush1.msra.mxu0 %v2344
    %2356 = vmatprep.subr.mxu0 0.0
    %2357 = vmatpush1.msra.mxu0 %v2343
    %2358 = vmatprep.subr.mxu0 0.0
    %2359 = vmatpush1.msra.mxu0 %v2342
    %2360 = vmatprep.subr.mxu0 0.0
    %2361 = vmatpush1.msra.mxu0 %v2341
    %2362 = vmatprep.subr.mxu0 0.0
    %2363 = vmatpush1.msra.mxu0 %v2340
    %2364 = vmatprep.subr.mxu0 0.0
    %2365 = vmatpush1.msra.mxu0 %v2339
    %2366 = vmatprep.subr.mxu0 0.0
    %2367 = vmatpush1.msra.mxu0 %v2338
    %2368 = vmatprep.subr.mxu0 0.0
    %2369 = vmatpush1.msra.mxu0 %v2337
    %2370 = vmatprep.subr.mxu0 0.0
    %2371 = vmatpush1.msra.mxu0 %v2336
    %2372 = vmatprep.subr.mxu0 0.0
    %2373 = vmatpush1.msra.mxu0 %v2335
    %2374 = vmatprep.subr.mxu0 0.0
    %2375 = vmatpush1.msra.mxu0 %v2334
    %2376 = vmatprep.subr.mxu0 0.0
    %2377 = vmatpush1.msra.mxu0 %v2333
    %2378 = vmatprep.subr.mxu0 0.0
    %2379 = vmatpush1.msra.mxu0 %v2332
    %2380 = vmatprep.subr.mxu0 0.0
    %2381 = vmatpush2.msra.mxu0 0.0
    %2382 = vmatprep.subr.mxu0 0.0
    %2383 = vmatpush2.msra.mxu0 0.0
    %2384 = vmatprep.subr.mxu0 0.0
    %2385 = vmatpush2.msra.mxu0 0.0
    %2386 = vmatprep.subr.mxu0 0.0
    %2387 = vmatpush2.msra.mxu0 0.0
    %2388 = vmatprep.subr.mxu0 0.0
    %2389 = vmatpush2.msra.mxu0 0.0
    %2390 = vmatprep.subr.mxu0 0.0
    %2391 = vmatpush2.msra.mxu0 0.0
    %2392 = vmatprep.subr.mxu0 0.0
    %2393 = vmatpush2.msra.mxu0 0.0
    %2394 = vmatprep.subr.mxu0 0.0
    %2395 = vmatpush2.msra.mxu0 0.0
    %2396 = vmatprep.subr.mxu0 0.0
    %2397 = vmatpush2.msra.mxu0 0.0
    %2398 = vmatprep.subr.mxu0 0.0
    %2399 = vmatpush2.msra.mxu0 0.0
    %2400 = vmatprep.subr.mxu0 0.0
    %2401 = vmatpush2.msra.mxu0 0.0
    %2402 = vmatprep.subr.mxu0 0.0
    %2403 = vmatpush2.msra.mxu0 0.0
    %2404 = vmatprep.subr.mxu0 0.0
    %2405 = vmatpush2.msra.mxu0 0.0
    %2406 = vmatprep.subr.mxu0 0.0
    %2407 = vmatpush2.msra.mxu0 0.0
    %2408 = vmatprep.subr.mxu0 0.0
    %2409 = vmatpush2.msra.mxu0 0.0
    %2410 = vmatprep.subr.mxu0 0.0
    %2411 = vmatpush2.msra.mxu0 0.0
    %2412 = vmatprep.mubr.f32.mxu0 0.0
    %2413 = vmatmul.mubr.f32.gmra.mxu0 %v2331
    %v2414 = vpop.f32.mrf.mxu0
    %v2415 = vadd.f32 %v69, %v2414
    %v2416 = vpop.f32.mrf.mxu0
    %2417 = vdwg.mxu0
    %2418 = vst [vmem:[#allocation2 + $0x6] sm:$0x1] %v2415
    %2419 = vmatprep.subr.mxu0 0.0
    %2420 = vmatpush1.msra.mxu0 %v51
    %2421 = vmatprep.subr.mxu0 0.0
    %2422 = vmatpush1.msra.mxu0 %v50
    %2423 = vmatprep.subr.mxu0 0.0
    %2424 = vmatpush1.msra.mxu0 %v49
    %2425 = vmatprep.subr.mxu0 0.0
    %2426 = vmatpush1.msra.mxu0 %v48
    %2427 = vmatprep.subr.mxu0 0.0
    %2428 = vmatpush1.msra.mxu0 %v47
    %2429 = vmatprep.subr.mxu0 0.0
    %2430 = vmatpush1.msra.mxu0 %v46
    %2431 = vmatprep.subr.mxu0 0.0
    %2432 = vmatpush1.msra.mxu0 %v45
    %2433 = vmatprep.subr.mxu0 0.0
    %2434 = vmatpush1.msra.mxu0 %v44
    %2435 = vmatprep.subr.mxu0 0.0
    %2436 = vmatpush1.msra.mxu0 %v43
    %2437 = vmatprep.subr.mxu0 0.0
    %2438 = vmatpush1.msra.mxu0 %v42
    %2439 = vmatprep.subr.mxu0 0.0
    %2440 = vmatpush1.msra.mxu0 %v41
    %2441 = vmatprep.subr.mxu0 0.0
    %2442 = vmatpush1.msra.mxu0 %v40
    %2443 = vmatprep.subr.mxu0 0.0
    %2444 = vmatpush1.msra.mxu0 %v39
    %2445 = vmatprep.subr.mxu0 0.0
    %2446 = vmatpush1.msra.mxu0 %v38
    %2447 = vmatprep.subr.mxu0 0.0
    %2448 = vmatpush1.msra.mxu0 %v37
    %2449 = vmatprep.subr.mxu0 0.0
    %2450 = vmatpush1.msra.mxu0 %v36
    %2451 = vmatprep.subr.mxu0 0.0
    %2452 = vmatpush2.msra.mxu0 0.0
    %2453 = vmatprep.subr.mxu0 0.0
    %2454 = vmatpush2.msra.mxu0 0.0
    %2455 = vmatprep.subr.mxu0 0.0
    %2456 = vmatpush2.msra.mxu0 0.0
    %2457 = vmatprep.subr.mxu0 0.0
    %2458 = vmatpush2.msra.mxu0 0.0
    %2459 = vmatprep.subr.mxu0 0.0
    %2460 = vmatpush2.msra.mxu0 0.0
    %2461 = vmatprep.subr.mxu0 0.0
    %2462 = vmatpush2.msra.mxu0 0.0
    %2463 = vmatprep.subr.mxu0 0.0
    %2464 = vmatpush2.msra.mxu0 0.0
    %2465 = vmatprep.subr.mxu0 0.0
    %2466 = vmatpush2.msra.mxu0 0.0
    %2467 = vmatprep.subr.mxu0 0.0
    %2468 = vmatpush2.msra.mxu0 0.0
    %2469 = vmatprep.subr.mxu0 0.0
    %2470 = vmatpush2.msra.mxu0 0.0
    %2471 = vmatprep.subr.mxu0 0.0
    %2472 = vmatpush2.msra.mxu0 0.0
    %2473 = vmatprep.subr.mxu0 0.0
    %2474 = vmatpush2.msra.mxu0 0.0
    %2475 = vmatprep.subr.mxu0 0.0
    %2476 = vmatpush2.msra.mxu0 0.0
    %2477 = vmatprep.subr.mxu0 0.0
    %2478 = vmatpush2.msra.mxu0 0.0
    %2479 = vmatprep.subr.mxu0 0.0
    %2480 = vmatpush2.msra.mxu0 0.0
    %2481 = vmatprep.subr.mxu0 0.0
    %2482 = vmatpush2.msra.mxu0 0.0
    %2483 = vmatprep.mubr.f32.mxu0 0.0
    %2484 = vmatmul.mubr.f32.gmra.mxu0 %v2258
    %v2485 = vpop.f32.mrf.mxu0
    %v2486 = vadd.f32 0.0, %v2485
    %v2487 = vpop.f32.mrf.mxu0
    %2488 = vdwg.mxu0
    %v2490 = vrot.slane %v2486, 1
    %v2492 = vadd.f32 %v161, %v2490
    %v2493 = vtanh.pop %v2492
    %v2494 = vld [vmem:[%s4] sm:$0xff]
    %v2495 = vld [vmem:[%s4 + $0x8] sm:$0xff]
    %v2496 = vld [vmem:[%s4 + $0x10] sm:$0xff]
    %v2497 = vld [vmem:[%s4 + $0x18] sm:$0xff]
    %v2498 = vld [vmem:[%s4 + $0x20] sm:$0xff]
    %v2499 = vld [vmem:[%s4 + $0x28] sm:$0xff]
    %v2500 = vld [vmem:[%s4 + $0x30] sm:$0xff]
    %v2501 = vld [vmem:[%s4 + $0x38] sm:$0xff]
    %v2502 = vld [vmem:[%s4 + $0x40] sm:$0xff]
    %v2503 = vld [vmem:[%s4 + $0x48] sm:$0xff]
    %v2504 = vld [vmem:[%s4 + $0x50] sm:$0xff]
    %v2505 = vld [vmem:[%s4 + $0x58] sm:$0xff]
    %v2506 = vld [vmem:[%s4 + $0x60] sm:$0xff]
    %v2507 = vld [vmem:[%s4 + $0x68] sm:$0xff]
    %v2508 = vld [vmem:[%s4 + $0x70] sm:$0xff]
    %v2509 = vld [vmem:[%s4 + $0x78] sm:$0xff]
    %2510 = vmatprep.subr.mxu0 0.0
    %2511 = vmatpush1.msra.mxu0 %v67
    %2512 = vmatprep.subr.mxu0 0.0
    %2513 = vmatpush1.msra.mxu0 %v66
    %2514 = vmatprep.subr.mxu0 0.0
    %2515 = vmatpush1.msra.mxu0 %v65
    %2516 = vmatprep.subr.mxu0 0.0
    %2517 = vmatpush1.msra.mxu0 %v64
    %2518 = vmatprep.subr.mxu0 0.0
    %2519 = vmatpush1.msra.mxu0 %v63
    %2520 = vmatprep.subr.mxu0 0.0
    %2521 = vmatpush1.msra.mxu0 %v62
    %2522 = vmatprep.subr.mxu0 0.0
    %2523 = vmatpush1.msra.mxu0 %v61
    %2524 = vmatprep.subr.mxu0 0.0
    %2525 = vmatpush1.msra.mxu0 %v60
    %2526 = vmatprep.subr.mxu0 0.0
    %2527 = vmatpush1.msra.mxu0 %v59
    %2528 = vmatprep.subr.mxu0 0.0
    %2529 = vmatpush1.msra.mxu0 %v58
    %2530 = vmatprep.subr.mxu0 0.0
    %2531 = vmatpush1.msra.mxu0 %v57
    %2532 = vmatprep.subr.mxu0 0.0
    %2533 = vmatpush1.msra.mxu0 %v56
    %2534 = vmatprep.subr.mxu0 0.0
    %2535 = vmatpush1.msra.mxu0 %v55
    %2536 = vmatprep.subr.mxu0 0.0
    %2537 = vmatpush1.msra.mxu0 %v54
    %2538 = vmatprep.subr.mxu0 0.0
    %2539 = vmatpush1.msra.mxu0 %v53
    %2540 = vmatprep.subr.mxu0 0.0
    %2541 = vmatpush1.msra.mxu0 %v52
    %2542 = vmatprep.subr.mxu0 0.0
    %2543 = vmatpush2.msra.mxu0 0.0
    %2544 = vmatprep.subr.mxu0 0.0
    %2545 = vmatpush2.msra.mxu0 0.0
    %2546 = vmatprep.subr.mxu0 0.0
    %2547 = vmatpush2.msra.mxu0 0.0
    %2548 = vmatprep.subr.mxu0 0.0
    %2549 = vmatpush2.msra.mxu0 0.0
    %2550 = vmatprep.subr.mxu0 0.0
    %2551 = vmatpush2.msra.mxu0 0.0
    %2552 = vmatprep.subr.mxu0 0.0
    %2553 = vmatpush2.msra.mxu0 0.0
    %2554 = vmatprep.subr.mxu0 0.0
    %2555 = vmatpush2.msra.mxu0 0.0
    %2556 = vmatprep.subr.mxu0 0.0
    %2557 = vmatpush2.msra.mxu0 0.0
    %2558 = vmatprep.subr.mxu0 0.0
    %2559 = vmatpush2.msra.mxu0 0.0
    %2560 = vmatprep.subr.mxu0 0.0
    %2561 = vmatpush2.msra.mxu0 0.0
    %2562 = vmatprep.subr.mxu0 0.0
    %2563 = vmatpush2.msra.mxu0 0.0
    %2564 = vmatprep.subr.mxu0 0.0
    %2565 = vmatpush2.msra.mxu0 0.0
    %2566 = vmatprep.subr.mxu0 0.0
    %2567 = vmatpush2.msra.mxu0 0.0
    %2568 = vmatprep.subr.mxu0 0.0
    %2569 = vmatpush2.msra.mxu0 0.0
    %2570 = vmatprep.subr.mxu0 0.0
    %2571 = vmatpush2.msra.mxu0 0.0
    %2572 = vmatprep.subr.mxu0 0.0
    %2573 = vmatpush2.msra.mxu0 0.0
    %2574 = vmatprep.mubr.f32.mxu0 0.0
    %2575 = vmatmul.mubr.f32.gmra.mxu0 %v2331
    %v2576 = vpop.f32.mrf.mxu0
    %v2577 = vadd.f32 0.0, %v2576
    %v2578 = vpop.f32.mrf.mxu0
    %2579 = vdwg.mxu0
    %v2581 = vrot.slane %v2493, 7
    %2583 = vmatprep.subr.mxu0 0.0
    %2584 = vmatpush1.msra.mxu0 %v2509
    %2585 = vmatprep.subr.mxu0 0.0
    %2586 = vmatpush1.msra.mxu0 %v2508
    %2587 = vmatprep.subr.mxu0 0.0
    %2588 = vmatpush1.msra.mxu0 %v2507
    %2589 = vmatprep.subr.mxu0 0.0
    %2590 = vmatpush1.msra.mxu0 %v2506
    %2591 = vmatprep.subr.mxu0 0.0
    %2592 = vmatpush1.msra.mxu0 %v2505
    %2593 = vmatprep.subr.mxu0 0.0
    %2594 = vmatpush1.msra.mxu0 %v2504
    %2595 = vmatprep.subr.mxu0 0.0
    %2596 = vmatpush1.msra.mxu0 %v2503
    %2597 = vmatprep.subr.mxu0 0.0
    %2598 = vmatpush1.msra.mxu0 %v2502
    %2599 = vmatprep.subr.mxu0 0.0
    %2600 = vmatpush1.msra.mxu0 %v2501
    %2601 = vmatprep.subr.mxu0 0.0
    %2602 = vmatpush1.msra.mxu0 %v2500
    %2603 = vmatprep.subr.mxu0 0.0
    %2604 = vmatpush1.msra.mxu0 %v2499
    %2605 = vmatprep.subr.mxu0 0.0
    %2606 = vmatpush1.msra.mxu0 %v2498
    %2607 = vmatprep.subr.mxu0 0.0
    %2608 = vmatpush1.msra.mxu0 %v2497
    %2609 = vmatprep.subr.mxu0 0.0
    %2610 = vmatpush1.msra.mxu0 %v2496
    %2611 = vmatprep.subr.mxu0 0.0
    %2612 = vmatpush1.msra.mxu0 %v2495
    %2613 = vmatprep.subr.mxu0 0.0
    %2614 = vmatpush1.msra.mxu0 %v2494
    %2615 = vmatprep.subr.mxu0 0.0
    %2616 = vmatpush2.msra.mxu0 0.0
    %2617 = vmatprep.subr.mxu0 0.0
    %2618 = vmatpush2.msra.mxu0 0.0
    %2619 = vmatprep.subr.mxu0 0.0
    %2620 = vmatpush2.msra.mxu0 0.0
    %2621 = vmatprep.subr.mxu0 0.0
    %2622 = vmatpush2.msra.mxu0 0.0
    %2623 = vmatprep.subr.mxu0 0.0
    %2624 = vmatpush2.msra.mxu0 0.0
    %2625 = vmatprep.subr.mxu0 0.0
    %2626 = vmatpush2.msra.mxu0 0.0
    %2627 = vmatprep.subr.mxu0 0.0
    %2628 = vmatpush2.msra.mxu0 0.0
    %2629 = vmatprep.subr.mxu0 0.0
    %2630 = vmatpush2.msra.mxu0 0.0
    %2631 = vmatprep.subr.mxu0 0.0
    %2632 = vmatpush2.msra.mxu0 0.0
    %2633 = vmatprep.subr.mxu0 0.0
    %2634 = vmatpush2.msra.mxu0 0.0
    %2635 = vmatprep.subr.mxu0 0.0
    %2636 = vmatpush2.msra.mxu0 0.0
    %2637 = vmatprep.subr.mxu0 0.0
    %2638 = vmatpush2.msra.mxu0 0.0
    %2639 = vmatprep.subr.mxu0 0.0
    %2640 = vmatpush2.msra.mxu0 0.0
    %2641 = vmatprep.subr.mxu0 0.0
    %2642 = vmatpush2.msra.mxu0 0.0
    %2643 = vmatprep.subr.mxu0 0.0
    %2644 = vmatpush2.msra.mxu0 0.0
    %2645 = vmatprep.subr.mxu0 0.0
    %2646 = vmatpush2.msra.mxu0 0.0
    %2647 = vmatprep.mubr.f32.mxu0 0.0
    %2648 = vmatmul.mubr.f32.gmra.mxu0 %v2581
    %v2649 = vpop.f32.mrf.mxu0
    %v2650 = vadd.f32 %v2577, %v2649
    %v2651 = vpop.f32.mrf.mxu0
    %2652 = vdwg.mxu0
    %v2653 = vadd.f32 %v2650, %v68
    %v2654 = vtanh.pop %v2653
    %v2655 = vld [vmem:[%s7] sm:$0xff]
    %v2656 = vld [vmem:[%s7 + $0x8] sm:$0xff]
    %v2657 = vld [vmem:[%s7 + $0x10] sm:$0xff]
    %v2658 = vld [vmem:[%s7 + $0x18] sm:$0xff]
    %v2659 = vld [vmem:[%s7 + $0x20] sm:$0xff]
    %v2660 = vld [vmem:[%s7 + $0x28] sm:$0xff]
    %v2661 = vld [vmem:[%s7 + $0x30] sm:$0xff]
    %v2662 = vld [vmem:[%s7 + $0x38] sm:$0xff]
    %v2663 = vld [vmem:[%s7 + $0x40] sm:$0xff]
    %v2664 = vld [vmem:[%s7 + $0x48] sm:$0xff]
    %v2665 = vld [vmem:[%s7 + $0x50] sm:$0xff]
    %v2666 = vld [vmem:[%s7 + $0x58] sm:$0xff]
    %v2667 = vld [vmem:[%s7 + $0x60] sm:$0xff]
    %v2668 = vld [vmem:[%s7 + $0x68] sm:$0xff]
    %v2669 = vld [vmem:[%s7 + $0x70] sm:$0xff]
    %v2670 = vld [vmem:[%s7 + $0x78] sm:$0xff]
    %2671 = vmatprep.subr.mxu0 0.0
    %2672 = vmatpush1.msra.mxu0 %v2670
    %2673 = vmatprep.subr.mxu0 0.0
    %2674 = vmatpush1.msra.mxu0 %v2669
    %2675 = vmatprep.subr.mxu0 0.0
    %2676 = vmatpush1.msra.mxu0 %v2668
    %2677 = vmatprep.subr.mxu0 0.0
    %2678 = vmatpush1.msra.mxu0 %v2667
    %2679 = vmatprep.subr.mxu0 0.0
    %2680 = vmatpush1.msra.mxu0 %v2666
    %2681 = vmatprep.subr.mxu0 0.0
    %2682 = vmatpush1.msra.mxu0 %v2665
    %2683 = vmatprep.subr.mxu0 0.0
    %2684 = vmatpush1.msra.mxu0 %v2664
    %2685 = vmatprep.subr.mxu0 0.0
    %2686 = vmatpush1.msra.mxu0 %v2663
    %2687 = vmatprep.subr.mxu0 0.0
    %2688 = vmatpush1.msra.mxu0 %v2662
    %2689 = vmatprep.subr.mxu0 0.0
    %2690 = vmatpush1.msra.mxu0 %v2661
    %2691 = vmatprep.subr.mxu0 0.0
    %2692 = vmatpush1.msra.mxu0 %v2660
    %2693 = vmatprep.subr.mxu0 0.0
    %2694 = vmatpush1.msra.mxu0 %v2659
    %2695 = vmatprep.subr.mxu0 0.0
    %2696 = vmatpush1.msra.mxu0 %v2658
    %2697 = vmatprep.subr.mxu0 0.0
    %2698 = vmatpush1.msra.mxu0 %v2657
    %2699 = vmatprep.subr.mxu0 0.0
    %2700 = vmatpush1.msra.mxu0 %v2656
    %2701 = vmatprep.subr.mxu0 0.0
    %2702 = vmatpush1.msra.mxu0 %v2655
    %2703 = vmatprep.subr.mxu0 0.0
    %2704 = vmatpush2.msra.mxu0 0.0
    %2705 = vmatprep.subr.mxu0 0.0
    %2706 = vmatpush2.msra.mxu0 0.0
    %2707 = vmatprep.subr.mxu0 0.0
    %2708 = vmatpush2.msra.mxu0 0.0
    %2709 = vmatprep.subr.mxu0 0.0
    %2710 = vmatpush2.msra.mxu0 0.0
    %2711 = vmatprep.subr.mxu0 0.0
    %2712 = vmatpush2.msra.mxu0 0.0
    %2713 = vmatprep.subr.mxu0 0.0
    %2714 = vmatpush2.msra.mxu0 0.0
    %2715 = vmatprep.subr.mxu0 0.0
    %2716 = vmatpush2.msra.mxu0 0.0
    %2717 = vmatprep.subr.mxu0 0.0
    %2718 = vmatpush2.msra.mxu0 0.0
    %2719 = vmatprep.subr.mxu0 0.0
    %2720 = vmatpush2.msra.mxu0 0.0
    %2721 = vmatprep.subr.mxu0 0.0
    %2722 = vmatpush2.msra.mxu0 0.0
    %2723 = vmatprep.subr.mxu0 0.0
    %2724 = vmatpush2.msra.mxu0 0.0
    %2725 = vmatprep.subr.mxu0 0.0
    %2726 = vmatpush2.msra.mxu0 0.0
    %2727 = vmatprep.subr.mxu0 0.0
    %2728 = vmatpush2.msra.mxu0 0.0
    %2729 = vmatprep.subr.mxu0 0.0
    %2730 = vmatpush2.msra.mxu0 0.0
    %2731 = vmatprep.subr.mxu0 0.0
    %2732 = vmatpush2.msra.mxu0 0.0
    %2733 = vmatprep.subr.mxu0 0.0
    %2734 = vmatpush2.msra.mxu0 0.0
    %2735 = vmatprep.mubr.f32.mxu0 0.0
    %2736 = vmatmul.mubr.f32.gmra.mxu0 %v2654
    %v2737 = vpop.f32.mrf.mxu0
    %v2738 = vadd.f32 %v69, %v2737
    %v2739 = vpop.f32.mrf.mxu0
    %2740 = vdwg.mxu0
    %2741 = vst [vmem:[#allocation2 + $0x7] sm:$0x1] %v2738
    %2742 = vst [vmem:[#allocation4 - $0x7] sm:$0x80] %v2493
    %2743 = vst [vmem:[#allocation4 + $0x1] sm:$0x1] %v2654
    // Predicated region
    $region38: #{rnn_model_forward.1} parent=1 // pred_check
      _
    $region39: #{rnn_model_forward.1} parent=1 // pred_check_branch
      %2745 = sbr.rel (0) target = $region41
    $region40: #{rnn_model_forward.1} parent=1 // pred_region
      %s2747 = ssub.s32 128, 128
      %2748 = vsyncadd [#allocation3], %s2747
      %s2750 = sshll.u32 [#allocation2], 4
      %s2751 = int_to_ptr.vmem [resolvable:$true] %s2750
      %2753 = dma.vmem_to_hbm [thread:$0]  %s2751, 128, %s9, [#allocation3]
    $region41: #{rnn_model_forward.1} parent=1 // pred_fallthru
      _
    // Predicated region
    $region42: #{rnn_model_forward.1} parent=1 // pred_check
      _
    $region43: #{rnn_model_forward.1} parent=1 // pred_check_branch
      %2755 = sbr.rel (0) target = $region45
    $region44: #{rnn_model_forward.1} parent=1 // pred_region
      %s2757 = ssub.s32 32, 32
      %2758 = vsyncadd [#allocation5], %s2757
      %s2760 = sshll.u32 [#allocation4], 4
      %s2761 = int_to_ptr.vmem [resolvable:$true] %s2760
      %2763 = dma.vmem_to_hbm [thread:$0]  %s2761, 32, %s10, [#allocation5]
    $region45: #{rnn_model_forward.1} parent=1 // pred_fallthru
      _
    // Predicated region
    $region46: #{rnn_model_forward.1} parent=1 // pred_check
      _
    $region47: #{rnn_model_forward.1} parent=1 // pred_check_branch
      %2765 = sbr.rel (0) target = $region49
    $region48: #{rnn_model_forward.1} parent=1 // pred_region
      %2766 = dma.done [#allocation3], 128
    $region49: #{rnn_model_forward.1} parent=1 // pred_fallthru
      _
    // Predicated region
    $region50: #{rnn_model_forward.1} parent=1 // pred_check
      _
    $region51: #{rnn_model_forward.1} parent=1 // pred_check_branch
      %2768 = sbr.rel (0) target = $region53
    $region52: #{rnn_model_forward.1} parent=1 // pred_region
      %2769 = dma.done [#allocation5], 32
    $region53: #{rnn_model_forward.1} parent=1 // pred_fallthru
      _
    %2770 = vsyncpa [#allocation3], 1
    %2771 = vsyncpa [#allocation5], 1

</llo_original>
